<compile_context>
chip_gen: v5e
topology: v5e:2x2
jax: 0.10.0
libtpu: 0.0.40
codegen_flags: <defaults>
</compile_context>

<pallas_src>
import functools
import math

import jax
import jax.numpy as jnp
from jax import lax
from jax.experimental import pallas as pl
from jax.experimental.pallas import tpu as pltpu


# ------------------------------ fused kernel --------------------------------

def _fused_kernel(*refs, num_heads, view_size):
    (adj_ref, nf_ref, ef_ref,
     g1w, g1b, g2w, g2b, g3w, g3b, g4w, g4b,
     g5w, g5b, g6w, g6b, g7w, g7b, g8w, g8b,
     mv_w, mv_b,
     emp_w, emp_b,
     emb_w, emb_b,
     wqkv, bqkv, wo, bo,
     f1w, f1b, f2w, f2b,
     enc_ref, seqv_ref, subv_ref, uef_ref, rec_ref, tout_ref) = refs

    adj = adj_ref[0]          # (N, N)   — one batch element per grid step
    nf = nf_ref[0]            # (N, F)
    ef = ef_ref[0]            # (N, F)

    def linear(x, w_ref, b_ref, relu=False):
        y = jnp.dot(x, w_ref[...], preferred_element_type=jnp.float32) + b_ref[...]
        return jnp.maximum(y, 0.0) if relu else y

    def gcl(x, w_ref, b_ref, relu=False):
        xw = jnp.dot(x, w_ref[...], preferred_element_type=jnp.float32)
        y = jnp.dot(adj, xw, preferred_element_type=jnp.float32) + b_ref[...]
        return jnp.maximum(y, 0.0) if relu else y

    # --- MultiviewContrastiveGCLAutoencoder: encoder ---
    x = gcl(nf, g1w, g1b, relu=True)
    x = gcl(x, g2w, g2b, relu=True)
    x = gcl(x, g3w, g3b, relu=True)
    encoded = gcl(x, g4w, g4b)
    enc_ref[0] = encoded.astype(enc_ref.dtype)

    # multiview contrastive views (fused into one matmul) + edge message passing
    views = linear(nf, mv_w, mv_b)                        # (N, 2*V)
    seqv_ref[0] = views[:, :view_size].astype(seqv_ref.dtype)
    subv_ref[0] = views[:, view_size:].astype(subv_ref.dtype)
    uef_ref[0] = gcl(ef, emp_w, emp_b).astype(uef_ref.dtype)

    # decoder
    x = gcl(encoded, g5w, g5b, relu=True)
    x = gcl(x, g6w, g6b, relu=True)
    x = gcl(x, g7w, g7b, relu=True)
    rec_ref[0] = gcl(x, g8w, g8b).astype(rec_ref.dtype)

    # --- Transformer (adjacency path; `transformer_input` is never read by
    #     the reference forward) ---
    emb = linear(adj, emb_w, emb_b)                       # (S, H)
    S, H = emb.shape
    d = H // num_heads
    scale = 1.0 / math.sqrt(d)

    # Only the last attention layer matters (reference quirk: every layer
    # consumes the same `emb`, only the last output survives).  Inference:
    # dropout is a no-op.
    qkv = jnp.dot(emb, wqkv[...], preferred_element_type=jnp.float32) + bqkv[...]
    q_all = qkv[:, :H] * scale                            # fold scale into Q once
    wo_m = wo[...]                                        # (H, H)
    attn_out = jnp.zeros((S, H), jnp.float32) + bo[...]   # start from out-proj bias
    for h in range(num_heads):
        lo = h * d
        qh = q_all[:, lo:lo + d]                          # (S, d)
        kh = qkv[:, H + lo:H + lo + d]
        vh = qkv[:, 2 * H + lo:2 * H + lo + d]
        s = lax.dot_general(qh, kh, (((1,), (1,)), ((), ())),
                            preferred_element_type=jnp.float32)
        s = s - jnp.max(s, axis=-1, keepdims=True)
        p = jnp.exp(s)
        p = p * pl.reciprocal(jnp.sum(p, axis=-1, keepdims=True), approx=True)
        ctx = jnp.dot(p, vh, preferred_element_type=jnp.float32)        # (S, d)
        # fold output projection into the head loop (== concat(heads) @ Wo)
        attn_out = attn_out + jnp.dot(ctx, wo_m[lo:lo + d, :],
                                      preferred_element_type=jnp.float32)

    hid = jnp.maximum(
        jnp.dot(attn_out, f1w[...], preferred_element_type=jnp.float32) + f1b[...],
        0.0)
    tout_ref[0] = (jnp.dot(hid, f2w[...], preferred_element_type=jnp.float32)
                   + f2b[...]).astype(tout_ref.dtype)


# ------------------------------- parameters ---------------------------------

def _linear_params(key, fin, fout):
    k1, k2 = jax.random.split(key)
    bound = 1.0 / math.sqrt(fin)
    w = jax.random.uniform(k1, (fin, fout), jnp.float32, -bound, bound)
    b = jax.random.uniform(k2, (1, fout), jnp.float32, -bound, bound)
    return w, b


def init_params(key, *, input_size, latent_size, view_size,
                transformer_input_size, hidden_size, num_layers):
    keys = iter(jax.random.split(key, 64))
    p = {}
    gcl_dims = [(input_size, 64), (64, 32), (32, 16), (16, latent_size),
                (latent_size, 16), (16, 32), (32, 64), (64, input_size)]
    for i, (fin, fout) in enumerate(gcl_dims, start=1):
        p[f"gcl{i}"] = _linear_params(next(keys), fin, fout)
    p["mv_seq"] = _linear_params(next(keys), input_size, view_size)
    p["mv_sub"] = _linear_params(next(keys), input_size, view_size)
    p["edge_mp"] = _linear_params(next(keys), input_size, input_size)
    p["adj_emb"] = _linear_params(next(keys), transformer_input_size, hidden_size)
    attn_layers = []
    for _ in range(num_layers):
        # packed q|k|v projection (mirrors PyTorch's in_proj_weight) + out-proj
        wqkv, bqkv = _linear_params(next(keys), hidden_size, 3 * hidden_size)
        wo, bo = _linear_params(next(keys), hidden_size, hidden_size)
        attn_layers.append((wqkv, bqkv, wo, bo))
    p["attn_layers"] = attn_layers
    p["ff1"] = _linear_params(next(keys), hidden_size, hidden_size)
    p["ff2"] = _linear_params(next(keys), hidden_size, hidden_size)
    return p


# ----------------------------- cost estimate ---------------------------------

def _cost_estimate(B, N, f_in, latent, view, hidden, num_heads,
                   in_arrays, out_shapes):
    def mm(m, k, n):
        return 2 * m * k * n
    gcl_dims = [(f_in, 64), (64, 32), (32, 16), (16, latent),
                (latent, 16), (16, 32), (32, 64), (64, f_in)]
    per_b = 0
    for fin, fout in gcl_dims:
        per_b += mm(N, fin, fout) + mm(N, N, fout)      # X@W then A@(X@W)
    per_b += mm(N, f_in, 2 * view)                      # fused contrastive views
    per_b += mm(N, f_in, f_in) + mm(N, N, f_in)         # edge message passing
    per_b += mm(N, N, hidden)                           # adjacency embedding
    per_b += mm(N, hidden, 3 * hidden)                  # fused QKV
    d = hidden // num_heads
    per_b += num_heads * (mm(N, d, N) + mm(N, N, d) + mm(N, d, hidden))
    per_b += 2 * mm(N, hidden, hidden)                  # feed-forward
    flops = B * per_b
    transcendentals = B * num_heads * N * N             # softmax exp
    bytes_acc = sum(int(a.size) * a.dtype.itemsize for a in in_arrays)
    bytes_acc += sum(math.prod(s.shape) * jnp.dtype(s.dtype).itemsize
                     for s in out_shapes)
    return flops, transcendentals, bytes_acc


# ------------------------------ forward pass ---------------------------------

def representation_learning_forward(params, adjacency_matrix, node_features,
                                    edge_features, transformer_input=None,
                                    *, num_heads):
    # NOTE: the reference Transformer.forward never reads `transformer_input`
    # (its `reconstructed_graph` arg); it is intentionally not DMA'd.
    del transformer_input

    B, N, _ = adjacency_matrix.shape
    f_in = node_features.shape[-1]
    latent = params["gcl4"][0].shape[1]
    view = params["mv_seq"][0].shape[1]
    hidden = params["adj_emb"][0].shape[1]

    # fuse the two multiview-contrastive projections into one weight/bias
    mv_w = jnp.concatenate([params["mv_seq"][0], params["mv_sub"][0]], axis=1)
    mv_b = jnp.concatenate([params["mv_seq"][1], params["mv_sub"][1]], axis=1)

    weights = []
    for i in range(1, 9):
        weights += list(params[f"gcl{i}"])
    weights += [mv_w, mv_b]
    weights += list(params["edge_mp"])
    weights += list(params["adj_emb"])
    # dead-layer elimination: only the LAST attention layer's output survives
    weights += list(params["attn_layers"][-1])
    weights += list(params["ff1"]) + list(params["ff2"])

    def per_batch(shape):
        nd = len(shape)
        return pl.BlockSpec((1,) + tuple(shape[1:]),
                            lambda b, _nd=nd: (b,) + (0,) * (_nd - 1))

    def whole(arr):
        return pl.BlockSpec(arr.shape, lambda b, _nd=arr.ndim: (0,) * _nd)

    in_arrays = [adjacency_matrix, node_features, edge_features] + weights
    in_specs = ([per_batch(adjacency_matrix.shape),
                 per_batch(node_features.shape),
                 per_batch(edge_features.shape)]
                + [whole(w) for w in weights])

    out_shapes = (
        jax.ShapeDtypeStruct((B, N, latent), jnp.float32),   # encoded
        jax.ShapeDtypeStruct((B, N, view), jnp.float32),     # subsequence view
        jax.ShapeDtypeStruct((B, N, view), jnp.float32),     # subspace view
        jax.ShapeDtypeStruct((B, N, f_in), jnp.float32),     # updated edge feats
        jax.ShapeDtypeStruct((B, N, f_in), jnp.float32),     # reconstructed nodes
        jax.ShapeDtypeStruct((B, N, hidden), jnp.float32),   # transformer out
    )
    out_specs = tuple(per_batch(s.shape) for s in out_shapes)

    flops, transc, bytes_acc = _cost_estimate(
        B, N, f_in, latent, view, hidden, num_heads, in_arrays, out_shapes)

    return pl.pallas_call(
        functools.partial(_fused_kernel, num_heads=num_heads, view_size=view),
        grid=(B,),
        in_specs=in_specs,
        out_specs=out_specs,
        out_shape=out_shapes,
        compiler_params=pltpu.CompilerParams(
            dimension_semantics=("parallel",),        # megacore split over batch
            vmem_limit_bytes=8 * 1024 * 1024),
        cost_estimate=pl.CostEstimate(flops=flops, transcendentals=transc,
                                      bytes_accessed=bytes_acc),
    )(*in_arrays)


# ---------------------------------- main -------------------------------------

if __name__ == "__main__":
    B = 2            # batch of graphs
    N = 16           # nodes per graph
    input_size = 8   # node / edge feature dim
    latent_size = 4
    view_size = 8
    transformer_input_size = N   # Linear over rows of the (N x N) adjacency
    hidden_size = 32
    num_layers = 2
    num_heads = 4

    key = jax.random.PRNGKey(0)
    k_par, k_adj, k_nf, k_ef = jax.random.split(key, 4)

    params = init_params(
        k_par, input_size=input_size, latent_size=latent_size,
        view_size=view_size, transformer_input_size=transformer_input_size,
        hidden_size=hidden_size, num_layers=num_layers)

    adjacency_matrix = jax.random.uniform(k_adj, (B, N, N), jnp.float32)
    node_features = jax.random.normal(k_nf, (B, N, input_size), jnp.float32)
    edge_features = jax.random.normal(k_ef, (B, N, input_size), jnp.float32)

    outs = representation_learning_forward(
        params, adjacency_matrix, node_features, edge_features,
        None, num_heads=num_heads)
    outs = jax.block_until_ready(outs)

    (encoded, subsequence_view, subspace_view, updated_edge_features,
     reconstructed_node_features, transformer_output) = outs
    assert encoded.shape == (B, N, latent_size)
    assert subsequence_view.shape == (B, N, view_size)
    assert subspace_view.shape == (B, N, view_size)
    assert updated_edge_features.shape == (B, N, input_size)
    assert reconstructed_node_features.shape == (B, N, input_size)
    assert transformer_output.shape == (B, N, hidden_size)
    print("KERNEL_OK")
</pallas_src>

<mosaic_0001>
module attributes {stable_mosaic.version = 11 : i64} {
  func.func @_fused_kernel(%arg0: i32, %arg1: memref<1x16x16xf32, #tpu.memory_space<vmem>>, %arg2: memref<1x16x8xf32, #tpu.memory_space<vmem>>, %arg3: memref<1x16x8xf32, #tpu.memory_space<vmem>>, %arg4: memref<8x64xf32, #tpu.memory_space<vmem>>, %arg5: memref<1x64xf32, #tpu.memory_space<vmem>>, %arg6: memref<64x32xf32, #tpu.memory_space<vmem>>, %arg7: memref<1x32xf32, #tpu.memory_space<vmem>>, %arg8: memref<32x16xf32, #tpu.memory_space<vmem>>, %arg9: memref<1x16xf32, #tpu.memory_space<vmem>>, %arg10: memref<16x4xf32, #tpu.memory_space<vmem>>, %arg11: memref<1x4xf32, #tpu.memory_space<vmem>>, %arg12: memref<4x16xf32, #tpu.memory_space<vmem>>, %arg13: memref<1x16xf32, #tpu.memory_space<vmem>>, %arg14: memref<16x32xf32, #tpu.memory_space<vmem>>, %arg15: memref<1x32xf32, #tpu.memory_space<vmem>>, %arg16: memref<32x64xf32, #tpu.memory_space<vmem>>, %arg17: memref<1x64xf32, #tpu.memory_space<vmem>>, %arg18: memref<64x8xf32, #tpu.memory_space<vmem>>, %arg19: memref<1x8xf32, #tpu.memory_space<vmem>>, %arg20: memref<8x16xf32, #tpu.memory_space<vmem>>, %arg21: memref<1x16xf32, #tpu.memory_space<vmem>>, %arg22: memref<8x8xf32, #tpu.memory_space<vmem>>, %arg23: memref<1x8xf32, #tpu.memory_space<vmem>>, %arg24: memref<16x32xf32, #tpu.memory_space<vmem>>, %arg25: memref<1x32xf32, #tpu.memory_space<vmem>>, %arg26: memref<32x96xf32, #tpu.memory_space<vmem>>, %arg27: memref<1x96xf32, #tpu.memory_space<vmem>>, %arg28: memref<32x32xf32, #tpu.memory_space<vmem>>, %arg29: memref<1x32xf32, #tpu.memory_space<vmem>>, %arg30: memref<32x32xf32, #tpu.memory_space<vmem>>, %arg31: memref<1x32xf32, #tpu.memory_space<vmem>>, %arg32: memref<32x32xf32, #tpu.memory_space<vmem>>, %arg33: memref<1x32xf32, #tpu.memory_space<vmem>>, %arg34: memref<1x16x4xf32, #tpu.memory_space<vmem>>, %arg35: memref<1x16x8xf32, #tpu.memory_space<vmem>>, %arg36: memref<1x16x8xf32, #tpu.memory_space<vmem>>, %arg37: memref<1x16x8xf32, #tpu.memory_space<vmem>>, %arg38: memref<1x16x8xf32, #tpu.memory_space<vmem>>, %arg39: memref<1x16x32xf32, #tpu.memory_space<vmem>>) attributes {dimension_semantics = [#tpu.dimension_semantics<parallel>], iteration_bounds = array<i64: 2>, scalar_prefetch = 0 : i64, scratch_operands = 0 : i64, tpu.core_type = #tpu.core_type<tc>, window_params = [{transform_indices = @transform_0, window_bounds = array<i64: 1, 16, 16>}, {transform_indices = @transform_1, window_bounds = array<i64: 1, 16, 8>}, {transform_indices = @transform_2, window_bounds = array<i64: 1, 16, 8>}, {pipeline_mode = #tpu.pipeline_mode<synchronous>, transform_indices = @transform_3, window_bounds = array<i64: 8, 64>}, {pipeline_mode = #tpu.pipeline_mode<synchronous>, transform_indices = @transform_4, window_bounds = array<i64: 1, 64>}, {pipeline_mode = #tpu.pipeline_mode<synchronous>, transform_indices = @transform_5, window_bounds = array<i64: 64, 32>}, {pipeline_mode = #tpu.pipeline_mode<synchronous>, transform_indices = @transform_6, window_bounds = array<i64: 1, 32>}, {pipeline_mode = #tpu.pipeline_mode<synchronous>, transform_indices = @transform_7, window_bounds = array<i64: 32, 16>}, {pipeline_mode = #tpu.pipeline_mode<synchronous>, transform_indices = @transform_8, window_bounds = array<i64: 1, 16>}, {pipeline_mode = #tpu.pipeline_mode<synchronous>, transform_indices = @transform_9, window_bounds = array<i64: 16, 4>}, {pipeline_mode = #tpu.pipeline_mode<synchronous>, transform_indices = @transform_10, window_bounds = array<i64: 1, 4>}, {pipeline_mode = #tpu.pipeline_mode<synchronous>, transform_indices = @transform_11, window_bounds = array<i64: 4, 16>}, {pipeline_mode = #tpu.pipeline_mode<synchronous>, transform_indices = @transform_12, window_bounds = array<i64: 1, 16>}, {pipeline_mode = #tpu.pipeline_mode<synchronous>, transform_indices = @transform_13, window_bounds = array<i64: 16, 32>}, {pipeline_mode = #tpu.pipeline_mode<synchronous>, transform_indices = @transform_14, window_bounds = array<i64: 1, 32>}, {pipeline_mode = #tpu.pipeline_mode<synchronous>, transform_indices = @transform_15, window_bounds = array<i64: 32, 64>}, {pipeline_mode = #tpu.pipeline_mode<synchronous>, transform_indices = @transform_16, window_bounds = array<i64: 1, 64>}, {pipeline_mode = #tpu.pipeline_mode<synchronous>, transform_indices = @transform_17, window_bounds = array<i64: 64, 8>}, {pipeline_mode = #tpu.pipeline_mode<synchronous>, transform_indices = @transform_18, window_bounds = array<i64: 1, 8>}, {pipeline_mode = #tpu.pipeline_mode<synchronous>, transform_indices = @transform_19, window_bounds = array<i64: 8, 16>}, {pipeline_mode = #tpu.pipeline_mode<synchronous>, transform_indices = @transform_20, window_bounds = array<i64: 1, 16>}, {pipeline_mode = #tpu.pipeline_mode<synchronous>, transform_indices = @transform_21, window_bounds = array<i64: 8, 8>}, {pipeline_mode = #tpu.pipeline_mode<synchronous>, transform_indices = @transform_22, window_bounds = array<i64: 1, 8>}, {pipeline_mode = #tpu.pipeline_mode<synchronous>, transform_indices = @transform_23, window_bounds = array<i64: 16, 32>}, {pipeline_mode = #tpu.pipeline_mode<synchronous>, transform_indices = @transform_24, window_bounds = array<i64: 1, 32>}, {pipeline_mode = #tpu.pipeline_mode<synchronous>, transform_indices = @transform_25, window_bounds = array<i64: 32, 96>}, {pipeline_mode = #tpu.pipeline_mode<synchronous>, transform_indices = @transform_26, window_bounds = array<i64: 1, 96>}, {pipeline_mode = #tpu.pipeline_mode<synchronous>, transform_indices = @transform_27, window_bounds = array<i64: 32, 32>}, {pipeline_mode = #tpu.pipeline_mode<synchronous>, transform_indices = @transform_28, window_bounds = array<i64: 1, 32>}, {pipeline_mode = #tpu.pipeline_mode<synchronous>, transform_indices = @transform_29, window_bounds = array<i64: 32, 32>}, {pipeline_mode = #tpu.pipeline_mode<synchronous>, transform_indices = @transform_30, window_bounds = array<i64: 1, 32>}, {pipeline_mode = #tpu.pipeline_mode<synchronous>, transform_indices = @transform_31, window_bounds = array<i64: 32, 32>}, {pipeline_mode = #tpu.pipeline_mode<synchronous>, transform_indices = @transform_32, window_bounds = array<i64: 1, 32>}, {transform_indices = @transform_33, window_bounds = array<i64: 1, 16, 4>}, {transform_indices = @transform_34, window_bounds = array<i64: 1, 16, 8>}, {transform_indices = @transform_35, window_bounds = array<i64: 1, 16, 8>}, {transform_indices = @transform_36, window_bounds = array<i64: 1, 16, 8>}, {transform_indices = @transform_37, window_bounds = array<i64: 1, 16, 8>}, {transform_indices = @transform_38, window_bounds = array<i64: 1, 16, 32>}]} {
    %c0 = arith.constant 0 : index
    %c0_0 = arith.constant 0 : index
    %c0_1 = arith.constant 0 : index
    %0 = vector.load %arg1[%c0, %c0_0, %c0_1] : memref<1x16x16xf32, #tpu.memory_space<vmem>>, vector<1x16x16xf32>
    %1 = vector.shape_cast %0 : vector<1x16x16xf32> to vector<16x16xf32>
    %c0_2 = arith.constant 0 : index
    %c0_3 = arith.constant 0 : index
    %c0_4 = arith.constant 0 : index
    %2 = vector.load %arg2[%c0_2, %c0_3, %c0_4] : memref<1x16x8xf32, #tpu.memory_space<vmem>>, vector<1x16x8xf32>
    %3 = vector.shape_cast %2 : vector<1x16x8xf32> to vector<16x8xf32>
    %c0_5 = arith.constant 0 : index
    %c0_6 = arith.constant 0 : index
    %c0_7 = arith.constant 0 : index
    %4 = vector.load %arg3[%c0_5, %c0_6, %c0_7] : memref<1x16x8xf32, #tpu.memory_space<vmem>>, vector<1x16x8xf32>
    %5 = vector.shape_cast %4 : vector<1x16x8xf32> to vector<16x8xf32>
    %c0_8 = arith.constant 0 : index
    %c0_9 = arith.constant 0 : index
    %6 = vector.load %arg4[%c0_8, %c0_9] : memref<8x64xf32, #tpu.memory_space<vmem>>, vector<8x64xf32>
    %cst = arith.constant dense<0.000000e+00> : vector<16x64xf32>
    %7 = tpu.matmul %3, %6, %cst {dimension_numbers = #tpu.dot_dimension_numbers<[1], [0], [0], [1], [0, 0, 1, 1], [], []>} : vector<16x8xf32>, vector<8x64xf32>, vector<16x64xf32> -> vector<16x64xf32>
    %cst_10 = arith.constant dense<0.000000e+00> : vector<16x64xf32>
    %8 = tpu.matmul %1, %7, %cst_10 {dimension_numbers = #tpu.dot_dimension_numbers<[1], [0], [0], [1], [0, 0, 1, 1], [], []>} : vector<16x16xf32>, vector<16x64xf32>, vector<16x64xf32> -> vector<16x64xf32>
    %c0_11 = arith.constant 0 : index
    %c0_12 = arith.constant 0 : index
    %9 = vector.load %arg5[%c0_11, %c0_12] : memref<1x64xf32, #tpu.memory_space<vmem>>, vector<1x64xf32>
    %10 = vector.broadcast %9 : vector<1x64xf32> to vector<16x64xf32>
    %11 = arith.addf %8, %10 : vector<16x64xf32>
    %cst_13 = arith.constant 0.000000e+00 : f32
    %12 = vector.broadcast %cst_13 : f32 to vector<16x64xf32>
    %13 = arith.maximumf %11, %12 : vector<16x64xf32>
    %c0_14 = arith.constant 0 : index
    %c0_15 = arith.constant 0 : index
    %14 = vector.load %arg6[%c0_14, %c0_15] : memref<64x32xf32, #tpu.memory_space<vmem>>, vector<64x32xf32>
    %cst_16 = arith.constant dense<0.000000e+00> : vector<16x32xf32>
    %15 = tpu.matmul %13, %14, %cst_16 {dimension_numbers = #tpu.dot_dimension_numbers<[1], [0], [0], [1], [0, 0, 1, 1], [], []>} : vector<16x64xf32>, vector<64x32xf32>, vector<16x32xf32> -> vector<16x32xf32>
    %cst_17 = arith.constant dense<0.000000e+00> : vector<16x32xf32>
    %16 = tpu.matmul %1, %15, %cst_17 {dimension_numbers = #tpu.dot_dimension_numbers<[1], [0], [0], [1], [0, 0, 1, 1], [], []>} : vector<16x16xf32>, vector<16x32xf32>, vector<16x32xf32> -> vector<16x32xf32>
    %c0_18 = arith.constant 0 : index
    %c0_19 = arith.constant 0 : index
    %17 = vector.load %arg7[%c0_18, %c0_19] : memref<1x32xf32, #tpu.memory_space<vmem>>, vector<1x32xf32>
    %18 = vector.broadcast %17 : vector<1x32xf32> to vector<16x32xf32>
    %19 = arith.addf %16, %18 : vector<16x32xf32>
    %cst_20 = arith.constant 0.000000e+00 : f32
    %20 = vector.broadcast %cst_20 : f32 to vector<16x32xf32>
    %21 = arith.maximumf %19, %20 : vector<16x32xf32>
    %c0_21 = arith.constant 0 : index
    %c0_22 = arith.constant 0 : index
    %22 = vector.load %arg8[%c0_21, %c0_22] : memref<32x16xf32, #tpu.memory_space<vmem>>, vector<32x16xf32>
    %cst_23 = arith.constant dense<0.000000e+00> : vector<16x16xf32>
    %23 = tpu.matmul %21, %22, %cst_23 {dimension_numbers = #tpu.dot_dimension_numbers<[1], [0], [0], [1], [0, 0, 1, 1], [], []>} : vector<16x32xf32>, vector<32x16xf32>, vector<16x16xf32> -> vector<16x16xf32>
    %cst_24 = arith.constant dense<0.000000e+00> : vector<16x16xf32>
    %24 = tpu.matmul %1, %23, %cst_24 {dimension_numbers = #tpu.dot_dimension_numbers<[1], [0], [0], [1], [0, 0, 1, 1], [], []>} : vector<16x16xf32>, vector<16x16xf32>, vector<16x16xf32> -> vector<16x16xf32>
    %c0_25 = arith.constant 0 : index
    %c0_26 = arith.constant 0 : index
    %25 = vector.load %arg9[%c0_25, %c0_26] : memref<1x16xf32, #tpu.memory_space<vmem>>, vector<1x16xf32>
    %26 = vector.broadcast %25 : vector<1x16xf32> to vector<16x16xf32>
    %27 = arith.addf %24, %26 : vector<16x16xf32>
    %cst_27 = arith.constant 0.000000e+00 : f32
    %28 = vector.broadcast %cst_27 : f32 to vector<16x16xf32>
    %29 = arith.maximumf %27, %28 : vector<16x16xf32>
    %c0_28 = arith.constant 0 : index
    %c0_29 = arith.constant 0 : index
    %30 = vector.load %arg10[%c0_28, %c0_29] : memref<16x4xf32, #tpu.memory_space<vmem>>, vector<16x4xf32>
    %cst_30 = arith.constant dense<0.000000e+00> : vector<16x4xf32>
    %31 = tpu.matmul %29, %30, %cst_30 {dimension_numbers = #tpu.dot_dimension_numbers<[1], [0], [0], [1], [0, 0, 1, 1], [], []>} : vector<16x16xf32>, vector<16x4xf32>, vector<16x4xf32> -> vector<16x4xf32>
    %cst_31 = arith.constant dense<0.000000e+00> : vector<16x4xf32>
    %32 = tpu.matmul %1, %31, %cst_31 {dimension_numbers = #tpu.dot_dimension_numbers<[1], [0], [0], [1], [0, 0, 1, 1], [], []>} : vector<16x16xf32>, vector<16x4xf32>, vector<16x4xf32> -> vector<16x4xf32>
    %c0_32 = arith.constant 0 : index
    %c0_33 = arith.constant 0 : index
    %33 = vector.load %arg11[%c0_32, %c0_33] : memref<1x4xf32, #tpu.memory_space<vmem>>, vector<1x4xf32>
    %34 = vector.broadcast %33 : vector<1x4xf32> to vector<16x4xf32>
    %35 = arith.addf %32, %34 : vector<16x4xf32>
    %c0_34 = arith.constant 0 : index
    %c0_35 = arith.constant 0 : index
    %c0_36 = arith.constant 0 : index
    %36 = vector.load %arg34[%c0_34, %c0_35, %c0_36] : memref<1x16x4xf32, #tpu.memory_space<vmem>>, vector<1x16x4xf32>
    %37 = vector.shape_cast %36 : vector<1x16x4xf32> to vector<16x4xf32>
    %38 = vector.shape_cast %35 : vector<16x4xf32> to vector<1x16x4xf32>
    tpu.vector_store %arg34[%c0_34, %c0_35, %c0_36], %38 {strides = array<i32>} : memref<1x16x4xf32, #tpu.memory_space<vmem>>, vector<1x16x4xf32>,
    %c0_37 = arith.constant 0 : index
    %c0_38 = arith.constant 0 : index
    %39 = vector.load %arg20[%c0_37, %c0_38] : memref<8x16xf32, #tpu.memory_space<vmem>>, vector<8x16xf32>
    %cst_39 = arith.constant dense<0.000000e+00> : vector<16x16xf32>
    %40 = tpu.matmul %3, %39, %cst_39 {dimension_numbers = #tpu.dot_dimension_numbers<[1], [0], [0], [1], [0, 0, 1, 1], [], []>} : vector<16x8xf32>, vector<8x16xf32>, vector<16x16xf32> -> vector<16x16xf32>
    %c0_40 = arith.constant 0 : index
    %c0_41 = arith.constant 0 : index
    %41 = vector.load %arg21[%c0_40, %c0_41] : memref<1x16xf32, #tpu.memory_space<vmem>>, vector<1x16xf32>
    %42 = vector.broadcast %41 : vector<1x16xf32> to vector<16x16xf32>
    %43 = arith.addf %40, %42 : vector<16x16xf32>
    %44 = vector.extract_strided_slice %43 {offsets = [0, 0], sizes = [16, 8], strides = [1, 1]} : vector<16x16xf32> to vector<16x8xf32>
    %c0_42 = arith.constant 0 : index
    %c0_43 = arith.constant 0 : index
    %c0_44 = arith.constant 0 : index
    %45 = vector.load %arg35[%c0_42, %c0_43, %c0_44] : memref<1x16x8xf32, #tpu.memory_space<vmem>>, vector<1x16x8xf32>
    %46 = vector.shape_cast %45 : vector<1x16x8xf32> to vector<16x8xf32>
    %47 = vector.shape_cast %44 : vector<16x8xf32> to vector<1x16x8xf32>
    tpu.vector_store %arg35[%c0_42, %c0_43, %c0_44], %47 {strides = array<i32>} : memref<1x16x8xf32, #tpu.memory_space<vmem>>, vector<1x16x8xf32>,
    %48 = vector.extract_strided_slice %43 {offsets = [0, 8], sizes = [16, 8], strides = [1, 1]} : vector<16x16xf32> to vector<16x8xf32>
    %c0_45 = arith.constant 0 : index
    %c0_46 = arith.constant 0 : index
    %c0_47 = arith.constant 0 : index
    %49 = vector.load %arg36[%c0_45, %c0_46, %c0_47] : memref<1x16x8xf32, #tpu.memory_space<vmem>>, vector<1x16x8xf32>
    %50 = vector.shape_cast %49 : vector<1x16x8xf32> to vector<16x8xf32>
    %51 = vector.shape_cast %48 : vector<16x8xf32> to vector<1x16x8xf32>
    tpu.vector_store %arg36[%c0_45, %c0_46, %c0_47], %51 {strides = array<i32>} : memref<1x16x8xf32, #tpu.memory_space<vmem>>, vector<1x16x8xf32>,
    %c0_48 = arith.constant 0 : index
    %c0_49 = arith.constant 0 : index
    %52 = vector.load %arg22[%c0_48, %c0_49] : memref<8x8xf32, #tpu.memory_space<vmem>>, vector<8x8xf32>
    %cst_50 = arith.constant dense<0.000000e+00> : vector<16x8xf32>
    %53 = tpu.matmul %5, %52, %cst_50 {dimension_numbers = #tpu.dot_dimension_numbers<[1], [0], [0], [1], [0, 0, 1, 1], [], []>} : vector<16x8xf32>, vector<8x8xf32>, vector<16x8xf32> -> vector<16x8xf32>
    %cst_51 = arith.constant dense<0.000000e+00> : vector<16x8xf32>
    %54 = tpu.matmul %1, %53, %cst_51 {dimension_numbers = #tpu.dot_dimension_numbers<[1], [0], [0], [1], [0, 0, 1, 1], [], []>} : vector<16x16xf32>, vector<16x8xf32>, vector<16x8xf32> -> vector<16x8xf32>
    %c0_52 = arith.constant 0 : index
    %c0_53 = arith.constant 0 : index
    %55 = vector.load %arg23[%c0_52, %c0_53] : memref<1x8xf32, #tpu.memory_space<vmem>>, vector<1x8xf32>
    %56 = vector.broadcast %55 : vector<1x8xf32> to vector<16x8xf32>
    %57 = arith.addf %54, %56 : vector<16x8xf32>
    %c0_54 = arith.constant 0 : index
    %c0_55 = arith.constant 0 : index
    %c0_56 = arith.constant 0 : index
    %58 = vector.load %arg37[%c0_54, %c0_55, %c0_56] : memref<1x16x8xf32, #tpu.memory_space<vmem>>, vector<1x16x8xf32>
    %59 = vector.shape_cast %58 : vector<1x16x8xf32> to vector<16x8xf32>
    %60 = vector.shape_cast %57 : vector<16x8xf32> to vector<1x16x8xf32>
    tpu.vector_store %arg37[%c0_54, %c0_55, %c0_56], %60 {strides = array<i32>} : memref<1x16x8xf32, #tpu.memory_space<vmem>>, vector<1x16x8xf32>,
    %c0_57 = arith.constant 0 : index
    %c0_58 = arith.constant 0 : index
    %61 = vector.load %arg12[%c0_57, %c0_58] : memref<4x16xf32, #tpu.memory_space<vmem>>, vector<4x16xf32>
    %cst_59 = arith.constant dense<0.000000e+00> : vector<16x16xf32>
    %62 = tpu.matmul %35, %61, %cst_59 {dimension_numbers = #tpu.dot_dimension_numbers<[1], [0], [0], [1], [0, 0, 1, 1], [], []>} : vector<16x4xf32>, vector<4x16xf32>, vector<16x16xf32> -> vector<16x16xf32>
    %cst_60 = arith.constant dense<0.000000e+00> : vector<16x16xf32>
    %63 = tpu.matmul %1, %62, %cst_60 {dimension_numbers = #tpu.dot_dimension_numbers<[1], [0], [0], [1], [0, 0, 1, 1], [], []>} : vector<16x16xf32>, vector<16x16xf32>, vector<16x16xf32> -> vector<16x16xf32>
    %c0_61 = arith.constant 0 : index
    %c0_62 = arith.constant 0 : index
    %64 = vector.load %arg13[%c0_61, %c0_62] : memref<1x16xf32, #tpu.memory_space<vmem>>, vector<1x16xf32>
    %65 = vector.broadcast %64 : vector<1x16xf32> to vector<16x16xf32>
    %66 = arith.addf %63, %65 : vector<16x16xf32>
    %cst_63 = arith.constant 0.000000e+00 : f32
    %67 = vector.broadcast %cst_63 : f32 to vector<16x16xf32>
    %68 = arith.maximumf %66, %67 : vector<16x16xf32>
    %c0_64 = arith.constant 0 : index
    %c0_65 = arith.constant 0 : index
    %69 = vector.load %arg14[%c0_64, %c0_65] : memref<16x32xf32, #tpu.memory_space<vmem>>, vector<16x32xf32>
    %cst_66 = arith.constant dense<0.000000e+00> : vector<16x32xf32>
    %70 = tpu.matmul %68, %69, %cst_66 {dimension_numbers = #tpu.dot_dimension_numbers<[1], [0], [0], [1], [0, 0, 1, 1], [], []>} : vector<16x16xf32>, vector<16x32xf32>, vector<16x32xf32> -> vector<16x32xf32>
    %cst_67 = arith.constant dense<0.000000e+00> : vector<16x32xf32>
    %71 = tpu.matmul %1, %70, %cst_67 {dimension_numbers = #tpu.dot_dimension_numbers<[1], [0], [0], [1], [0, 0, 1, 1], [], []>} : vector<16x16xf32>, vector<16x32xf32>, vector<16x32xf32> -> vector<16x32xf32>
    %c0_68 = arith.constant 0 : index
    %c0_69 = arith.constant 0 : index
    %72 = vector.load %arg15[%c0_68, %c0_69] : memref<1x32xf32, #tpu.memory_space<vmem>>, vector<1x32xf32>
    %73 = vector.broadcast %72 : vector<1x32xf32> to vector<16x32xf32>
    %74 = arith.addf %71, %73 : vector<16x32xf32>
    %cst_70 = arith.constant 0.000000e+00 : f32
    %75 = vector.broadcast %cst_70 : f32 to vector<16x32xf32>
    %76 = arith.maximumf %74, %75 : vector<16x32xf32>
    %c0_71 = arith.constant 0 : index
    %c0_72 = arith.constant 0 : index
    %77 = vector.load %arg16[%c0_71, %c0_72] : memref<32x64xf32, #tpu.memory_space<vmem>>, vector<32x64xf32>
    %cst_73 = arith.constant dense<0.000000e+00> : vector<16x64xf32>
    %78 = tpu.matmul %76, %77, %cst_73 {dimension_numbers = #tpu.dot_dimension_numbers<[1], [0], [0], [1], [0, 0, 1, 1], [], []>} : vector<16x32xf32>, vector<32x64xf32>, vector<16x64xf32> -> vector<16x64xf32>
    %cst_74 = arith.constant dense<0.000000e+00> : vector<16x64xf32>
    %79 = tpu.matmul %1, %78, %cst_74 {dimension_numbers = #tpu.dot_dimension_numbers<[1], [0], [0], [1], [0, 0, 1, 1], [], []>} : vector<16x16xf32>, vector<16x64xf32>, vector<16x64xf32> -> vector<16x64xf32>
    %c0_75 = arith.constant 0 : index
    %c0_76 = arith.constant 0 : index
    %80 = vector.load %arg17[%c0_75, %c0_76] : memref<1x64xf32, #tpu.memory_space<vmem>>, vector<1x64xf32>
    %81 = vector.broadcast %80 : vector<1x64xf32> to vector<16x64xf32>
    %82 = arith.addf %79, %81 : vector<16x64xf32>
    %cst_77 = arith.constant 0.000000e+00 : f32
    %83 = vector.broadcast %cst_77 : f32 to vector<16x64xf32>
    %84 = arith.maximumf %82, %83 : vector<16x64xf32>
    %c0_78 = arith.constant 0 : index
    %c0_79 = arith.constant 0 : index
    %85 = vector.load %arg18[%c0_78, %c0_79] : memref<64x8xf32, #tpu.memory_space<vmem>>, vector<64x8xf32>
    %cst_80 = arith.constant dense<0.000000e+00> : vector<16x8xf32>
    %86 = tpu.matmul %84, %85, %cst_80 {dimension_numbers = #tpu.dot_dimension_numbers<[1], [0], [0], [1], [0, 0, 1, 1], [], []>} : vector<16x64xf32>, vector<64x8xf32>, vector<16x8xf32> -> vector<16x8xf32>
    %cst_81 = arith.constant dense<0.000000e+00> : vector<16x8xf32>
    %87 = tpu.matmul %1, %86, %cst_81 {dimension_numbers = #tpu.dot_dimension_numbers<[1], [0], [0], [1], [0, 0, 1, 1], [], []>} : vector<16x16xf32>, vector<16x8xf32>, vector<16x8xf32> -> vector<16x8xf32>
    %c0_82 = arith.constant 0 : index
    %c0_83 = arith.constant 0 : index
    %88 = vector.load %arg19[%c0_82, %c0_83] : memref<1x8xf32, #tpu.memory_space<vmem>>, vector<1x8xf32>
    %89 = vector.broadcast %88 : vector<1x8xf32> to vector<16x8xf32>
    %90 = arith.addf %87, %89 : vector<16x8xf32>
    %c0_84 = arith.constant 0 : index
    %c0_85 = arith.constant 0 : index
    %c0_86 = arith.constant 0 : index
    %91 = vector.load %arg38[%c0_84, %c0_85, %c0_86] : memref<1x16x8xf32, #tpu.memory_space<vmem>>, vector<1x16x8xf32>
    %92 = vector.shape_cast %91 : vector<1x16x8xf32> to vector<16x8xf32>
    %93 = vector.shape_cast %90 : vector<16x8xf32> to vector<1x16x8xf32>
    tpu.vector_store %arg38[%c0_84, %c0_85, %c0_86], %93 {strides = array<i32>} : memref<1x16x8xf32, #tpu.memory_space<vmem>>, vector<1x16x8xf32>,
    %c0_87 = arith.constant 0 : index
    %c0_88 = arith.constant 0 : index
    %94 = vector.load %arg24[%c0_87, %c0_88] : memref<16x32xf32, #tpu.memory_space<vmem>>, vector<16x32xf32>
    %cst_89 = arith.constant dense<0.000000e+00> : vector<16x32xf32>
    %95 = tpu.matmul %1, %94, %cst_89 {dimension_numbers = #tpu.dot_dimension_numbers<[1], [0], [0], [1], [0, 0, 1, 1], [], []>} : vector<16x16xf32>, vector<16x32xf32>, vector<16x32xf32> -> vector<16x32xf32>
    %c0_90 = arith.constant 0 : index
    %c0_91 = arith.constant 0 : index
    %96 = vector.load %arg25[%c0_90, %c0_91] : memref<1x32xf32, #tpu.memory_space<vmem>>, vector<1x32xf32>
    %97 = vector.broadcast %96 : vector<1x32xf32> to vector<16x32xf32>
    %98 = arith.addf %95, %97 : vector<16x32xf32>
    %c0_92 = arith.constant 0 : index
    %c0_93 = arith.constant 0 : index
    %99 = vector.load %arg26[%c0_92, %c0_93] : memref<32x96xf32, #tpu.memory_space<vmem>>, vector<32x96xf32>
    %cst_94 = arith.constant dense<0.000000e+00> : vector<16x96xf32>
    %100 = tpu.matmul %98, %99, %cst_94 {dimension_numbers = #tpu.dot_dimension_numbers<[1], [0], [0], [1], [0, 0, 1, 1], [], []>} : vector<16x32xf32>, vector<32x96xf32>, vector<16x96xf32> -> vector<16x96xf32>
    %c0_95 = arith.constant 0 : index
    %c0_96 = arith.constant 0 : index
    %101 = vector.load %arg27[%c0_95, %c0_96] : memref<1x96xf32, #tpu.memory_space<vmem>>, vector<1x96xf32>
    %102 = vector.broadcast %101 : vector<1x96xf32> to vector<16x96xf32>
    %103 = arith.addf %100, %102 : vector<16x96xf32>
    %104 = vector.extract_strided_slice %103 {offsets = [0, 0], sizes = [16, 32], strides = [1, 1]} : vector<16x96xf32> to vector<16x32xf32>
    %cst_97 = arith.constant 0.353553385 : f32
    %105 = vector.broadcast %cst_97 : f32 to vector<16x32xf32>
    %106 = arith.mulf %104, %105 : vector<16x32xf32>
    %c0_98 = arith.constant 0 : index
    %c0_99 = arith.constant 0 : index
    %107 = vector.load %arg28[%c0_98, %c0_99] : memref<32x32xf32, #tpu.memory_space<vmem>>, vector<32x32xf32>
    %cst_100 = arith.constant 0.000000e+00 : f32
    %108 = vector.broadcast %cst_100 : f32 to vector<16x32xf32>
    %c0_101 = arith.constant 0 : index
    %c0_102 = arith.constant 0 : index
    %109 = vector.load %arg29[%c0_101, %c0_102] : memref<1x32xf32, #tpu.memory_space<vmem>>, vector<1x32xf32>
    %110 = vector.broadcast %109 : vector<1x32xf32> to vector<16x32xf32>
    %111 = arith.addf %108, %110 : vector<16x32xf32>
    %112 = vector.extract_strided_slice %106 {offsets = [0, 0], sizes = [16, 8], strides = [1, 1]} : vector<16x32xf32> to vector<16x8xf32>
    %113 = vector.extract_strided_slice %103 {offsets = [0, 32], sizes = [16, 8], strides = [1, 1]} : vector<16x96xf32> to vector<16x8xf32>
    %114 = vector.extract_strided_slice %103 {offsets = [0, 64], sizes = [16, 8], strides = [1, 1]} : vector<16x96xf32> to vector<16x8xf32>
    %cst_103 = arith.constant dense<0.000000e+00> : vector<16x16xf32>
    %115 = tpu.matmul %112, %113, %cst_103 {dimension_numbers = #tpu.dot_dimension_numbers<[1], [1], [0], [0], [0, 0, 1, 0], [], []>} : vector<16x8xf32>, vector<16x8xf32>, vector<16x16xf32> -> vector<16x16xf32>
    %cst_104 = arith.constant dense<0xFF800000> : vector<16xf32>
    %116 = vector.multi_reduction <maximumf>, %115, %cst_104 [1] : vector<16x16xf32> to vector<16xf32>
    %117 = vector.shape_cast %116 : vector<16xf32> to vector<16x1xf32>
    %118 = vector.broadcast %117 : vector<16x1xf32> to vector<16x16xf32>
    %119 = arith.subf %115, %118 : vector<16x16xf32>
    %120 = math.exp %119 : vector<16x16xf32>
    %cst_105 = arith.constant dense<0.000000e+00> : vector<16xf32>
    %121 = vector.multi_reduction <add>, %120, %cst_105 [1] : vector<16x16xf32> to vector<16xf32>
    %122 = vector.shape_cast %121 : vector<16xf32> to vector<16x1xf32>
    %123 = tpu.reciprocal %122 {approx = true} : vector<16x1xf32> -> vector<16x1xf32>
    %124 = vector.broadcast %123 : vector<16x1xf32> to vector<16x16xf32>
    %125 = arith.mulf %120, %124 : vector<16x16xf32>
    %cst_106 = arith.constant dense<0.000000e+00> : vector<16x8xf32>
    %126 = tpu.matmul %125, %114, %cst_106 {dimension_numbers = #tpu.dot_dimension_numbers<[1], [0], [0], [1], [0, 0, 1, 1], [], []>} : vector<16x16xf32>, vector<16x8xf32>, vector<16x8xf32> -> vector<16x8xf32>
    %127 = vector.extract_strided_slice %107 {offsets = [0, 0], sizes = [8, 32], strides = [1, 1]} : vector<32x32xf32> to vector<8x32xf32>
    %cst_107 = arith.constant dense<0.000000e+00> : vector<16x32xf32>
    %128 = tpu.matmul %126, %127, %cst_107 {dimension_numbers = #tpu.dot_dimension_numbers<[1], [0], [0], [1], [0, 0, 1, 1], [], []>} : vector<16x8xf32>, vector<8x32xf32>, vector<16x32xf32> -> vector<16x32xf32>
    %129 = arith.addf %111, %128 : vector<16x32xf32>
    %130 = vector.extract_strided_slice %106 {offsets = [0, 8], sizes = [16, 8], strides = [1, 1]} : vector<16x32xf32> to vector<16x8xf32>
    %131 = vector.extract_strided_slice %103 {offsets = [0, 40], sizes = [16, 8], strides = [1, 1]} : vector<16x96xf32> to vector<16x8xf32>
    %132 = vector.extract_strided_slice %103 {offsets = [0, 72], sizes = [16, 8], strides = [1, 1]} : vector<16x96xf32> to vector<16x8xf32>
    %cst_108 = arith.constant dense<0.000000e+00> : vector<16x16xf32>
    %133 = tpu.matmul %130, %131, %cst_108 {dimension_numbers = #tpu.dot_dimension_numbers<[1], [1], [0], [0], [0, 0, 1, 0], [], []>} : vector<16x8xf32>, vector<16x8xf32>, vector<16x16xf32> -> vector<16x16xf32>
    %cst_109 = arith.constant dense<0xFF800000> : vector<16xf32>
    %134 = vector.multi_reduction <maximumf>, %133, %cst_109 [1] : vector<16x16xf32> to vector<16xf32>
    %135 = vector.shape_cast %134 : vector<16xf32> to vector<16x1xf32>
    %136 = vector.broadcast %135 : vector<16x1xf32> to vector<16x16xf32>
    %137 = arith.subf %133, %136 : vector<16x16xf32>
    %138 = math.exp %137 : vector<16x16xf32>
    %cst_110 = arith.constant dense<0.000000e+00> : vector<16xf32>
    %139 = vector.multi_reduction <add>, %138, %cst_110 [1] : vector<16x16xf32> to vector<16xf32>
    %140 = vector.shape_cast %139 : vector<16xf32> to vector<16x1xf32>
    %141 = tpu.reciprocal %140 {approx = true} : vector<16x1xf32> -> vector<16x1xf32>
    %142 = vector.broadcast %141 : vector<16x1xf32> to vector<16x16xf32>
    %143 = arith.mulf %138, %142 : vector<16x16xf32>
    %cst_111 = arith.constant dense<0.000000e+00> : vector<16x8xf32>
    %144 = tpu.matmul %143, %132, %cst_111 {dimension_numbers = #tpu.dot_dimension_numbers<[1], [0], [0], [1], [0, 0, 1, 1], [], []>} : vector<16x16xf32>, vector<16x8xf32>, vector<16x8xf32> -> vector<16x8xf32>
    %145 = vector.extract_strided_slice %107 {offsets = [8, 0], sizes = [8, 32], strides = [1, 1]} : vector<32x32xf32> to vector<8x32xf32>
    %cst_112 = arith.constant dense<0.000000e+00> : vector<16x32xf32>
    %146 = tpu.matmul %144, %145, %cst_112 {dimension_numbers = #tpu.dot_dimension_numbers<[1], [0], [0], [1], [0, 0, 1, 1], [], []>} : vector<16x8xf32>, vector<8x32xf32>, vector<16x32xf32> -> vector<16x32xf32>
    %147 = arith.addf %129, %146 : vector<16x32xf32>
    %148 = vector.extract_strided_slice %106 {offsets = [0, 16], sizes = [16, 8], strides = [1, 1]} : vector<16x32xf32> to vector<16x8xf32>
    %149 = vector.extract_strided_slice %103 {offsets = [0, 48], sizes = [16, 8], strides = [1, 1]} : vector<16x96xf32> to vector<16x8xf32>
    %150 = vector.extract_strided_slice %103 {offsets = [0, 80], sizes = [16, 8], strides = [1, 1]} : vector<16x96xf32> to vector<16x8xf32>
    %cst_113 = arith.constant dense<0.000000e+00> : vector<16x16xf32>
    %151 = tpu.matmul %148, %149, %cst_113 {dimension_numbers = #tpu.dot_dimension_numbers<[1], [1], [0], [0], [0, 0, 1, 0], [], []>} : vector<16x8xf32>, vector<16x8xf32>, vector<16x16xf32> -> vector<16x16xf32>
    %cst_114 = arith.constant dense<0xFF800000> : vector<16xf32>
    %152 = vector.multi_reduction <maximumf>, %151, %cst_114 [1] : vector<16x16xf32> to vector<16xf32>
    %153 = vector.shape_cast %152 : vector<16xf32> to vector<16x1xf32>
    %154 = vector.broadcast %153 : vector<16x1xf32> to vector<16x16xf32>
    %155 = arith.subf %151, %154 : vector<16x16xf32>
    %156 = math.exp %155 : vector<16x16xf32>
    %cst_115 = arith.constant dense<0.000000e+00> : vector<16xf32>
    %157 = vector.multi_reduction <add>, %156, %cst_115 [1] : vector<16x16xf32> to vector<16xf32>
    %158 = vector.shape_cast %157 : vector<16xf32> to vector<16x1xf32>
    %159 = tpu.reciprocal %158 {approx = true} : vector<16x1xf32> -> vector<16x1xf32>
    %160 = vector.broadcast %159 : vector<16x1xf32> to vector<16x16xf32>
    %161 = arith.mulf %156, %160 : vector<16x16xf32>
    %cst_116 = arith.constant dense<0.000000e+00> : vector<16x8xf32>
    %162 = tpu.matmul %161, %150, %cst_116 {dimension_numbers = #tpu.dot_dimension_numbers<[1], [0], [0], [1], [0, 0, 1, 1], [], []>} : vector<16x16xf32>, vector<16x8xf32>, vector<16x8xf32> -> vector<16x8xf32>
    %163 = vector.extract_strided_slice %107 {offsets = [16, 0], sizes = [8, 32], strides = [1, 1]} : vector<32x32xf32> to vector<8x32xf32>
    %cst_117 = arith.constant dense<0.000000e+00> : vector<16x32xf32>
    %164 = tpu.matmul %162, %163, %cst_117 {dimension_numbers = #tpu.dot_dimension_numbers<[1], [0], [0], [1], [0, 0, 1, 1], [], []>} : vector<16x8xf32>, vector<8x32xf32>, vector<16x32xf32> -> vector<16x32xf32>
    %165 = arith.addf %147, %164 : vector<16x32xf32>
    %166 = vector.extract_strided_slice %106 {offsets = [0, 24], sizes = [16, 8], strides = [1, 1]} : vector<16x32xf32> to vector<16x8xf32>
    %167 = vector.extract_strided_slice %103 {offsets = [0, 56], sizes = [16, 8], strides = [1, 1]} : vector<16x96xf32> to vector<16x8xf32>
    %168 = vector.extract_strided_slice %103 {offsets = [0, 88], sizes = [16, 8], strides = [1, 1]} : vector<16x96xf32> to vector<16x8xf32>
    %cst_118 = arith.constant dense<0.000000e+00> : vector<16x16xf32>
    %169 = tpu.matmul %166, %167, %cst_118 {dimension_numbers = #tpu.dot_dimension_numbers<[1], [1], [0], [0], [0, 0, 1, 0], [], []>} : vector<16x8xf32>, vector<16x8xf32>, vector<16x16xf32> -> vector<16x16xf32>
    %cst_119 = arith.constant dense<0xFF800000> : vector<16xf32>
    %170 = vector.multi_reduction <maximumf>, %169, %cst_119 [1] : vector<16x16xf32> to vector<16xf32>
    %171 = vector.shape_cast %170 : vector<16xf32> to vector<16x1xf32>
    %172 = vector.broadcast %171 : vector<16x1xf32> to vector<16x16xf32>
    %173 = arith.subf %169, %172 : vector<16x16xf32>
    %174 = math.exp %173 : vector<16x16xf32>
    %cst_120 = arith.constant dense<0.000000e+00> : vector<16xf32>
    %175 = vector.multi_reduction <add>, %174, %cst_120 [1] : vector<16x16xf32> to vector<16xf32>
    %176 = vector.shape_cast %175 : vector<16xf32> to vector<16x1xf32>
    %177 = tpu.reciprocal %176 {approx = true} : vector<16x1xf32> -> vector<16x1xf32>
    %178 = vector.broadcast %177 : vector<16x1xf32> to vector<16x16xf32>
    %179 = arith.mulf %174, %178 : vector<16x16xf32>
    %cst_121 = arith.constant dense<0.000000e+00> : vector<16x8xf32>
    %180 = tpu.matmul %179, %168, %cst_121 {dimension_numbers = #tpu.dot_dimension_numbers<[1], [0], [0], [1], [0, 0, 1, 1], [], []>} : vector<16x16xf32>, vector<16x8xf32>, vector<16x8xf32> -> vector<16x8xf32>
    %181 = vector.extract_strided_slice %107 {offsets = [24, 0], sizes = [8, 32], strides = [1, 1]} : vector<32x32xf32> to vector<8x32xf32>
    %cst_122 = arith.constant dense<0.000000e+00> : vector<16x32xf32>
    %182 = tpu.matmul %180, %181, %cst_122 {dimension_numbers = #tpu.dot_dimension_numbers<[1], [0], [0], [1], [0, 0, 1, 1], [], []>} : vector<16x8xf32>, vector<8x32xf32>, vector<16x32xf32> -> vector<16x32xf32>
    %183 = arith.addf %165, %182 : vector<16x32xf32>
    %c0_123 = arith.constant 0 : index
    %c0_124 = arith.constant 0 : index
    %184 = vector.load %arg30[%c0_123, %c0_124] : memref<32x32xf32, #tpu.memory_space<vmem>>, vector<32x32xf32>
    %cst_125 = arith.constant dense<0.000000e+00> : vector<16x32xf32>
    %185 = tpu.matmul %183, %184, %cst_125 {dimension_numbers = #tpu.dot_dimension_numbers<[1], [0], [0], [1], [0, 0, 1, 1], [], []>} : vector<16x32xf32>, vector<32x32xf32>, vector<16x32xf32> -> vector<16x32xf32>
    %c0_126 = arith.constant 0 : index
    %c0_127 = arith.constant 0 : index
    %186 = vector.load %arg31[%c0_126, %c0_127] : memref<1x32xf32, #tpu.memory_space<vmem>>, vector<1x32xf32>
    %187 = vector.broadcast %186 : vector<1x32xf32> to vector<16x32xf32>
    %188 = arith.addf %185, %187 : vector<16x32xf32>
    %cst_128 = arith.constant 0.000000e+00 : f32
    %189 = vector.broadcast %cst_128 : f32 to vector<16x32xf32>
    %190 = arith.maximumf %188, %189 : vector<16x32xf32>
    %c0_129 = arith.constant 0 : index
    %c0_130 = arith.constant 0 : index
    %191 = vector.load %arg32[%c0_129, %c0_130] : memref<32x32xf32, #tpu.memory_space<vmem>>, vector<32x32xf32>
    %cst_131 = arith.constant dense<0.000000e+00> : vector<16x32xf32>
    %192 = tpu.matmul %190, %191, %cst_131 {dimension_numbers = #tpu.dot_dimension_numbers<[1], [0], [0], [1], [0, 0, 1, 1], [], []>} : vector<16x32xf32>, vector<32x32xf32>, vector<16x32xf32> -> vector<16x32xf32>
    %c0_132 = arith.constant 0 : index
    %c0_133 = arith.constant 0 : index
    %193 = vector.load %arg33[%c0_132, %c0_133] : memref<1x32xf32, #tpu.memory_space<vmem>>, vector<1x32xf32>
    %194 = vector.broadcast %193 : vector<1x32xf32> to vector<16x32xf32>
    %195 = arith.addf %192, %194 : vector<16x32xf32>
    %c0_134 = arith.constant 0 : index
    %c0_135 = arith.constant 0 : index
    %c0_136 = arith.constant 0 : index
    %196 = vector.load %arg39[%c0_134, %c0_135, %c0_136] : memref<1x16x32xf32, #tpu.memory_space<vmem>>, vector<1x16x32xf32>
    %197 = vector.shape_cast %196 : vector<1x16x32xf32> to vector<16x32xf32>
    %198 = vector.shape_cast %195 : vector<16x32xf32> to vector<1x16x32xf32>
    tpu.vector_store %arg39[%c0_134, %c0_135, %c0_136], %198 {strides = array<i32>} : memref<1x16x32xf32, #tpu.memory_space<vmem>>, vector<1x16x32xf32>,
    return
  }
  func.func @transform_0(%arg0: i32) -> (i32, i32, i32) {
    %c0_i32 = arith.constant 0 : i32
    %c0_i32_0 = arith.constant 0 : i32
    %c0_i32_1 = arith.constant 0 : i32
    return %arg0, %c0_i32, %c0_i32_0 : i32, i32, i32
  }
  func.func @transform_1(%arg0: i32) -> (i32, i32, i32) {
    %c0_i32 = arith.constant 0 : i32
    %c0_i32_0 = arith.constant 0 : i32
    %c0_i32_1 = arith.constant 0 : i32
    return %arg0, %c0_i32, %c0_i32_0 : i32, i32, i32
  }
  func.func @transform_2(%arg0: i32) -> (i32, i32, i32) {
    %c0_i32 = arith.constant 0 : i32
    %c0_i32_0 = arith.constant 0 : i32
    %c0_i32_1 = arith.constant 0 : i32
    return %arg0, %c0_i32, %c0_i32_0 : i32, i32, i32
  }
  func.func @transform_3(%arg0: i32) -> (i32, i32) {
    %c0_i32 = arith.constant 0 : i32
    %c0_i32_0 = arith.constant 0 : i32
    %c0_i32_1 = arith.constant 0 : i32
    return %c0_i32, %c0_i32_0 : i32, i32
  }
  func.func @transform_4(%arg0: i32) -> (i32, i32) {
    %c0_i32 = arith.constant 0 : i32
    %c0_i32_0 = arith.constant 0 : i32
    %c0_i32_1 = arith.constant 0 : i32
    return %c0_i32, %c0_i32_0 : i32, i32
  }
  func.func @transform_5(%arg0: i32) -> (i32, i32) {
    %c0_i32 = arith.constant 0 : i32
    %c0_i32_0 = arith.constant 0 : i32
    %c0_i32_1 = arith.constant 0 : i32
    return %c0_i32, %c0_i32_0 : i32, i32
  }
  func.func @transform_6(%arg0: i32) -> (i32, i32) {
    %c0_i32 = arith.constant 0 : i32
    %c0_i32_0 = arith.constant 0 : i32
    %c0_i32_1 = arith.constant 0 : i32
    return %c0_i32, %c0_i32_0 : i32, i32
  }
  func.func @transform_7(%arg0: i32) -> (i32, i32) {
    %c0_i32 = arith.constant 0 : i32
    %c0_i32_0 = arith.constant 0 : i32
    %c0_i32_1 = arith.constant 0 : i32
    return %c0_i32, %c0_i32_0 : i32, i32
  }
  func.func @transform_8(%arg0: i32) -> (i32, i32) {
    %c0_i32 = arith.constant 0 : i32
    %c0_i32_0 = arith.constant 0 : i32
    %c0_i32_1 = arith.constant 0 : i32
    return %c0_i32, %c0_i32_0 : i32, i32
  }
  func.func @transform_9(%arg0: i32) -> (i32, i32) {
    %c0_i32 = arith.constant 0 : i32
    %c0_i32_0 = arith.constant 0 : i32
    %c0_i32_1 = arith.constant 0 : i32
    return %c0_i32, %c0_i32_0 : i32, i32
  }
  func.func @transform_10(%arg0: i32) -> (i32, i32) {
    %c0_i32 = arith.constant 0 : i32
    %c0_i32_0 = arith.constant 0 : i32
    %c0_i32_1 = arith.constant 0 : i32
    return %c0_i32, %c0_i32_0 : i32, i32
  }
  func.func @transform_11(%arg0: i32) -> (i32, i32) {
    %c0_i32 = arith.constant 0 : i32
    %c0_i32_0 = arith.constant 0 : i32
    %c0_i32_1 = arith.constant 0 : i32
    return %c0_i32, %c0_i32_0 : i32, i32
  }
  func.func @transform_12(%arg0: i32) -> (i32, i32) {
    %c0_i32 = arith.constant 0 : i32
    %c0_i32_0 = arith.constant 0 : i32
    %c0_i32_1 = arith.constant 0 : i32
    return %c0_i32, %c0_i32_0 : i32, i32
  }
  func.func @transform_13(%arg0: i32) -> (i32, i32) {
    %c0_i32 = arith.constant 0 : i32
    %c0_i32_0 = arith.constant 0 : i32
    %c0_i32_1 = arith.constant 0 : i32
    return %c0_i32, %c0_i32_0 : i32, i32
  }
  func.func @transform_14(%arg0: i32) -> (i32, i32) {
    %c0_i32 = arith.constant 0 : i32
    %c0_i32_0 = arith.constant 0 : i32
    %c0_i32_1 = arith.constant 0 : i32
    return %c0_i32, %c0_i32_0 : i32, i32
  }
  func.func @transform_15(%arg0: i32) -> (i32, i32) {
    %c0_i32 = arith.constant 0 : i32
    %c0_i32_0 = arith.constant 0 : i32
    %c0_i32_1 = arith.constant 0 : i32
    return %c0_i32, %c0_i32_0 : i32, i32
  }
  func.func @transform_16(%arg0: i32) -> (i32, i32) {
    %c0_i32 = arith.constant 0 : i32
    %c0_i32_0 = arith.constant 0 : i32
    %c0_i32_1 = arith.constant 0 : i32
    return %c0_i32, %c0_i32_0 : i32, i32
  }
  func.func @transform_17(%arg0: i32) -> (i32, i32) {
    %c0_i32 = arith.constant 0 : i32
    %c0_i32_0 = arith.constant 0 : i32
    %c0_i32_1 = arith.constant 0 : i32
    return %c0_i32, %c0_i32_0 : i32, i32
  }
  func.func @transform_18(%arg0: i32) -> (i32, i32) {
    %c0_i32 = arith.constant 0 : i32
    %c0_i32_0 = arith.constant 0 : i32
    %c0_i32_1 = arith.constant 0 : i32
    return %c0_i32, %c0_i32_0 : i32, i32
  }
  func.func @transform_19(%arg0: i32) -> (i32, i32) {
    %c0_i32 = arith.constant 0 : i32
    %c0_i32_0 = arith.constant 0 : i32
    %c0_i32_1 = arith.constant 0 : i32
    return %c0_i32, %c0_i32_0 : i32, i32
  }
  func.func @transform_20(%arg0: i32) -> (i32, i32) {
    %c0_i32 = arith.constant 0 : i32
    %c0_i32_0 = arith.constant 0 : i32
    %c0_i32_1 = arith.constant 0 : i32
    return %c0_i32, %c0_i32_0 : i32, i32
  }
  func.func @transform_21(%arg0: i32) -> (i32, i32) {
    %c0_i32 = arith.constant 0 : i32
    %c0_i32_0 = arith.constant 0 : i32
    %c0_i32_1 = arith.constant 0 : i32
    return %c0_i32, %c0_i32_0 : i32, i32
  }
  func.func @transform_22(%arg0: i32) -> (i32, i32) {
    %c0_i32 = arith.constant 0 : i32
    %c0_i32_0 = arith.constant 0 : i32
    %c0_i32_1 = arith.constant 0 : i32
    return %c0_i32, %c0_i32_0 : i32, i32
  }
  func.func @transform_23(%arg0: i32) -> (i32, i32) {
    %c0_i32 = arith.constant 0 : i32
    %c0_i32_0 = arith.constant 0 : i32
    %c0_i32_1 = arith.constant 0 : i32
    return %c0_i32, %c0_i32_0 : i32, i32
  }
  func.func @transform_24(%arg0: i32) -> (i32, i32) {
    %c0_i32 = arith.constant 0 : i32
    %c0_i32_0 = arith.constant 0 : i32
    %c0_i32_1 = arith.constant 0 : i32
    return %c0_i32, %c0_i32_0 : i32, i32
  }
  func.func @transform_25(%arg0: i32) -> (i32, i32) {
    %c0_i32 = arith.constant 0 : i32
    %c0_i32_0 = arith.constant 0 : i32
    %c0_i32_1 = arith.constant 0 : i32
    return %c0_i32, %c0_i32_0 : i32, i32
  }
  func.func @transform_26(%arg0: i32) -> (i32, i32) {
    %c0_i32 = arith.constant 0 : i32
    %c0_i32_0 = arith.constant 0 : i32
    %c0_i32_1 = arith.constant 0 : i32
    return %c0_i32, %c0_i32_0 : i32, i32
  }
  func.func @transform_27(%arg0: i32) -> (i32, i32) {
    %c0_i32 = arith.constant 0 : i32
    %c0_i32_0 = arith.constant 0 : i32
    %c0_i32_1 = arith.constant 0 : i32
    return %c0_i32, %c0_i32_0 : i32, i32
  }
  func.func @transform_28(%arg0: i32) -> (i32, i32) {
    %c0_i32 = arith.constant 0 : i32
    %c0_i32_0 = arith.constant 0 : i32
    %c0_i32_1 = arith.constant 0 : i32
    return %c0_i32, %c0_i32_0 : i32, i32
  }
  func.func @transform_29(%arg0: i32) -> (i32, i32) {
    %c0_i32 = arith.constant 0 : i32
    %c0_i32_0 = arith.constant 0 : i32
    %c0_i32_1 = arith.constant 0 : i32
    return %c0_i32, %c0_i32_0 : i32, i32
  }
  func.func @transform_30(%arg0: i32) -> (i32, i32) {
    %c0_i32 = arith.constant 0 : i32
    %c0_i32_0 = arith.constant 0 : i32
    %c0_i32_1 = arith.constant 0 : i32
    return %c0_i32, %c0_i32_0 : i32, i32
  }
  func.func @transform_31(%arg0: i32) -> (i32, i32) {
    %c0_i32 = arith.constant 0 : i32
    %c0_i32_0 = arith.constant 0 : i32
    %c0_i32_1 = arith.constant 0 : i32
    return %c0_i32, %c0_i32_0 : i32, i32
  }
  func.func @transform_32(%arg0: i32) -> (i32, i32) {
    %c0_i32 = arith.constant 0 : i32
    %c0_i32_0 = arith.constant 0 : i32
    %c0_i32_1 = arith.constant 0 : i32
    return %c0_i32, %c0_i32_0 : i32, i32
  }
  func.func @transform_33(%arg0: i32) -> (i32, i32, i32) {
    %c0_i32 = arith.constant 0 : i32
    %c0_i32_0 = arith.constant 0 : i32
    %c0_i32_1 = arith.constant 0 : i32
    return %arg0, %c0_i32, %c0_i32_0 : i32, i32, i32
  }
  func.func @transform_34(%arg0: i32) -> (i32, i32, i32) {
    %c0_i32 = arith.constant 0 : i32
    %c0_i32_0 = arith.constant 0 : i32
    %c0_i32_1 = arith.constant 0 : i32
    return %arg0, %c0_i32, %c0_i32_0 : i32, i32, i32
  }
  func.func @transform_35(%arg0: i32) -> (i32, i32, i32) {
    %c0_i32 = arith.constant 0 : i32
    %c0_i32_0 = arith.constant 0 : i32
    %c0_i32_1 = arith.constant 0 : i32
    return %arg0, %c0_i32, %c0_i32_0 : i32, i32, i32
  }
  func.func @transform_36(%arg0: i32) -> (i32, i32, i32) {
    %c0_i32 = arith.constant 0 : i32
    %c0_i32_0 = arith.constant 0 : i32
    %c0_i32_1 = arith.constant 0 : i32
    return %arg0, %c0_i32, %c0_i32_0 : i32, i32, i32
  }
  func.func @transform_37(%arg0: i32) -> (i32, i32, i32) {
    %c0_i32 = arith.constant 0 : i32
    %c0_i32_0 = arith.constant 0 : i32
    %c0_i32_1 = arith.constant 0 : i32
    return %arg0, %c0_i32, %c0_i32_0 : i32, i32, i32
  }
  func.func @transform_38(%arg0: i32) -> (i32, i32, i32) {
    %c0_i32 = arith.constant 0 : i32
    %c0_i32_0 = arith.constant 0 : i32
    %c0_i32_1 = arith.constant 0 : i32
    return %arg0, %c0_i32, %c0_i32_0 : i32, i32, i32
  }
}

</mosaic_0001>

<llo_original>
// kernel: tpu_custom_call.1
$region0: #{tpu_custom_call.1}
  #allocation0 [shape = 'u32[]', space=smem, size = 0x4, offset = 0x4, fixed_abs, tag = 'smem constant byte address 0x4 - core index']
  #allocation1 [shape = 'u32[72,128]{1,0:T(1,128)}', space=vmem, size = 0x9000, scoped, tag = 'internal scratch']
  %s0 = inlined_call_operand.smem [shape: u32[39], index: -1, kind: input, shape index: {}]
  %s1 = sld [smem:[%s0]]
  %s2 = scalar_lea.smem %s0, 1
  %s3 = sld [smem:[%s2]]
  %s4 = scalar_lea.smem %s0, 2
  %s5 = sld [smem:[%s4]]
  %s6 = scalar_lea.smem %s0, 3
  %s7 = sld [smem:[%s6]]
  %s8 = scalar_lea.smem %s0, 4
  %s9 = sld [smem:[%s8]]
  %s10 = scalar_lea.smem %s0, 5
  %s11 = sld [smem:[%s10]]
  %s12 = scalar_lea.smem %s0, 6
  %s13 = sld [smem:[%s12]]
  %s14 = scalar_lea.smem %s0, 7
  %s15 = sld [smem:[%s14]]
  %s16 = scalar_lea.smem %s0, 8
  %s17 = sld [smem:[%s16]]
  %s18 = scalar_lea.smem %s0, 9
  %s19 = sld [smem:[%s18]]
  %s20 = scalar_lea.smem %s0, 10
  %s21 = sld [smem:[%s20]]
  %s22 = scalar_lea.smem %s0, 11
  %s23 = sld [smem:[%s22]]
  %s24 = scalar_lea.smem %s0, 12
  %s25 = sld [smem:[%s24]]
  %s26 = scalar_lea.smem %s0, 13
  %s27 = sld [smem:[%s26]]
  %s28 = scalar_lea.smem %s0, 14
  %s29 = sld [smem:[%s28]]
  %s30 = scalar_lea.smem %s0, 15
  %s31 = sld [smem:[%s30]]
  %s32 = scalar_lea.smem %s0, 16
  %s33 = sld [smem:[%s32]]
  %s34 = scalar_lea.smem %s0, 17
  %s35 = sld [smem:[%s34]]
  %s36 = scalar_lea.smem %s0, 18
  %s37 = sld [smem:[%s36]]
  %s38 = scalar_lea.smem %s0, 19
  %s39 = sld [smem:[%s38]]
  %s40 = scalar_lea.smem %s0, 20
  %s41 = sld [smem:[%s40]]
  %s42 = scalar_lea.smem %s0, 21
  %s43 = sld [smem:[%s42]]
  %s44 = scalar_lea.smem %s0, 22
  %s45 = sld [smem:[%s44]]
  %s46 = scalar_lea.smem %s0, 23
  %s47 = sld [smem:[%s46]]
  %s48 = scalar_lea.smem %s0, 24
  %s49 = sld [smem:[%s48]]
  %s50 = scalar_lea.smem %s0, 25
  %s51 = sld [smem:[%s50]]
  %s52 = scalar_lea.smem %s0, 26
  %s53 = sld [smem:[%s52]]
  %s54 = scalar_lea.smem %s0, 27
  %s55 = sld [smem:[%s54]]
  %s56 = scalar_lea.smem %s0, 28
  %s57 = sld [smem:[%s56]]
  %s58 = scalar_lea.smem %s0, 29
  %s59 = sld [smem:[%s58]]
  %s60 = scalar_lea.smem %s0, 30
  %s61 = sld [smem:[%s60]]
  %s62 = scalar_lea.smem %s0, 31
  %s63 = sld [smem:[%s62]]
  %s64 = scalar_lea.smem %s0, 32
  %s65 = sld [smem:[%s64]]
  %s66 = scalar_lea.smem %s0, 33
  %s67 = sld [smem:[%s66]]
  %s68 = scalar_lea.smem %s0, 34
  %s69 = sld [smem:[%s68]]
  %s70 = scalar_lea.smem %s0, 35
  %s71 = sld [smem:[%s70]]
  %s72 = scalar_lea.smem %s0, 36
  %s73 = sld [smem:[%s72]]
  %s74 = scalar_lea.smem %s0, 37
  %s75 = sld [smem:[%s74]]
  %s76 = scalar_lea.smem %s0, 38
  %s77 = sld [smem:[%s76]]
  %78 = xla_tuple %s67, %s69, %s71, %s73, %s75, %s77
  %s79 = sld [smem:[#allocation0]]
  $region225: #{tpu_custom_call.1} parent=0
    _
  %s81 = ssub.s32 1, %s79
  %s82 = scalar_select 0, %s81, %s79
  $region1: #{tpu_custom_call.1} parent=0
    #allocation2 [shape = 'u8[512]{0}', space=vmem, size = 0x400, scoped, tag = 'input window, operand 4, single buffered']
    #allocation3 [shape = 's32[2]{0}', space=sflag, size = 0x8, scoped, tag = 'scoped memory for tpu_custom_call.1']
    #allocation4 [shape = 's32[2]{0}', space=sflag, size = 0x8, scoped, tag = 'scoped memory for tpu_custom_call.1']
    #allocation5 [shape = 'u8[512]{0}', space=vmem, size = 0x400, scoped, tag = 'input window, operand 6, single buffered']
    #allocation6 [shape = 's32[1]{0}', space=sflag, size = 0x4, scoped, tag = 'scoped memory for tpu_custom_call.1']
    #allocation7 [shape = 'u8[512]{0}', space=vmem, size = 0x400, scoped, tag = 'input window, operand 8, single buffered']
    #allocation8 [shape = 'u8[512]{0}', space=vmem, size = 0x400, scoped, tag = 'input window, operand 10, single buffered']
    #allocation9 [shape = 's32[1]{0}', space=sflag, size = 0x4, scoped, tag = 'scoped memory for tpu_custom_call.1']
    #allocation10 [shape = 'u8[2048]{0}', space=vmem, size = 0x800, scoped, tag = 'input window, operand 11, single buffered']
    #allocation11 [shape = 'u8[16384]{0}', space=vmem, size = 0x4000, scoped, tag = 'output window, operand 5']
    %83 = vsyncpa [#allocation3], 0
    %84 = vsyncpa [#allocation6], 0
    %85 = vsyncpa [#allocation9], 0
    %86 = vsyncpa [#allocation4], 0
    %s87 = scalar_lea.sflag [#allocation4], 1
    %88 = vsyncpa %s87, 0
    loop: start=0, step=1, limit=4
    $region2: #{tpu_custom_call.1} parent=1 // loop_pre_header
      _
    $region3: #{tpu_custom_call.1} parent=1 // loop_header
      %s90 = sphi 0, %s94
      %p91 = scmp.ge.s32.totalorder %s90, 4
      %s100 = sphi 0, %s102
      %s103 = sphi 0, %s100
      %s104 = sphi 0, %s103
      %s120 = sphi 0, %s104
      %s126 = sphi 0, %s128
      %s129 = sphi 0, %s126
      %s130 = sphi 0, %s129
      %s146 = sphi 0, %s130
      %s152 = sphi 0, %s154
      %s155 = sphi 0, %s152
      %s156 = sphi 0, %s155
      %s172 = sphi 0, %s156
      %s176 = sphi 0, %s176
      %s178 = sphi 0, %s176
      %s179 = sphi 0, %s178
      %s193 = sphi 0, %s179
      %s197 = sphi 0, %s197
      %s199 = sphi 0, %s197
      %s200 = sphi 0, %s199
      %s214 = sphi 0, %s200
      %s218 = sphi 0, %s218
      %s220 = sphi 0, %s218
      %s221 = sphi 0, %s220
      %s235 = sphi 0, %s221
      %s239 = sphi 0, %s239
      %s241 = sphi 0, %s239
      %s242 = sphi 0, %s241
      %s256 = sphi 0, %s242
      %s260 = sphi 0, %s260
      %s262 = sphi 0, %s260
      %s263 = sphi 0, %s262
      %s277 = sphi 0, %s263
      %s281 = sphi 0, %s281
      %s283 = sphi 0, %s281
      %s284 = sphi 0, %s283
      %s298 = sphi 0, %s284
      %s302 = sphi 0, %s302
      %s304 = sphi 0, %s302
      %s305 = sphi 0, %s304
      %s319 = sphi 0, %s305
      %s323 = sphi 0, %s323
      %s325 = sphi 0, %s323
      %s326 = sphi 0, %s325
      %s340 = sphi 0, %s326
      %s344 = sphi 0, %s344
      %s346 = sphi 0, %s344
      %s347 = sphi 0, %s346
      %s361 = sphi 0, %s347
      %s365 = sphi 0, %s365
      %s367 = sphi 0, %s365
      %s368 = sphi 0, %s367
      %s382 = sphi 0, %s368
      %s386 = sphi 0, %s386
      %s388 = sphi 0, %s386
      %s389 = sphi 0, %s388
      %s403 = sphi 0, %s389
      %s407 = sphi 0, %s407
      %s409 = sphi 0, %s407
      %s410 = sphi 0, %s409
      %s424 = sphi 0, %s410
      %s428 = sphi 0, %s428
      %s430 = sphi 0, %s428
      %s431 = sphi 0, %s430
      %s445 = sphi 0, %s431
      %s449 = sphi 0, %s449
      %s451 = sphi 0, %s449
      %s452 = sphi 0, %s451
      %s466 = sphi 0, %s452
      %s470 = sphi 0, %s470
      %s472 = sphi 0, %s470
      %s473 = sphi 0, %s472
      %s487 = sphi 0, %s473
      %s491 = sphi 0, %s491
      %s493 = sphi 0, %s491
      %s494 = sphi 0, %s493
      %s508 = sphi 0, %s494
      %s512 = sphi 0, %s512
      %s514 = sphi 0, %s512
      %s515 = sphi 0, %s514
      %s529 = sphi 0, %s515
      %s533 = sphi 0, %s533
      %s535 = sphi 0, %s533
      %s536 = sphi 0, %s535
      %s550 = sphi 0, %s536
      %s554 = sphi 0, %s554
      %s556 = sphi 0, %s554
      %s557 = sphi 0, %s556
      %s571 = sphi 0, %s557
      %s575 = sphi 0, %s575
      %s577 = sphi 0, %s575
      %s578 = sphi 0, %s577
      %s592 = sphi 0, %s578
      %s596 = sphi 0, %s596
      %s598 = sphi 0, %s596
      %s599 = sphi 0, %s598
      %s613 = sphi 0, %s599
      %s617 = sphi 0, %s617
      %s619 = sphi 0, %s617
      %s620 = sphi 0, %s619
      %s634 = sphi 0, %s620
      %s638 = sphi 0, %s638
      %s640 = sphi 0, %s638
      %s641 = sphi 0, %s640
      %s655 = sphi 0, %s641
      %s659 = sphi 0, %s659
      %s661 = sphi 0, %s659
      %s662 = sphi 0, %s661
      %s676 = sphi 0, %s662
      %s680 = sphi 0, %s680
      %s682 = sphi 0, %s680
      %s683 = sphi 0, %s682
      %s697 = sphi 0, %s683
      %s701 = sphi 0, %s701
      %s703 = sphi 0, %s701
      %s704 = sphi 0, %s703
      %s718 = sphi 0, %s704
      %s722 = sphi 0, %s722
      %s724 = sphi 0, %s722
      %s725 = sphi 0, %s724
      %s739 = sphi 0, %s725
      %s743 = sphi 0, %s743
      %s745 = sphi 0, %s743
      %s746 = sphi 0, %s745
      %s760 = sphi 0, %s746
      %s764 = sphi 0, %s764
      %s766 = sphi 0, %s764
      %s767 = sphi 0, %s766
      %s781 = sphi 0, %s767
      %s785 = sphi 0, %s785
      %s787 = sphi 0, %s785
      %s788 = sphi 0, %s787
      %s802 = sphi 0, %s788
      %s808 = sphi 0, %s810
      %s811 = sphi 0, %s808
      %s812 = sphi 0, %s811
      %s828 = sphi 0, %s812
      %s834 = sphi 0, %s836
      %s837 = sphi 0, %s834
      %s838 = sphi 0, %s837
      %s854 = sphi 0, %s838
      %s860 = sphi 0, %s862
      %s863 = sphi 0, %s860
      %s864 = sphi 0, %s863
      %s880 = sphi 0, %s864
      %s886 = sphi 0, %s888
      %s889 = sphi 0, %s886
      %s890 = sphi 0, %s889
      %s906 = sphi 0, %s890
      %s912 = sphi 0, %s914
      %s915 = sphi 0, %s912
      %s916 = sphi 0, %s915
      %s932 = sphi 0, %s916
      %s938 = sphi 0, %s940
      %s941 = sphi 0, %s938
      %s942 = sphi 0, %s941
      %s958 = sphi 0, %s942
    $region4: #{tpu_custom_call.1} parent=1 // loop_header_branch
      %93 = sbr.rel (%p91) target = $region8
    $region5: #{tpu_custom_call.1} parent=1 // loop_body
      %s95 = ssub.s32 %s90, 1
      %s96 = ssub.s32 %s90, 2
      %s97 = sadd.s32 %s90, 1
      %s98 = ssub.s32 %s90, %s97
      %p99 = scmp.eq.s32.totalorder %s98, 0
      %s101 = sadd.s32 %s100, 1
      %s102 = scalar_select %p99, %s100, %s101
      %p105 = pneg %p99
      %p106 = scmp.eq.s32.totalorder %s90, 1
      %p107 = por %p105, %p106
      %p108 = scmp.ne.s32.totalorder %s100, %s103
      %p109 = scmp.eq.s32.totalorder %s90, 0
      %p110 = por %p108, %p109
      %p111 = scmp.ne.s32.totalorder %s100, %s103
      %p112 = scmp.eq.s32.totalorder %s95, 1
      %p113 = por %p111, %p112
      %p114 = scmp.ne.s32.totalorder %s103, %s104
      %p115 = scmp.eq.s32.totalorder %s95, 0
      %p116 = por %p114, %p115
      %p117 = scmp.ne.s32.totalorder %s103, %s104
      %p118 = scmp.eq.s32.totalorder %s96, 1
      %p119 = por %p117, %p118
      %p121 = scmp.ne.s32.totalorder %s104, %s120
      %p122 = scmp.eq.s32.totalorder %s96, 0
      %p123 = por %p121, %p122
      %s124 = ssub.s32 %s90, %s97
      %p125 = scmp.eq.s32.totalorder %s124, 0
      %s127 = sadd.s32 %s126, 1
      %s128 = scalar_select %p125, %s126, %s127
      %p131 = pneg %p125
      %p132 = scmp.eq.s32.totalorder %s90, 1
      %p133 = por %p131, %p132
      %p134 = scmp.ne.s32.totalorder %s126, %s129
      %p135 = scmp.eq.s32.totalorder %s90, 0
      %p136 = por %p134, %p135
      %p137 = scmp.ne.s32.totalorder %s126, %s129
      %p138 = scmp.eq.s32.totalorder %s95, 1
      %p139 = por %p137, %p138
      %p140 = scmp.ne.s32.totalorder %s129, %s130
      %p141 = scmp.eq.s32.totalorder %s95, 0
      %p142 = por %p140, %p141
      %p143 = scmp.ne.s32.totalorder %s129, %s130
      %p144 = scmp.eq.s32.totalorder %s96, 1
      %p145 = por %p143, %p144
      %p147 = scmp.ne.s32.totalorder %s130, %s146
      %p148 = scmp.eq.s32.totalorder %s96, 0
      %p149 = por %p147, %p148
      %s150 = ssub.s32 %s90, %s97
      %p151 = scmp.eq.s32.totalorder %s150, 0
      %s153 = sadd.s32 %s152, 1
      %s154 = scalar_select %p151, %s152, %s153
      %p157 = pneg %p151
      %p158 = scmp.eq.s32.totalorder %s90, 1
      %p159 = por %p157, %p158
      %p160 = scmp.ne.s32.totalorder %s152, %s155
      %p161 = scmp.eq.s32.totalorder %s90, 0
      %p162 = por %p160, %p161
      %p163 = scmp.ne.s32.totalorder %s152, %s155
      %p164 = scmp.eq.s32.totalorder %s95, 1
      %p165 = por %p163, %p164
      %p166 = scmp.ne.s32.totalorder %s155, %s156
      %p167 = scmp.eq.s32.totalorder %s95, 0
      %p168 = por %p166, %p167
      %p169 = scmp.ne.s32.totalorder %s155, %s156
      %p170 = scmp.eq.s32.totalorder %s96, 1
      %p171 = por %p169, %p170
      %p173 = scmp.ne.s32.totalorder %s156, %s172
      %p174 = scmp.eq.s32.totalorder %s96, 0
      %p175 = por %p173, %p174
      %s177 = sadd.s32 %s176, 1
      %p180 = scmp.eq.s32.totalorder %s90, 1
      %p181 = scmp.ne.s32.totalorder %s176, %s178
      %p182 = scmp.eq.s32.totalorder %s90, 0
      %p183 = por %p181, %p182
      %p184 = scmp.ne.s32.totalorder %s176, %s178
      %p185 = scmp.eq.s32.totalorder %s95, 1
      %p186 = por %p184, %p185
      %p187 = scmp.ne.s32.totalorder %s178, %s179
      %p188 = scmp.eq.s32.totalorder %s95, 0
      %p189 = por %p187, %p188
      %p190 = scmp.ne.s32.totalorder %s178, %s179
      %p191 = scmp.eq.s32.totalorder %s96, 1
      %p192 = por %p190, %p191
      %p194 = scmp.ne.s32.totalorder %s179, %s193
      %p195 = scmp.eq.s32.totalorder %s96, 0
      %p196 = por %p194, %p195
      %s198 = sadd.s32 %s197, 1
      %p201 = scmp.eq.s32.totalorder %s90, 1
      %p202 = scmp.ne.s32.totalorder %s197, %s199
      %p203 = scmp.eq.s32.totalorder %s90, 0
      %p204 = por %p202, %p203
      %p205 = scmp.ne.s32.totalorder %s197, %s199
      %p206 = scmp.eq.s32.totalorder %s95, 1
      %p207 = por %p205, %p206
      %p208 = scmp.ne.s32.totalorder %s199, %s200
      %p209 = scmp.eq.s32.totalorder %s95, 0
      %p210 = por %p208, %p209
      %p211 = scmp.ne.s32.totalorder %s199, %s200
      %p212 = scmp.eq.s32.totalorder %s96, 1
      %p213 = por %p211, %p212
      %p215 = scmp.ne.s32.totalorder %s200, %s214
      %p216 = scmp.eq.s32.totalorder %s96, 0
      %p217 = por %p215, %p216
      %s219 = sadd.s32 %s218, 1
      %p222 = scmp.eq.s32.totalorder %s90, 1
      %p223 = scmp.ne.s32.totalorder %s218, %s220
      %p224 = scmp.eq.s32.totalorder %s90, 0
      %p225 = por %p223, %p224
      %p226 = scmp.ne.s32.totalorder %s218, %s220
      %p227 = scmp.eq.s32.totalorder %s95, 1
      %p228 = por %p226, %p227
      %p229 = scmp.ne.s32.totalorder %s220, %s221
      %p230 = scmp.eq.s32.totalorder %s95, 0
      %p231 = por %p229, %p230
      %p232 = scmp.ne.s32.totalorder %s220, %s221
      %p233 = scmp.eq.s32.totalorder %s96, 1
      %p234 = por %p232, %p233
      %p236 = scmp.ne.s32.totalorder %s221, %s235
      %p237 = scmp.eq.s32.totalorder %s96, 0
      %p238 = por %p236, %p237
      %s240 = sadd.s32 %s239, 1
      %p243 = scmp.eq.s32.totalorder %s90, 1
      %p244 = scmp.ne.s32.totalorder %s239, %s241
      %p245 = scmp.eq.s32.totalorder %s90, 0
      %p246 = por %p244, %p245
      %p247 = scmp.ne.s32.totalorder %s239, %s241
      %p248 = scmp.eq.s32.totalorder %s95, 1
      %p249 = por %p247, %p248
      %p250 = scmp.ne.s32.totalorder %s241, %s242
      %p251 = scmp.eq.s32.totalorder %s95, 0
      %p252 = por %p250, %p251
      %p253 = scmp.ne.s32.totalorder %s241, %s242
      %p254 = scmp.eq.s32.totalorder %s96, 1
      %p255 = por %p253, %p254
      %p257 = scmp.ne.s32.totalorder %s242, %s256
      %p258 = scmp.eq.s32.totalorder %s96, 0
      %p259 = por %p257, %p258
      %s261 = sadd.s32 %s260, 1
      %p264 = scmp.eq.s32.totalorder %s90, 1
      %p265 = scmp.ne.s32.totalorder %s260, %s262
      %p266 = scmp.eq.s32.totalorder %s90, 0
      %p267 = por %p265, %p266
      %p268 = scmp.ne.s32.totalorder %s260, %s262
      %p269 = scmp.eq.s32.totalorder %s95, 1
      %p270 = por %p268, %p269
      %p271 = scmp.ne.s32.totalorder %s262, %s263
      %p272 = scmp.eq.s32.totalorder %s95, 0
      %p273 = por %p271, %p272
      %p274 = scmp.ne.s32.totalorder %s262, %s263
      %p275 = scmp.eq.s32.totalorder %s96, 1
      %p276 = por %p274, %p275
      %p278 = scmp.ne.s32.totalorder %s263, %s277
      %p279 = scmp.eq.s32.totalorder %s96, 0
      %p280 = por %p278, %p279
      %s282 = sadd.s32 %s281, 1
      %p285 = scmp.eq.s32.totalorder %s90, 1
      %p286 = scmp.ne.s32.totalorder %s281, %s283
      %p287 = scmp.eq.s32.totalorder %s90, 0
      %p288 = por %p286, %p287
      %p289 = scmp.ne.s32.totalorder %s281, %s283
      %p290 = scmp.eq.s32.totalorder %s95, 1
      %p291 = por %p289, %p290
      %p292 = scmp.ne.s32.totalorder %s283, %s284
      %p293 = scmp.eq.s32.totalorder %s95, 0
      %p294 = por %p292, %p293
      %p295 = scmp.ne.s32.totalorder %s283, %s284
      %p296 = scmp.eq.s32.totalorder %s96, 1
      %p297 = por %p295, %p296
      %p299 = scmp.ne.s32.totalorder %s284, %s298
      %p300 = scmp.eq.s32.totalorder %s96, 0
      %p301 = por %p299, %p300
      %s303 = sadd.s32 %s302, 1
      %p306 = scmp.eq.s32.totalorder %s90, 1
      %p307 = scmp.ne.s32.totalorder %s302, %s304
      %p308 = scmp.eq.s32.totalorder %s90, 0
      %p309 = por %p307, %p308
      %p310 = scmp.ne.s32.totalorder %s302, %s304
      %p311 = scmp.eq.s32.totalorder %s95, 1
      %p312 = por %p310, %p311
      %p313 = scmp.ne.s32.totalorder %s304, %s305
      %p314 = scmp.eq.s32.totalorder %s95, 0
      %p315 = por %p313, %p314
      %p316 = scmp.ne.s32.totalorder %s304, %s305
      %p317 = scmp.eq.s32.totalorder %s96, 1
      %p318 = por %p316, %p317
      %p320 = scmp.ne.s32.totalorder %s305, %s319
      %p321 = scmp.eq.s32.totalorder %s96, 0
      %p322 = por %p320, %p321
      %s324 = sadd.s32 %s323, 1
      %p327 = scmp.eq.s32.totalorder %s90, 1
      %p328 = scmp.ne.s32.totalorder %s323, %s325
      %p329 = scmp.eq.s32.totalorder %s90, 0
      %p330 = por %p328, %p329
      %p331 = scmp.ne.s32.totalorder %s323, %s325
      %p332 = scmp.eq.s32.totalorder %s95, 1
      %p333 = por %p331, %p332
      %p334 = scmp.ne.s32.totalorder %s325, %s326
      %p335 = scmp.eq.s32.totalorder %s95, 0
      %p336 = por %p334, %p335
      %p337 = scmp.ne.s32.totalorder %s325, %s326
      %p338 = scmp.eq.s32.totalorder %s96, 1
      %p339 = por %p337, %p338
      %p341 = scmp.ne.s32.totalorder %s326, %s340
      %p342 = scmp.eq.s32.totalorder %s96, 0
      %p343 = por %p341, %p342
      %s345 = sadd.s32 %s344, 1
      %p348 = scmp.eq.s32.totalorder %s90, 1
      %p349 = scmp.ne.s32.totalorder %s344, %s346
      %p350 = scmp.eq.s32.totalorder %s90, 0
      %p351 = por %p349, %p350
      %p352 = scmp.ne.s32.totalorder %s344, %s346
      %p353 = scmp.eq.s32.totalorder %s95, 1
      %p354 = por %p352, %p353
      %p355 = scmp.ne.s32.totalorder %s346, %s347
      %p356 = scmp.eq.s32.totalorder %s95, 0
      %p357 = por %p355, %p356
      %p358 = scmp.ne.s32.totalorder %s346, %s347
      %p359 = scmp.eq.s32.totalorder %s96, 1
      %p360 = por %p358, %p359
      %p362 = scmp.ne.s32.totalorder %s347, %s361
      %p363 = scmp.eq.s32.totalorder %s96, 0
      %p364 = por %p362, %p363
      %s366 = sadd.s32 %s365, 1
      %p369 = scmp.eq.s32.totalorder %s90, 1
      %p370 = scmp.ne.s32.totalorder %s365, %s367
      %p371 = scmp.eq.s32.totalorder %s90, 0
      %p372 = por %p370, %p371
      %p373 = scmp.ne.s32.totalorder %s365, %s367
      %p374 = scmp.eq.s32.totalorder %s95, 1
      %p375 = por %p373, %p374
      %p376 = scmp.ne.s32.totalorder %s367, %s368
      %p377 = scmp.eq.s32.totalorder %s95, 0
      %p378 = por %p376, %p377
      %p379 = scmp.ne.s32.totalorder %s367, %s368
      %p380 = scmp.eq.s32.totalorder %s96, 1
      %p381 = por %p379, %p380
      %p383 = scmp.ne.s32.totalorder %s368, %s382
      %p384 = scmp.eq.s32.totalorder %s96, 0
      %p385 = por %p383, %p384
      %s387 = sadd.s32 %s386, 1
      %p390 = scmp.eq.s32.totalorder %s90, 1
      %p391 = scmp.ne.s32.totalorder %s386, %s388
      %p392 = scmp.eq.s32.totalorder %s90, 0
      %p393 = por %p391, %p392
      %p394 = scmp.ne.s32.totalorder %s386, %s388
      %p395 = scmp.eq.s32.totalorder %s95, 1
      %p396 = por %p394, %p395
      %p397 = scmp.ne.s32.totalorder %s388, %s389
      %p398 = scmp.eq.s32.totalorder %s95, 0
      %p399 = por %p397, %p398
      %p400 = scmp.ne.s32.totalorder %s388, %s389
      %p401 = scmp.eq.s32.totalorder %s96, 1
      %p402 = por %p400, %p401
      %p404 = scmp.ne.s32.totalorder %s389, %s403
      %p405 = scmp.eq.s32.totalorder %s96, 0
      %p406 = por %p404, %p405
      %s408 = sadd.s32 %s407, 1
      %p411 = scmp.eq.s32.totalorder %s90, 1
      %p412 = scmp.ne.s32.totalorder %s407, %s409
      %p413 = scmp.eq.s32.totalorder %s90, 0
      %p414 = por %p412, %p413
      %p415 = scmp.ne.s32.totalorder %s407, %s409
      %p416 = scmp.eq.s32.totalorder %s95, 1
      %p417 = por %p415, %p416
      %p418 = scmp.ne.s32.totalorder %s409, %s410
      %p419 = scmp.eq.s32.totalorder %s95, 0
      %p420 = por %p418, %p419
      %p421 = scmp.ne.s32.totalorder %s409, %s410
      %p422 = scmp.eq.s32.totalorder %s96, 1
      %p423 = por %p421, %p422
      %p425 = scmp.ne.s32.totalorder %s410, %s424
      %p426 = scmp.eq.s32.totalorder %s96, 0
      %p427 = por %p425, %p426
      %s429 = sadd.s32 %s428, 1
      %p432 = scmp.eq.s32.totalorder %s90, 1
      %p433 = scmp.ne.s32.totalorder %s428, %s430
      %p434 = scmp.eq.s32.totalorder %s90, 0
      %p435 = por %p433, %p434
      %p436 = scmp.ne.s32.totalorder %s428, %s430
      %p437 = scmp.eq.s32.totalorder %s95, 1
      %p438 = por %p436, %p437
      %p439 = scmp.ne.s32.totalorder %s430, %s431
      %p440 = scmp.eq.s32.totalorder %s95, 0
      %p441 = por %p439, %p440
      %p442 = scmp.ne.s32.totalorder %s430, %s431
      %p443 = scmp.eq.s32.totalorder %s96, 1
      %p444 = por %p442, %p443
      %p446 = scmp.ne.s32.totalorder %s431, %s445
      %p447 = scmp.eq.s32.totalorder %s96, 0
      %p448 = por %p446, %p447
      %s450 = sadd.s32 %s449, 1
      %p453 = scmp.eq.s32.totalorder %s90, 1
      %p454 = scmp.ne.s32.totalorder %s449, %s451
      %p455 = scmp.eq.s32.totalorder %s90, 0
      %p456 = por %p454, %p455
      %p457 = scmp.ne.s32.totalorder %s449, %s451
      %p458 = scmp.eq.s32.totalorder %s95, 1
      %p459 = por %p457, %p458
      %p460 = scmp.ne.s32.totalorder %s451, %s452
      %p461 = scmp.eq.s32.totalorder %s95, 0
      %p462 = por %p460, %p461
      %p463 = scmp.ne.s32.totalorder %s451, %s452
      %p464 = scmp.eq.s32.totalorder %s96, 1
      %p465 = por %p463, %p464
      %p467 = scmp.ne.s32.totalorder %s452, %s466
      %p468 = scmp.eq.s32.totalorder %s96, 0
      %p469 = por %p467, %p468
      %s471 = sadd.s32 %s470, 1
      %p474 = scmp.eq.s32.totalorder %s90, 1
      %p475 = scmp.ne.s32.totalorder %s470, %s472
      %p476 = scmp.eq.s32.totalorder %s90, 0
      %p477 = por %p475, %p476
      %p478 = scmp.ne.s32.totalorder %s470, %s472
      %p479 = scmp.eq.s32.totalorder %s95, 1
      %p480 = por %p478, %p479
      %p481 = scmp.ne.s32.totalorder %s472, %s473
      %p482 = scmp.eq.s32.totalorder %s95, 0
      %p483 = por %p481, %p482
      %p484 = scmp.ne.s32.totalorder %s472, %s473
      %p485 = scmp.eq.s32.totalorder %s96, 1
      %p486 = por %p484, %p485
      %p488 = scmp.ne.s32.totalorder %s473, %s487
      %p489 = scmp.eq.s32.totalorder %s96, 0
      %p490 = por %p488, %p489
      %s492 = sadd.s32 %s491, 1
      %p495 = scmp.eq.s32.totalorder %s90, 1
      %p496 = scmp.ne.s32.totalorder %s491, %s493
      %p497 = scmp.eq.s32.totalorder %s90, 0
      %p498 = por %p496, %p497
      %p499 = scmp.ne.s32.totalorder %s491, %s493
      %p500 = scmp.eq.s32.totalorder %s95, 1
      %p501 = por %p499, %p500
      %p502 = scmp.ne.s32.totalorder %s493, %s494
      %p503 = scmp.eq.s32.totalorder %s95, 0
      %p504 = por %p502, %p503
      %p505 = scmp.ne.s32.totalorder %s493, %s494
      %p506 = scmp.eq.s32.totalorder %s96, 1
      %p507 = por %p505, %p506
      %p509 = scmp.ne.s32.totalorder %s494, %s508
      %p510 = scmp.eq.s32.totalorder %s96, 0
      %p511 = por %p509, %p510
      %s513 = sadd.s32 %s512, 1
      %p516 = scmp.eq.s32.totalorder %s90, 1
      %p517 = scmp.ne.s32.totalorder %s512, %s514
      %p518 = scmp.eq.s32.totalorder %s90, 0
      %p519 = por %p517, %p518
      %p520 = scmp.ne.s32.totalorder %s512, %s514
      %p521 = scmp.eq.s32.totalorder %s95, 1
      %p522 = por %p520, %p521
      %p523 = scmp.ne.s32.totalorder %s514, %s515
      %p524 = scmp.eq.s32.totalorder %s95, 0
      %p525 = por %p523, %p524
      %p526 = scmp.ne.s32.totalorder %s514, %s515
      %p527 = scmp.eq.s32.totalorder %s96, 1
      %p528 = por %p526, %p527
      %p530 = scmp.ne.s32.totalorder %s515, %s529
      %p531 = scmp.eq.s32.totalorder %s96, 0
      %p532 = por %p530, %p531
      %s534 = sadd.s32 %s533, 1
      %p537 = scmp.eq.s32.totalorder %s90, 1
      %p538 = scmp.ne.s32.totalorder %s533, %s535
      %p539 = scmp.eq.s32.totalorder %s90, 0
      %p540 = por %p538, %p539
      %p541 = scmp.ne.s32.totalorder %s533, %s535
      %p542 = scmp.eq.s32.totalorder %s95, 1
      %p543 = por %p541, %p542
      %p544 = scmp.ne.s32.totalorder %s535, %s536
      %p545 = scmp.eq.s32.totalorder %s95, 0
      %p546 = por %p544, %p545
      %p547 = scmp.ne.s32.totalorder %s535, %s536
      %p548 = scmp.eq.s32.totalorder %s96, 1
      %p549 = por %p547, %p548
      %p551 = scmp.ne.s32.totalorder %s536, %s550
      %p552 = scmp.eq.s32.totalorder %s96, 0
      %p553 = por %p551, %p552
      %s555 = sadd.s32 %s554, 1
      %p558 = scmp.eq.s32.totalorder %s90, 1
      %p559 = scmp.ne.s32.totalorder %s554, %s556
      %p560 = scmp.eq.s32.totalorder %s90, 0
      %p561 = por %p559, %p560
      %p562 = scmp.ne.s32.totalorder %s554, %s556
      %p563 = scmp.eq.s32.totalorder %s95, 1
      %p564 = por %p562, %p563
      %p565 = scmp.ne.s32.totalorder %s556, %s557
      %p566 = scmp.eq.s32.totalorder %s95, 0
      %p567 = por %p565, %p566
      %p568 = scmp.ne.s32.totalorder %s556, %s557
      %p569 = scmp.eq.s32.totalorder %s96, 1
      %p570 = por %p568, %p569
      %p572 = scmp.ne.s32.totalorder %s557, %s571
      %p573 = scmp.eq.s32.totalorder %s96, 0
      %p574 = por %p572, %p573
      %s576 = sadd.s32 %s575, 1
      %p579 = scmp.eq.s32.totalorder %s90, 1
      %p580 = scmp.ne.s32.totalorder %s575, %s577
      %p581 = scmp.eq.s32.totalorder %s90, 0
      %p582 = por %p580, %p581
      %p583 = scmp.ne.s32.totalorder %s575, %s577
      %p584 = scmp.eq.s32.totalorder %s95, 1
      %p585 = por %p583, %p584
      %p586 = scmp.ne.s32.totalorder %s577, %s578
      %p587 = scmp.eq.s32.totalorder %s95, 0
      %p588 = por %p586, %p587
      %p589 = scmp.ne.s32.totalorder %s577, %s578
      %p590 = scmp.eq.s32.totalorder %s96, 1
      %p591 = por %p589, %p590
      %p593 = scmp.ne.s32.totalorder %s578, %s592
      %p594 = scmp.eq.s32.totalorder %s96, 0
      %p595 = por %p593, %p594
      %s597 = sadd.s32 %s596, 1
      %p600 = scmp.eq.s32.totalorder %s90, 1
      %p601 = scmp.ne.s32.totalorder %s596, %s598
      %p602 = scmp.eq.s32.totalorder %s90, 0
      %p603 = por %p601, %p602
      %p604 = scmp.ne.s32.totalorder %s596, %s598
      %p605 = scmp.eq.s32.totalorder %s95, 1
      %p606 = por %p604, %p605
      %p607 = scmp.ne.s32.totalorder %s598, %s599
      %p608 = scmp.eq.s32.totalorder %s95, 0
      %p609 = por %p607, %p608
      %p610 = scmp.ne.s32.totalorder %s598, %s599
      %p611 = scmp.eq.s32.totalorder %s96, 1
      %p612 = por %p610, %p611
      %p614 = scmp.ne.s32.totalorder %s599, %s613
      %p615 = scmp.eq.s32.totalorder %s96, 0
      %p616 = por %p614, %p615
      %s618 = sadd.s32 %s617, 1
      %p621 = scmp.eq.s32.totalorder %s90, 1
      %p622 = scmp.ne.s32.totalorder %s617, %s619
      %p623 = scmp.eq.s32.totalorder %s90, 0
      %p624 = por %p622, %p623
      %p625 = scmp.ne.s32.totalorder %s617, %s619
      %p626 = scmp.eq.s32.totalorder %s95, 1
      %p627 = por %p625, %p626
      %p628 = scmp.ne.s32.totalorder %s619, %s620
      %p629 = scmp.eq.s32.totalorder %s95, 0
      %p630 = por %p628, %p629
      %p631 = scmp.ne.s32.totalorder %s619, %s620
      %p632 = scmp.eq.s32.totalorder %s96, 1
      %p633 = por %p631, %p632
      %p635 = scmp.ne.s32.totalorder %s620, %s634
      %p636 = scmp.eq.s32.totalorder %s96, 0
      %p637 = por %p635, %p636
      %s639 = sadd.s32 %s638, 1
      %p642 = scmp.eq.s32.totalorder %s90, 1
      %p643 = scmp.ne.s32.totalorder %s638, %s640
      %p644 = scmp.eq.s32.totalorder %s90, 0
      %p645 = por %p643, %p644
      %p646 = scmp.ne.s32.totalorder %s638, %s640
      %p647 = scmp.eq.s32.totalorder %s95, 1
      %p648 = por %p646, %p647
      %p649 = scmp.ne.s32.totalorder %s640, %s641
      %p650 = scmp.eq.s32.totalorder %s95, 0
      %p651 = por %p649, %p650
      %p652 = scmp.ne.s32.totalorder %s640, %s641
      %p653 = scmp.eq.s32.totalorder %s96, 1
      %p654 = por %p652, %p653
      %p656 = scmp.ne.s32.totalorder %s641, %s655
      %p657 = scmp.eq.s32.totalorder %s96, 0
      %p658 = por %p656, %p657
      %s660 = sadd.s32 %s659, 1
      %p663 = scmp.eq.s32.totalorder %s90, 1
      %p664 = scmp.ne.s32.totalorder %s659, %s661
      %p665 = scmp.eq.s32.totalorder %s90, 0
      %p666 = por %p664, %p665
      %p667 = scmp.ne.s32.totalorder %s659, %s661
      %p668 = scmp.eq.s32.totalorder %s95, 1
      %p669 = por %p667, %p668
      %p670 = scmp.ne.s32.totalorder %s661, %s662
      %p671 = scmp.eq.s32.totalorder %s95, 0
      %p672 = por %p670, %p671
      %p673 = scmp.ne.s32.totalorder %s661, %s662
      %p674 = scmp.eq.s32.totalorder %s96, 1
      %p675 = por %p673, %p674
      %p677 = scmp.ne.s32.totalorder %s662, %s676
      %p678 = scmp.eq.s32.totalorder %s96, 0
      %p679 = por %p677, %p678
      %s681 = sadd.s32 %s680, 1
      %p684 = scmp.eq.s32.totalorder %s90, 1
      %p685 = scmp.ne.s32.totalorder %s680, %s682
      %p686 = scmp.eq.s32.totalorder %s90, 0
      %p687 = por %p685, %p686
      %p688 = scmp.ne.s32.totalorder %s680, %s682
      %p689 = scmp.eq.s32.totalorder %s95, 1
      %p690 = por %p688, %p689
      %p691 = scmp.ne.s32.totalorder %s682, %s683
      %p692 = scmp.eq.s32.totalorder %s95, 0
      %p693 = por %p691, %p692
      %p694 = scmp.ne.s32.totalorder %s682, %s683
      %p695 = scmp.eq.s32.totalorder %s96, 1
      %p696 = por %p694, %p695
      %p698 = scmp.ne.s32.totalorder %s683, %s697
      %p699 = scmp.eq.s32.totalorder %s96, 0
      %p700 = por %p698, %p699
      %s702 = sadd.s32 %s701, 1
      %p705 = scmp.eq.s32.totalorder %s90, 1
      %p706 = scmp.ne.s32.totalorder %s701, %s703
      %p707 = scmp.eq.s32.totalorder %s90, 0
      %p708 = por %p706, %p707
      %p709 = scmp.ne.s32.totalorder %s701, %s703
      %p710 = scmp.eq.s32.totalorder %s95, 1
      %p711 = por %p709, %p710
      %p712 = scmp.ne.s32.totalorder %s703, %s704
      %p713 = scmp.eq.s32.totalorder %s95, 0
      %p714 = por %p712, %p713
      %p715 = scmp.ne.s32.totalorder %s703, %s704
      %p716 = scmp.eq.s32.totalorder %s96, 1
      %p717 = por %p715, %p716
      %p719 = scmp.ne.s32.totalorder %s704, %s718
      %p720 = scmp.eq.s32.totalorder %s96, 0
      %p721 = por %p719, %p720
      %s723 = sadd.s32 %s722, 1
      %p726 = scmp.eq.s32.totalorder %s90, 1
      %p727 = scmp.ne.s32.totalorder %s722, %s724
      %p728 = scmp.eq.s32.totalorder %s90, 0
      %p729 = por %p727, %p728
      %p730 = scmp.ne.s32.totalorder %s722, %s724
      %p731 = scmp.eq.s32.totalorder %s95, 1
      %p732 = por %p730, %p731
      %p733 = scmp.ne.s32.totalorder %s724, %s725
      %p734 = scmp.eq.s32.totalorder %s95, 0
      %p735 = por %p733, %p734
      %p736 = scmp.ne.s32.totalorder %s724, %s725
      %p737 = scmp.eq.s32.totalorder %s96, 1
      %p738 = por %p736, %p737
      %p740 = scmp.ne.s32.totalorder %s725, %s739
      %p741 = scmp.eq.s32.totalorder %s96, 0
      %p742 = por %p740, %p741
      %s744 = sadd.s32 %s743, 1
      %p747 = scmp.eq.s32.totalorder %s90, 1
      %p748 = scmp.ne.s32.totalorder %s743, %s745
      %p749 = scmp.eq.s32.totalorder %s90, 0
      %p750 = por %p748, %p749
      %p751 = scmp.ne.s32.totalorder %s743, %s745
      %p752 = scmp.eq.s32.totalorder %s95, 1
      %p753 = por %p751, %p752
      %p754 = scmp.ne.s32.totalorder %s745, %s746
      %p755 = scmp.eq.s32.totalorder %s95, 0
      %p756 = por %p754, %p755
      %p757 = scmp.ne.s32.totalorder %s745, %s746
      %p758 = scmp.eq.s32.totalorder %s96, 1
      %p759 = por %p757, %p758
      %p761 = scmp.ne.s32.totalorder %s746, %s760
      %p762 = scmp.eq.s32.totalorder %s96, 0
      %p763 = por %p761, %p762
      %s765 = sadd.s32 %s764, 1
      %p768 = scmp.eq.s32.totalorder %s90, 1
      %p769 = scmp.ne.s32.totalorder %s764, %s766
      %p770 = scmp.eq.s32.totalorder %s90, 0
      %p771 = por %p769, %p770
      %p772 = scmp.ne.s32.totalorder %s764, %s766
      %p773 = scmp.eq.s32.totalorder %s95, 1
      %p774 = por %p772, %p773
      %p775 = scmp.ne.s32.totalorder %s766, %s767
      %p776 = scmp.eq.s32.totalorder %s95, 0
      %p777 = por %p775, %p776
      %p778 = scmp.ne.s32.totalorder %s766, %s767
      %p779 = scmp.eq.s32.totalorder %s96, 1
      %p780 = por %p778, %p779
      %p782 = scmp.ne.s32.totalorder %s767, %s781
      %p783 = scmp.eq.s32.totalorder %s96, 0
      %p784 = por %p782, %p783
      %s786 = sadd.s32 %s785, 1
      %p789 = scmp.eq.s32.totalorder %s90, 1
      %p790 = scmp.ne.s32.totalorder %s785, %s787
      %p791 = scmp.eq.s32.totalorder %s90, 0
      %p792 = por %p790, %p791
      %p793 = scmp.ne.s32.totalorder %s785, %s787
      %p794 = scmp.eq.s32.totalorder %s95, 1
      %p795 = por %p793, %p794
      %p796 = scmp.ne.s32.totalorder %s787, %s788
      %p797 = scmp.eq.s32.totalorder %s95, 0
      %p798 = por %p796, %p797
      %p799 = scmp.ne.s32.totalorder %s787, %s788
      %p800 = scmp.eq.s32.totalorder %s96, 1
      %p801 = por %p799, %p800
      %p803 = scmp.ne.s32.totalorder %s788, %s802
      %p804 = scmp.eq.s32.totalorder %s96, 0
      %p805 = por %p803, %p804
      %s806 = ssub.s32 %s90, %s97
      %p807 = scmp.eq.s32.totalorder %s806, 0
      %s809 = sadd.s32 %s808, 1
      %s810 = scalar_select %p807, %s808, %s809
      %p813 = pneg %p807
      %p814 = scmp.eq.s32.totalorder %s90, 1
      %p815 = por %p813, %p814
      %p816 = scmp.ne.s32.totalorder %s808, %s811
      %p817 = scmp.eq.s32.totalorder %s90, 0
      %p818 = por %p816, %p817
      %p819 = scmp.ne.s32.totalorder %s808, %s811
      %p820 = scmp.eq.s32.totalorder %s95, 1
      %p821 = por %p819, %p820
      %p822 = scmp.ne.s32.totalorder %s811, %s812
      %p823 = scmp.eq.s32.totalorder %s95, 0
      %p824 = por %p822, %p823
      %p825 = scmp.ne.s32.totalorder %s811, %s812
      %p826 = scmp.eq.s32.totalorder %s96, 1
      %p827 = por %p825, %p826
      %p829 = scmp.ne.s32.totalorder %s812, %s828
      %p830 = scmp.eq.s32.totalorder %s96, 0
      %p831 = por %p829, %p830
      %s832 = ssub.s32 %s90, %s97
      %p833 = scmp.eq.s32.totalorder %s832, 0
      %s835 = sadd.s32 %s834, 1
      %s836 = scalar_select %p833, %s834, %s835
      %p839 = pneg %p833
      %p840 = scmp.eq.s32.totalorder %s90, 1
      %p841 = por %p839, %p840
      %p842 = scmp.ne.s32.totalorder %s834, %s837
      %p843 = scmp.eq.s32.totalorder %s90, 0
      %p844 = por %p842, %p843
      %p845 = scmp.ne.s32.totalorder %s834, %s837
      %p846 = scmp.eq.s32.totalorder %s95, 1
      %p847 = por %p845, %p846
      %p848 = scmp.ne.s32.totalorder %s837, %s838
      %p849 = scmp.eq.s32.totalorder %s95, 0
      %p850 = por %p848, %p849
      %p851 = scmp.ne.s32.totalorder %s837, %s838
      %p852 = scmp.eq.s32.totalorder %s96, 1
      %p853 = por %p851, %p852
      %p855 = scmp.ne.s32.totalorder %s838, %s854
      %p856 = scmp.eq.s32.totalorder %s96, 0
      %p857 = por %p855, %p856
      %s858 = ssub.s32 %s90, %s97
      %p859 = scmp.eq.s32.totalorder %s858, 0
      %s861 = sadd.s32 %s860, 1
      %s862 = scalar_select %p859, %s860, %s861
      %p865 = pneg %p859
      %p866 = scmp.eq.s32.totalorder %s90, 1
      %p867 = por %p865, %p866
      %p868 = scmp.ne.s32.totalorder %s860, %s863
      %p869 = scmp.eq.s32.totalorder %s90, 0
      %p870 = por %p868, %p869
      %p871 = scmp.ne.s32.totalorder %s860, %s863
      %p872 = scmp.eq.s32.totalorder %s95, 1
      %p873 = por %p871, %p872
      %p874 = scmp.ne.s32.totalorder %s863, %s864
      %p875 = scmp.eq.s32.totalorder %s95, 0
      %p876 = por %p874, %p875
      %p877 = scmp.ne.s32.totalorder %s863, %s864
      %p878 = scmp.eq.s32.totalorder %s96, 1
      %p879 = por %p877, %p878
      %p881 = scmp.ne.s32.totalorder %s864, %s880
      %p882 = scmp.eq.s32.totalorder %s96, 0
      %p883 = por %p881, %p882
      %s884 = ssub.s32 %s90, %s97
      %p885 = scmp.eq.s32.totalorder %s884, 0
      %s887 = sadd.s32 %s886, 1
      %s888 = scalar_select %p885, %s886, %s887
      %p891 = pneg %p885
      %p892 = scmp.eq.s32.totalorder %s90, 1
      %p893 = por %p891, %p892
      %p894 = scmp.ne.s32.totalorder %s886, %s889
      %p895 = scmp.eq.s32.totalorder %s90, 0
      %p896 = por %p894, %p895
      %p897 = scmp.ne.s32.totalorder %s886, %s889
      %p898 = scmp.eq.s32.totalorder %s95, 1
      %p899 = por %p897, %p898
      %p900 = scmp.ne.s32.totalorder %s889, %s890
      %p901 = scmp.eq.s32.totalorder %s95, 0
      %p902 = por %p900, %p901
      %p903 = scmp.ne.s32.totalorder %s889, %s890
      %p904 = scmp.eq.s32.totalorder %s96, 1
      %p905 = por %p903, %p904
      %p907 = scmp.ne.s32.totalorder %s890, %s906
      %p908 = scmp.eq.s32.totalorder %s96, 0
      %p909 = por %p907, %p908
      %s910 = ssub.s32 %s90, %s97
      %p911 = scmp.eq.s32.totalorder %s910, 0
      %s913 = sadd.s32 %s912, 1
      %s914 = scalar_select %p911, %s912, %s913
      %p917 = pneg %p911
      %p918 = scmp.eq.s32.totalorder %s90, 1
      %p919 = por %p917, %p918
      %p920 = scmp.ne.s32.totalorder %s912, %s915
      %p921 = scmp.eq.s32.totalorder %s90, 0
      %p922 = por %p920, %p921
      %p923 = scmp.ne.s32.totalorder %s912, %s915
      %p924 = scmp.eq.s32.totalorder %s95, 1
      %p925 = por %p923, %p924
      %p926 = scmp.ne.s32.totalorder %s915, %s916
      %p927 = scmp.eq.s32.totalorder %s95, 0
      %p928 = por %p926, %p927
      %p929 = scmp.ne.s32.totalorder %s915, %s916
      %p930 = scmp.eq.s32.totalorder %s96, 1
      %p931 = por %p929, %p930
      %p933 = scmp.ne.s32.totalorder %s916, %s932
      %p934 = scmp.eq.s32.totalorder %s96, 0
      %p935 = por %p933, %p934
      %s936 = ssub.s32 %s90, %s97
      %p937 = scmp.eq.s32.totalorder %s936, 0
      %s939 = sadd.s32 %s938, 1
      %s940 = scalar_select %p937, %s938, %s939
      %p943 = pneg %p937
      %p944 = scmp.eq.s32.totalorder %s90, 1
      %p945 = por %p943, %p944
      %p946 = scmp.ne.s32.totalorder %s938, %s941
      %p947 = scmp.eq.s32.totalorder %s90, 0
      %p948 = por %p946, %p947
      %p949 = scmp.ne.s32.totalorder %s938, %s941
      %p950 = scmp.eq.s32.totalorder %s95, 1
      %p951 = por %p949, %p950
      %p952 = scmp.ne.s32.totalorder %s941, %s942
      %p953 = scmp.eq.s32.totalorder %s95, 0
      %p954 = por %p952, %p953
      %p955 = scmp.ne.s32.totalorder %s941, %s942
      %p956 = scmp.eq.s32.totalorder %s96, 1
      %p957 = por %p955, %p956
      %p959 = scmp.ne.s32.totalorder %s942, %s958
      %p960 = scmp.eq.s32.totalorder %s96, 0
      %p961 = por %p959, %p960
      %p962 = scmp.le.s32.totalorder 1, %s90
      %p963 = scmp.lt.s32.totalorder %s90, 3
      %p964 = pnand %p962, %p963
      %p965 = pneg %p964
      // Predicated region
      $region9: #{tpu_custom_call.1} parent=5 // pred_check
        _
      $region10: #{tpu_custom_call.1} parent=5 // pred_check_branch
        %967 = sbr.rel (%p964) target = $region12
      $region11: #{tpu_custom_call.1} parent=5 // pred_region
        %s968 = ssub.s32 %s90, 1
        // Predicated region
        $region13: #{tpu_custom_call.1} parent=11 // pred_check
          %p969 = pneg %p189
        $region14: #{tpu_custom_call.1} parent=11 // pred_check_branch
          %971 = sbr.rel (%p969) target = $region16
        $region15: #{tpu_custom_call.1} parent=11 // pred_region
          _
        $region16: #{tpu_custom_call.1} parent=11 // pred_fallthru
          _
        // Predicated region
        $region17: #{tpu_custom_call.1} parent=11 // pred_check
          %p972 = pneg %p210
        $region18: #{tpu_custom_call.1} parent=11 // pred_check_branch
          %974 = sbr.rel (%p972) target = $region20
        $region19: #{tpu_custom_call.1} parent=11 // pred_region
          %976 = vsyncadd [#allocation3], 0
          %s978 = sshll.u32 %s9, 4
          %s979 = int_to_ptr.hbm [resolvable:$true] %s978
          %s980 = sshll.u32 [#allocation2], 4
          %s981 = int_to_ptr.vmem [resolvable:$true] %s980
          %983 = dma.hbm_to_vmem [thread:$0]  %s979, 16, %s981, [#allocation3]
        $region20: #{tpu_custom_call.1} parent=11 // pred_fallthru
          _
        // Predicated region
        $region21: #{tpu_custom_call.1} parent=11 // pred_check
          %p984 = pneg %p231
        $region22: #{tpu_custom_call.1} parent=11 // pred_check_branch
          %986 = sbr.rel (%p984) target = $region24
        $region23: #{tpu_custom_call.1} parent=11 // pred_region
          _
        $region24: #{tpu_custom_call.1} parent=11 // pred_fallthru
          _
        // Predicated region
        $region25: #{tpu_custom_call.1} parent=11 // pred_check
          %p987 = pneg %p252
        $region26: #{tpu_custom_call.1} parent=11 // pred_check_branch
          %989 = sbr.rel (%p987) target = $region28
        $region27: #{tpu_custom_call.1} parent=11 // pred_region
          %991 = vsyncadd [#allocation6], 0
          %s993 = sshll.u32 %s13, 4
          %s994 = int_to_ptr.hbm [resolvable:$true] %s993
          %s995 = sshll.u32 [#allocation5], 4
          %s996 = int_to_ptr.vmem [resolvable:$true] %s995
          %998 = dma.hbm_to_vmem [thread:$0]  %s994, 16, %s996, [#allocation6]
        $region28: #{tpu_custom_call.1} parent=11 // pred_fallthru
          _
        // Predicated region
        $region29: #{tpu_custom_call.1} parent=11 // pred_check
          %p999 = pneg %p273
        $region30: #{tpu_custom_call.1} parent=11 // pred_check_branch
          %1001 = sbr.rel (%p999) target = $region32
        $region31: #{tpu_custom_call.1} parent=11 // pred_region
          _
        $region32: #{tpu_custom_call.1} parent=11 // pred_fallthru
          _
        // Predicated region
        $region33: #{tpu_custom_call.1} parent=11 // pred_check
          %p1002 = pneg %p294
        $region34: #{tpu_custom_call.1} parent=11 // pred_check_branch
          %1004 = sbr.rel (%p1002) target = $region36
        $region35: #{tpu_custom_call.1} parent=11 // pred_region
          %1006 = vsyncadd [#allocation6], 0
          %s1008 = sshll.u32 %s17, 4
          %s1009 = int_to_ptr.hbm [resolvable:$true] %s1008
          %s1010 = sshll.u32 [#allocation7], 4
          %s1011 = int_to_ptr.vmem [resolvable:$true] %s1010
          %1013 = dma.hbm_to_vmem [thread:$0]  %s1009, 16, %s1011, [#allocation6]
        $region36: #{tpu_custom_call.1} parent=11 // pred_fallthru
          _
        // Predicated region
        $region37: #{tpu_custom_call.1} parent=11 // pred_check
          %p1014 = pneg %p315
        $region38: #{tpu_custom_call.1} parent=11 // pred_check_branch
          %1016 = sbr.rel (%p1014) target = $region40
        $region39: #{tpu_custom_call.1} parent=11 // pred_region
          _
        $region40: #{tpu_custom_call.1} parent=11 // pred_fallthru
          _
        // Predicated region
        $region41: #{tpu_custom_call.1} parent=11 // pred_check
          %p1017 = pneg %p336
        $region42: #{tpu_custom_call.1} parent=11 // pred_check_branch
          %1019 = sbr.rel (%p1017) target = $region44
        $region43: #{tpu_custom_call.1} parent=11 // pred_region
          %1021 = vsyncadd [#allocation9], 0
          %s1023 = sshll.u32 %s21, 4
          %s1024 = int_to_ptr.hbm [resolvable:$true] %s1023
          %s1025 = sshll.u32 [#allocation8], 4
          %s1026 = int_to_ptr.vmem [resolvable:$true] %s1025
          %1028 = dma.hbm_to_vmem [thread:$0]  %s1024, 16, %s1026, [#allocation9]
        $region44: #{tpu_custom_call.1} parent=11 // pred_fallthru
          _
        // Predicated region
        $region45: #{tpu_custom_call.1} parent=11 // pred_check
          %p1029 = pneg %p357
        $region46: #{tpu_custom_call.1} parent=11 // pred_check_branch
          %1031 = sbr.rel (%p1029) target = $region48
        $region47: #{tpu_custom_call.1} parent=11 // pred_region
          %1033 = vsyncadd [#allocation9], 0
          %s1035 = sshll.u32 %s23, 4
          %s1036 = int_to_ptr.hbm [resolvable:$true] %s1035
          %s1037 = sshll.u32 [#allocation10], 4
          %s1038 = int_to_ptr.vmem [resolvable:$true] %s1037
          %1040 = dma.hbm_to_vmem [thread:$0]  %s1036, 64, %s1038, [#allocation9]
        $region48: #{tpu_custom_call.1} parent=11 // pred_fallthru
          _
        // Predicated region
        $region49: #{tpu_custom_call.1} parent=11 // pred_check
          %p1041 = pneg %p378
        $region50: #{tpu_custom_call.1} parent=11 // pred_check_branch
          %1043 = sbr.rel (%p1041) target = $region52
        $region51: #{tpu_custom_call.1} parent=11 // pred_region
          _
        $region52: #{tpu_custom_call.1} parent=11 // pred_fallthru
          _
        // Predicated region
        $region53: #{tpu_custom_call.1} parent=11 // pred_check
          %p1044 = pneg %p399
        $region54: #{tpu_custom_call.1} parent=11 // pred_check_branch
          %1046 = sbr.rel (%p1044) target = $region56
        $region55: #{tpu_custom_call.1} parent=11 // pred_region
          _
        $region56: #{tpu_custom_call.1} parent=11 // pred_fallthru
          _
        // Predicated region
        $region57: #{tpu_custom_call.1} parent=11 // pred_check
          %p1047 = pneg %p420
        $region58: #{tpu_custom_call.1} parent=11 // pred_check_branch
          %1049 = sbr.rel (%p1047) target = $region60
        $region59: #{tpu_custom_call.1} parent=11 // pred_region
          _
        $region60: #{tpu_custom_call.1} parent=11 // pred_fallthru
          _
        // Predicated region
        $region61: #{tpu_custom_call.1} parent=11 // pred_check
          %p1050 = pneg %p441
        $region62: #{tpu_custom_call.1} parent=11 // pred_check_branch
          %1052 = sbr.rel (%p1050) target = $region64
        $region63: #{tpu_custom_call.1} parent=11 // pred_region
          _
        $region64: #{tpu_custom_call.1} parent=11 // pred_fallthru
          _
        // Predicated region
        $region65: #{tpu_custom_call.1} parent=11 // pred_check
          %p1053 = pneg %p462
        $region66: #{tpu_custom_call.1} parent=11 // pred_check_branch
          %1055 = sbr.rel (%p1053) target = $region68
        $region67: #{tpu_custom_call.1} parent=11 // pred_region
          _
        $region68: #{tpu_custom_call.1} parent=11 // pred_fallthru
          _
        // Predicated region
        $region69: #{tpu_custom_call.1} parent=11 // pred_check
          %p1056 = pneg %p483
        $region70: #{tpu_custom_call.1} parent=11 // pred_check_branch
          %1058 = sbr.rel (%p1056) target = $region72
        $region71: #{tpu_custom_call.1} parent=11 // pred_region
          _
        $region72: #{tpu_custom_call.1} parent=11 // pred_fallthru
          _
        // Predicated region
        $region73: #{tpu_custom_call.1} parent=11 // pred_check
          %p1059 = pneg %p504
        $region74: #{tpu_custom_call.1} parent=11 // pred_check_branch
          %1061 = sbr.rel (%p1059) target = $region76
        $region75: #{tpu_custom_call.1} parent=11 // pred_region
          _
        $region76: #{tpu_custom_call.1} parent=11 // pred_fallthru
          _
        // Predicated region
        $region77: #{tpu_custom_call.1} parent=11 // pred_check
          %p1062 = pneg %p525
        $region78: #{tpu_custom_call.1} parent=11 // pred_check_branch
          %1064 = sbr.rel (%p1062) target = $region80
        $region79: #{tpu_custom_call.1} parent=11 // pred_region
          _
        $region80: #{tpu_custom_call.1} parent=11 // pred_fallthru
          _
        // Predicated region
        $region81: #{tpu_custom_call.1} parent=11 // pred_check
          %p1065 = pneg %p546
        $region82: #{tpu_custom_call.1} parent=11 // pred_check_branch
          %1067 = sbr.rel (%p1065) target = $region84
        $region83: #{tpu_custom_call.1} parent=11 // pred_region
          _
        $region84: #{tpu_custom_call.1} parent=11 // pred_fallthru
          _
        // Predicated region
        $region85: #{tpu_custom_call.1} parent=11 // pred_check
          %p1068 = pneg %p567
        $region86: #{tpu_custom_call.1} parent=11 // pred_check_branch
          %1070 = sbr.rel (%p1068) target = $region88
        $region87: #{tpu_custom_call.1} parent=11 // pred_region
          _
        $region88: #{tpu_custom_call.1} parent=11 // pred_fallthru
          _
        // Predicated region
        $region89: #{tpu_custom_call.1} parent=11 // pred_check
          %p1071 = pneg %p588
        $region90: #{tpu_custom_call.1} parent=11 // pred_check_branch
          %1073 = sbr.rel (%p1071) target = $region92
        $region91: #{tpu_custom_call.1} parent=11 // pred_region
          _
        $region92: #{tpu_custom_call.1} parent=11 // pred_fallthru
          _
        // Predicated region
        $region93: #{tpu_custom_call.1} parent=11 // pred_check
          %p1074 = pneg %p609
        $region94: #{tpu_custom_call.1} parent=11 // pred_check_branch
          %1076 = sbr.rel (%p1074) target = $region96
        $region95: #{tpu_custom_call.1} parent=11 // pred_region
          _
        $region96: #{tpu_custom_call.1} parent=11 // pred_fallthru
          _
        // Predicated region
        $region97: #{tpu_custom_call.1} parent=11 // pred_check
          %p1077 = pneg %p630
        $region98: #{tpu_custom_call.1} parent=11 // pred_check_branch
          %1079 = sbr.rel (%p1077) target = $region100
        $region99: #{tpu_custom_call.1} parent=11 // pred_region
          _
        $region100: #{tpu_custom_call.1} parent=11 // pred_fallthru
          _
        // Predicated region
        $region101: #{tpu_custom_call.1} parent=11 // pred_check
          %p1080 = pneg %p651
        $region102: #{tpu_custom_call.1} parent=11 // pred_check_branch
          %1082 = sbr.rel (%p1080) target = $region104
        $region103: #{tpu_custom_call.1} parent=11 // pred_region
          _
        $region104: #{tpu_custom_call.1} parent=11 // pred_fallthru
          _
        // Predicated region
        $region105: #{tpu_custom_call.1} parent=11 // pred_check
          %p1083 = pneg %p672
        $region106: #{tpu_custom_call.1} parent=11 // pred_check_branch
          %1085 = sbr.rel (%p1083) target = $region108
        $region107: #{tpu_custom_call.1} parent=11 // pred_region
          _
        $region108: #{tpu_custom_call.1} parent=11 // pred_fallthru
          _
        // Predicated region
        $region109: #{tpu_custom_call.1} parent=11 // pred_check
          %p1086 = pneg %p693
        $region110: #{tpu_custom_call.1} parent=11 // pred_check_branch
          %1088 = sbr.rel (%p1086) target = $region112
        $region111: #{tpu_custom_call.1} parent=11 // pred_region
          _
        $region112: #{tpu_custom_call.1} parent=11 // pred_fallthru
          _
        // Predicated region
        $region113: #{tpu_custom_call.1} parent=11 // pred_check
          %p1089 = pneg %p714
        $region114: #{tpu_custom_call.1} parent=11 // pred_check_branch
          %1091 = sbr.rel (%p1089) target = $region116
        $region115: #{tpu_custom_call.1} parent=11 // pred_region
          _
        $region116: #{tpu_custom_call.1} parent=11 // pred_fallthru
          _
        // Predicated region
        $region117: #{tpu_custom_call.1} parent=11 // pred_check
          %p1092 = pneg %p735
        $region118: #{tpu_custom_call.1} parent=11 // pred_check_branch
          %1094 = sbr.rel (%p1092) target = $region120
        $region119: #{tpu_custom_call.1} parent=11 // pred_region
          _
        $region120: #{tpu_custom_call.1} parent=11 // pred_fallthru
          _
        // Predicated region
        $region121: #{tpu_custom_call.1} parent=11 // pred_check
          %p1095 = pneg %p756
        $region122: #{tpu_custom_call.1} parent=11 // pred_check_branch
          %1097 = sbr.rel (%p1095) target = $region124
        $region123: #{tpu_custom_call.1} parent=11 // pred_region
          _
        $region124: #{tpu_custom_call.1} parent=11 // pred_fallthru
          _
        // Predicated region
        $region125: #{tpu_custom_call.1} parent=11 // pred_check
          %p1098 = pneg %p777
        $region126: #{tpu_custom_call.1} parent=11 // pred_check_branch
          %1100 = sbr.rel (%p1098) target = $region128
        $region127: #{tpu_custom_call.1} parent=11 // pred_region
          _
        $region128: #{tpu_custom_call.1} parent=11 // pred_fallthru
          _
        // Predicated region
        $region129: #{tpu_custom_call.1} parent=11 // pred_check
          %p1101 = pneg %p798
        $region130: #{tpu_custom_call.1} parent=11 // pred_check_branch
          %1103 = sbr.rel (%p1101) target = $region132
        $region131: #{tpu_custom_call.1} parent=11 // pred_region
          _
        $region132: #{tpu_custom_call.1} parent=11 // pred_fallthru
          _
      $region12: #{tpu_custom_call.1} parent=5 // pred_fallthru
        _
      %p1104 = scmp.lt.s32.totalorder %s90, 2
      // Predicated region
      $region133: #{tpu_custom_call.1} parent=5 // pred_check
        %p1105 = pneg %p1104
      $region134: #{tpu_custom_call.1} parent=5 // pred_check_branch
        %1107 = sbr.rel (%p1105) target = $region136
      $region135: #{tpu_custom_call.1} parent=5 // pred_region
        // Predicated region
        $region137: #{tpu_custom_call.1} parent=135 // pred_check
          %p1108 = pneg %p110
        $region138: #{tpu_custom_call.1} parent=135 // pred_check_branch
          %1110 = sbr.rel (%p1108) target = $region140
        $region139: #{tpu_custom_call.1} parent=135 // pred_region
          %p1111 = scmp.lt.s32.totalorder %s90, 1
          %s1112 = scalar_select %p1111, %s90, 1
          %s1113 = smul.addr %s1112, 2
          %s1114 = smul.addr %s1113, 8
          %s1115 = scalar_lea.vmem %s1, %s1114
        $region140: #{tpu_custom_call.1} parent=135 // pred_fallthru
          _
        // Predicated region
        $region141: #{tpu_custom_call.1} parent=135 // pred_check
          %p1116 = pneg %p136
        $region142: #{tpu_custom_call.1} parent=135 // pred_check_branch
          %1118 = sbr.rel (%p1116) target = $region144
        $region143: #{tpu_custom_call.1} parent=135 // pred_region
          %p1119 = scmp.lt.s32.totalorder %s90, 1
          %s1120 = scalar_select %p1119, %s90, 1
          %s1121 = smul.addr %s1120, 2
          %s1122 = smul.addr %s1121, 8
          %s1123 = scalar_lea.vmem %s3, %s1122
        $region144: #{tpu_custom_call.1} parent=135 // pred_fallthru
          _
        // Predicated region
        $region145: #{tpu_custom_call.1} parent=135 // pred_check
          %p1124 = pneg %p162
        $region146: #{tpu_custom_call.1} parent=135 // pred_check_branch
          %1126 = sbr.rel (%p1124) target = $region148
        $region147: #{tpu_custom_call.1} parent=135 // pred_region
          %p1127 = scmp.lt.s32.totalorder %s90, 1
          %s1128 = scalar_select %p1127, %s90, 1
          %s1129 = smul.addr %s1128, 2
          %s1130 = smul.addr %s1129, 8
          %s1131 = scalar_lea.vmem %s5, %s1130
        $region148: #{tpu_custom_call.1} parent=135 // pred_fallthru
          _
      $region136: #{tpu_custom_call.1} parent=5 // pred_fallthru
        _
      %p1132 = scmp.le.s32.totalorder 1, %s90
      %p1133 = scmp.lt.s32.totalorder %s90, 3
      %p1134 = pnand %p1132, %p1133
      %p1135 = pneg %p1134
      // Predicated region
      $region149: #{tpu_custom_call.1} parent=5 // pred_check
        _
      $region150: #{tpu_custom_call.1} parent=5 // pred_check_branch
        %1137 = sbr.rel (%p1134) target = $region152
      $region151: #{tpu_custom_call.1} parent=5 // pred_region
        %s1138 = ssub.s32 %s90, 1
        // Predicated region
        $region153: #{tpu_custom_call.1} parent=151 // pred_check
          %p1139 = pneg %p210
        $region154: #{tpu_custom_call.1} parent=151 // pred_check_branch
          %1141 = sbr.rel (%p1139) target = $region156
        $region155: #{tpu_custom_call.1} parent=151 // pred_region
          %1143 = dma.done [#allocation3], 16
        $region156: #{tpu_custom_call.1} parent=151 // pred_fallthru
          _
        // Predicated region
        $region157: #{tpu_custom_call.1} parent=151 // pred_check
          %p1144 = pneg %p252
        $region158: #{tpu_custom_call.1} parent=151 // pred_check_branch
          %1146 = sbr.rel (%p1144) target = $region160
        $region159: #{tpu_custom_call.1} parent=151 // pred_region
          %1148 = dma.done [#allocation6], 16
        $region160: #{tpu_custom_call.1} parent=151 // pred_fallthru
          _
        // Predicated region
        $region161: #{tpu_custom_call.1} parent=151 // pred_check
          %p1149 = pneg %p294
        $region162: #{tpu_custom_call.1} parent=151 // pred_check_branch
          %1151 = sbr.rel (%p1149) target = $region164
        $region163: #{tpu_custom_call.1} parent=151 // pred_region
          %1153 = dma.done [#allocation6], 16
        $region164: #{tpu_custom_call.1} parent=151 // pred_fallthru
          _
        // Predicated region
        $region165: #{tpu_custom_call.1} parent=151 // pred_check
          %p1154 = pneg %p336
        $region166: #{tpu_custom_call.1} parent=151 // pred_check_branch
          %1156 = sbr.rel (%p1154) target = $region168
        $region167: #{tpu_custom_call.1} parent=151 // pred_region
          %1158 = dma.done [#allocation9], 16
        $region168: #{tpu_custom_call.1} parent=151 // pred_fallthru
          _
        // Predicated region
        $region169: #{tpu_custom_call.1} parent=151 // pred_check
          %p1159 = pneg %p357
        $region170: #{tpu_custom_call.1} parent=151 // pred_check_branch
          %1161 = sbr.rel (%p1159) target = $region172
        $region171: #{tpu_custom_call.1} parent=151 // pred_region
          %1163 = dma.done [#allocation9], 64
        $region172: #{tpu_custom_call.1} parent=151 // pred_fallthru
          _
        %p1164 = scmp.lt.s32.totalorder %s95, 1
        %s1165 = scalar_select %p1164, %s95, 1
        %s1166 = smul.addr %s1165, 2
        %s1167 = smul.addr %s1166, 8
        %s1168 = scalar_lea.vmem %s1, %s1167
        %p1169 = pneg %p116
        %p1170 = pneg %p113
        %p1171 = scmp.lt.s32.totalorder %s95, 1
        %s1172 = scalar_select %p1171, %s95, 1
        %s1173 = smul.addr %s1172, 2
        %s1174 = smul.addr %s1173, 8
        %s1175 = scalar_lea.vmem %s3, %s1174
        %p1176 = pneg %p142
        %p1177 = pneg %p139
        %p1178 = scmp.lt.s32.totalorder %s95, 1
        %s1179 = scalar_select %p1178, %s95, 1
        %s1180 = smul.addr %s1179, 2
        %s1181 = smul.addr %s1180, 8
        %s1182 = scalar_lea.vmem %s5, %s1181
        %p1183 = pneg %p168
        %p1184 = pneg %p165
        %p1185 = pneg %p189
        %p1186 = pneg %p186
        %p1187 = pneg %p210
        %p1188 = pneg %p207
        %p1189 = pneg %p231
        %p1190 = pneg %p228
        %p1191 = pneg %p252
        %p1192 = pneg %p249
        %p1193 = pneg %p273
        %p1194 = pneg %p270
        %p1195 = pneg %p294
        %p1196 = pneg %p291
        %p1197 = pneg %p315
        %p1198 = pneg %p312
        %p1199 = pneg %p336
        %p1200 = pneg %p333
        %p1201 = pneg %p357
        %p1202 = pneg %p354
        %p1203 = pneg %p378
        %p1204 = pneg %p375
        %p1205 = pneg %p399
        %p1206 = pneg %p396
        %p1207 = pneg %p420
        %p1208 = pneg %p417
        %p1209 = pneg %p441
        %p1210 = pneg %p438
        %p1211 = pneg %p462
        %p1212 = pneg %p459
        %p1213 = pneg %p483
        %p1214 = pneg %p480
        %p1215 = pneg %p504
        %p1216 = pneg %p501
        %p1217 = pneg %p525
        %p1218 = pneg %p522
        %p1219 = pneg %p546
        %p1220 = pneg %p543
        %p1221 = pneg %p567
        %p1222 = pneg %p564
        %p1223 = pneg %p588
        %p1224 = pneg %p585
        %p1225 = pneg %p609
        %p1226 = pneg %p606
        %p1227 = pneg %p630
        %p1228 = pneg %p627
        %p1229 = pneg %p651
        %p1230 = pneg %p648
        %p1231 = pneg %p672
        %p1232 = pneg %p669
        %p1233 = pneg %p693
        %p1234 = pneg %p690
        %p1235 = pneg %p714
        %p1236 = pneg %p711
        %p1237 = pneg %p735
        %p1238 = pneg %p732
        %p1239 = pneg %p756
        %p1240 = pneg %p753
        %p1241 = pneg %p777
        %p1242 = pneg %p774
        %p1243 = pneg %p798
        %p1244 = pneg %p795
        %p1245 = pneg %p824
        %p1246 = pneg %p821
        %p1247 = scmp.lt.s32.totalorder %s95, 1
        %s1248 = scalar_select %p1247, %s95, 1
        %s1249 = smul.addr %s1248, 2
        %s1250 = smul.addr %s1249, 8
        %s1251 = scalar_lea.vmem %s67, %s1250
        %p1252 = pneg %p850
        %p1253 = pneg %p847
        %p1254 = scmp.lt.s32.totalorder %s95, 1
        %s1255 = scalar_select %p1254, %s95, 1
        %s1256 = smul.addr %s1255, 2
        %s1257 = smul.addr %s1256, 8
        %s1258 = scalar_lea.vmem %s69, %s1257
        %p1259 = pneg %p876
        %p1260 = pneg %p873
        %p1261 = scmp.lt.s32.totalorder %s95, 1
        %s1262 = scalar_select %p1261, %s95, 1
        %s1263 = smul.addr %s1262, 2
        %s1264 = smul.addr %s1263, 8
        %s1265 = scalar_lea.vmem %s71, %s1264
        %p1266 = pneg %p902
        %p1267 = pneg %p899
        %p1268 = scmp.lt.s32.totalorder %s95, 1
        %s1269 = scalar_select %p1268, %s95, 1
        %s1270 = smul.addr %s1269, 2
        %s1271 = smul.addr %s1270, 8
        %s1272 = scalar_lea.vmem %s73, %s1271
        %p1273 = pneg %p928
        %p1274 = pneg %p925
        %p1275 = scmp.lt.s32.totalorder %s95, 1
        %s1276 = scalar_select %p1275, %s95, 1
        %s1277 = smul.addr %s1276, 2
        %s1278 = smul.addr %s1277, 8
        %s1279 = scalar_lea.vmem %s75, %s1278
        %p1280 = pneg %p954
        %p1281 = pneg %p951
        %s1282 = sand.u32 %s941, 1
        %s1283 = scalar_lea.sflag [#allocation4], %s1282
        %s1284 = sand.u32 %s941, 1
        %s1285 = smul.addr %s1284, 16
        %s1286 = scalar_lea.vmem [#allocation11], %s1285
        %p1287 = scmp.lt.s32.totalorder %s95, 1
        %s1288 = scalar_select %p1287, %s95, 1
        %s1289 = smul.addr %s1288, 2
        %s1290 = smul.addr %s1289, 8
        %s1291 = scalar_lea.vmem %s1, %s1290
        %p1292 = scmp.lt.s32.totalorder %s95, 1
        %s1293 = scalar_select %p1292, %s95, 1
        %s1294 = smul.addr %s1293, 2
        %s1295 = smul.addr %s1294, 8
        %s1296 = scalar_lea.vmem %s3, %s1295
        %p1297 = scmp.lt.s32.totalorder %s95, 1
        %s1298 = scalar_select %p1297, %s95, 1
        %s1299 = smul.addr %s1298, 2
        %s1300 = smul.addr %s1299, 8
        %s1301 = scalar_lea.vmem %s5, %s1300
        %p1302 = scmp.lt.s32.totalorder %s95, 1
        %s1303 = scalar_select %p1302, %s95, 1
        %s1304 = smul.addr %s1303, 2
        %s1305 = smul.addr %s1304, 8
        %s1306 = scalar_lea.vmem %s67, %s1305
        %p1307 = scmp.lt.s32.totalorder %s95, 1
        %s1308 = scalar_select %p1307, %s95, 1
        %s1309 = smul.addr %s1308, 2
        %s1310 = smul.addr %s1309, 8
        %s1311 = scalar_lea.vmem %s69, %s1310
        %p1312 = scmp.lt.s32.totalorder %s95, 1
        %s1313 = scalar_select %p1312, %s95, 1
        %s1314 = smul.addr %s1313, 2
        %s1315 = smul.addr %s1314, 8
        %s1316 = scalar_lea.vmem %s71, %s1315
        %p1317 = scmp.lt.s32.totalorder %s95, 1
        %s1318 = scalar_select %p1317, %s95, 1
        %s1319 = smul.addr %s1318, 2
        %s1320 = smul.addr %s1319, 8
        %s1321 = scalar_lea.vmem %s73, %s1320
        %p1322 = scmp.lt.s32.totalorder %s95, 1
        %s1323 = scalar_select %p1322, %s95, 1
        %s1324 = smul.addr %s1323, 2
        %s1325 = smul.addr %s1324, 8
        %s1326 = scalar_lea.vmem %s75, %s1325
        %v1327 = vld [vmem:[%s1291] sm:$0xff]
        %v1328 = vld [vmem:[%s1291 + $0x8] sm:$0xff]
        %v1329 = vld [vmem:[%s1296] sm:$0xff]
        %v1330 = vld [vmem:[%s1296 + $0x8] sm:$0xff]
        %v1331 = vld [vmem:[%s1301] sm:$0xff]
        %v1332 = vld [vmem:[%s1301 + $0x8] sm:$0xff]
        %v1333 = vld [vmem:[%s7] sm:$0xff]
        %vm1334 = vcmask 64512
        %v1336 = vsel %vm1334, %v1329, 0
        %v1339 = vsel %vm1334, %v1330, 0
        %1341 = vmatpush.msra.mxu0 0.0
        %1342 = vmatpush.msra.mxu0 0.0
        %1343 = vmatpush.msra.mxu0 0.0
        %1344 = vmatpush.msra.mxu0 0.0
        %1345 = vmatpush.msra.mxu0 0.0
        %1346 = vmatpush.msra.mxu0 0.0
        %1347 = vmatpush.msra.mxu0 0.0
        %1348 = vmatpush.msra.mxu0 0.0
        %1349 = vmatpush.msra.mxu0 0.0
        %1350 = vmatpush.msra.mxu0 0.0
        %1351 = vmatpush.msra.mxu0 0.0
        %1352 = vmatpush.msra.mxu0 0.0
        %1353 = vmatpush.msra.mxu0 0.0
        %1354 = vmatpush.msra.mxu0 0.0
        %1355 = vmatpush.msra.mxu0 0.0
        %1356 = vmatpush.msra.mxu0 %v1333
        %1357 = vmatmul.f32.gmra.mxu0 %v1336
        %v1358 = vpop.f32.mrf.mxu0
        %v1359 = vadd.f32 0.0, %v1358
        %1360 = vmatmul.f32.gmra.mxu0 %v1339
        %v1361 = vpop.f32.mrf.mxu0
        %v1362 = vadd.f32 0.0, %v1361
        %1363 = vdwg.mxu0
        %v1364 = vld [vmem:[#allocation2] sm:$0x1]
        %v1366 = vperm.slane %v1364, 0
        %vm1368 = vcmask 130048
        %v1370 = vsel %vm1368, %v1327, 0
        %v1373 = vsel %vm1368, %v1328, 0
        %1375 = vmatpush.msra.mxu0 0.0
        %1376 = vmatpush.msra.mxu0 0.0
        %1377 = vmatpush.msra.mxu0 0.0
        %1378 = vmatpush.msra.mxu0 0.0
        %1379 = vmatpush.msra.mxu0 0.0
        %1380 = vmatpush.msra.mxu0 0.0
        %1381 = vmatpush.msra.mxu0 0.0
        %1382 = vmatpush.msra.mxu0 0.0
        %1383 = vmatpush.msra.mxu0 0.0
        %1384 = vmatpush.msra.mxu0 0.0
        %1385 = vmatpush.msra.mxu0 0.0
        %1386 = vmatpush.msra.mxu0 0.0
        %1387 = vmatpush.msra.mxu0 0.0
        %1388 = vmatpush.msra.mxu0 0.0
        %1389 = vmatpush.msra.mxu0 %v1362
        %1390 = vmatpush.msra.mxu0 %v1359
        %1391 = vmatmul.f32.gmra.mxu0 %v1370
        %v1392 = vpop.f32.mrf.mxu0
        %v1393 = vadd.f32 %v1366, %v1392
        %1394 = vmatmul.f32.gmra.mxu0 %v1373
        %v1395 = vpop.f32.mrf.mxu0
        %v1396 = vadd.f32 %v1366, %v1395
        %1397 = vdwg.mxu0
        %v1398 = vmax.f32 %v1393, 0.0
        %v1399 = vmax.f32 %v1396, 0.0
        %v1400 = vld [vmem:[%s11] sm:$0xff]
        %v1401 = vld [vmem:[%s11 + $0x8] sm:$0xff]
        %v1402 = vld [vmem:[%s11 + $0x10] sm:$0xff]
        %v1403 = vld [vmem:[%s11 + $0x18] sm:$0xff]
        %v1404 = vld [vmem:[%s11 + $0x20] sm:$0xff]
        %v1405 = vld [vmem:[%s11 + $0x28] sm:$0xff]
        %v1406 = vld [vmem:[%s11 + $0x30] sm:$0xff]
        %v1407 = vld [vmem:[%s11 + $0x38] sm:$0xff]
        %vm1408 = vcmask 523264
        %v1410 = vsel %vm1408, %v1398, 0
        %v1413 = vsel %vm1408, %v1399, 0
        %1415 = vmatpush.msra.mxu0 0.0
        %1416 = vmatpush.msra.mxu0 0.0
        %1417 = vmatpush.msra.mxu0 0.0
        %1418 = vmatpush.msra.mxu0 0.0
        %1419 = vmatpush.msra.mxu0 0.0
        %1420 = vmatpush.msra.mxu0 0.0
        %1421 = vmatpush.msra.mxu0 0.0
        %1422 = vmatpush.msra.mxu0 0.0
        %1423 = vmatpush.msra.mxu0 %v1407
        %1424 = vmatpush.msra.mxu0 %v1406
        %1425 = vmatpush.msra.mxu0 %v1405
        %1426 = vmatpush.msra.mxu0 %v1404
        %1427 = vmatpush.msra.mxu0 %v1403
        %1428 = vmatpush.msra.mxu0 %v1402
        %1429 = vmatpush.msra.mxu0 %v1401
        %1430 = vmatpush.msra.mxu0 %v1400
        %1431 = vmatmul.f32.gmra.mxu0 %v1410
        %v1432 = vpop.f32.mrf.mxu0
        %v1433 = vadd.f32 0.0, %v1432
        %1434 = vmatmul.f32.gmra.mxu0 %v1413
        %v1435 = vpop.f32.mrf.mxu0
        %v1436 = vadd.f32 0.0, %v1435
        %1437 = vdwg.mxu0
        %v1438 = vld [vmem:[#allocation5] sm:$0x1]
        %v1440 = vperm.slane %v1438, 0
        %1442 = vmatpush.msra.mxu0 0.0
        %1443 = vmatpush.msra.mxu0 0.0
        %1444 = vmatpush.msra.mxu0 0.0
        %1445 = vmatpush.msra.mxu0 0.0
        %1446 = vmatpush.msra.mxu0 0.0
        %1447 = vmatpush.msra.mxu0 0.0
        %1448 = vmatpush.msra.mxu0 0.0
        %1449 = vmatpush.msra.mxu0 0.0
        %1450 = vmatpush.msra.mxu0 0.0
        %1451 = vmatpush.msra.mxu0 0.0
        %1452 = vmatpush.msra.mxu0 0.0
        %1453 = vmatpush.msra.mxu0 0.0
        %1454 = vmatpush.msra.mxu0 0.0
        %1455 = vmatpush.msra.mxu0 0.0
        %1456 = vmatpush.msra.mxu0 %v1436
        %1457 = vmatpush.msra.mxu0 %v1433
        %1458 = vmatmul.f32.gmra.mxu0 %v1370
        %v1459 = vpop.f32.mrf.mxu0
        %v1460 = vadd.f32 %v1440, %v1459
        %1461 = vmatmul.f32.gmra.mxu0 %v1373
        %v1462 = vpop.f32.mrf.mxu0
        %v1463 = vadd.f32 %v1440, %v1462
        %1464 = vdwg.mxu0
        %v1465 = vmax.f32 %v1460, 0.0
        %v1466 = vmax.f32 %v1463, 0.0
        %v1467 = vld [vmem:[%s15] sm:$0xff]
        %v1468 = vld [vmem:[%s15 + $0x8] sm:$0xff]
        %v1469 = vld [vmem:[%s15 + $0x10] sm:$0xff]
        %v1470 = vld [vmem:[%s15 + $0x18] sm:$0xff]
        %vm1471 = vcmask 261120
        %v1473 = vsel %vm1471, %v1465, 0
        %v1476 = vsel %vm1471, %v1466, 0
        %1478 = vmatpush.msra.mxu0 0.0
        %1479 = vmatpush.msra.mxu0 0.0
        %1480 = vmatpush.msra.mxu0 0.0
        %1481 = vmatpush.msra.mxu0 0.0
        %1482 = vmatpush.msra.mxu0 0.0
        %1483 = vmatpush.msra.mxu0 0.0
        %1484 = vmatpush.msra.mxu0 0.0
        %1485 = vmatpush.msra.mxu0 0.0
        %1486 = vmatpush.msra.mxu0 0.0
        %1487 = vmatpush.msra.mxu0 0.0
        %1488 = vmatpush.msra.mxu0 0.0
        %1489 = vmatpush.msra.mxu0 0.0
        %1490 = vmatpush.msra.mxu0 %v1470
        %1491 = vmatpush.msra.mxu0 %v1469
        %1492 = vmatpush.msra.mxu0 %v1468
        %1493 = vmatpush.msra.mxu0 %v1467
        %1494 = vmatmul.f32.gmra.mxu0 %v1473
        %v1495 = vpop.f32.mrf.mxu0
        %v1496 = vadd.f32 0.0, %v1495
        %1497 = vmatmul.f32.gmra.mxu0 %v1476
        %v1498 = vpop.f32.mrf.mxu0
        %v1499 = vadd.f32 0.0, %v1498
        %1500 = vdwg.mxu0
        %v1501 = vld [vmem:[#allocation7] sm:$0x1]
        %v1503 = vperm.slane %v1501, 0
        %1505 = vmatpush.msra.mxu0 0.0
        %1506 = vmatpush.msra.mxu0 0.0
        %1507 = vmatpush.msra.mxu0 0.0
        %1508 = vmatpush.msra.mxu0 0.0
        %1509 = vmatpush.msra.mxu0 0.0
        %1510 = vmatpush.msra.mxu0 0.0
        %1511 = vmatpush.msra.mxu0 0.0
        %1512 = vmatpush.msra.mxu0 0.0
        %1513 = vmatpush.msra.mxu0 0.0
        %1514 = vmatpush.msra.mxu0 0.0
        %1515 = vmatpush.msra.mxu0 0.0
        %1516 = vmatpush.msra.mxu0 0.0
        %1517 = vmatpush.msra.mxu0 0.0
        %1518 = vmatpush.msra.mxu0 0.0
        %1519 = vmatpush.msra.mxu0 %v1499
        %1520 = vmatpush.msra.mxu0 %v1496
        %1521 = vmatmul.f32.gmra.mxu0 %v1370
        %v1522 = vpop.f32.mrf.mxu0
        %v1523 = vadd.f32 %v1503, %v1522
        %1524 = vmatmul.f32.gmra.mxu0 %v1373
        %v1525 = vpop.f32.mrf.mxu0
        %v1526 = vadd.f32 %v1503, %v1525
        %1527 = vdwg.mxu0
        %v1528 = vmax.f32 %v1523, 0.0
        %v1529 = vmax.f32 %v1526, 0.0
        %v1530 = vld [vmem:[%s19] sm:$0xff]
        %v1531 = vld [vmem:[%s19 + $0x8] sm:$0xff]
        %v1533 = vsel %vm1368, %v1528, 0
        %v1536 = vsel %vm1368, %v1529, 0
        %1538 = vmatpush.msra.mxu0 0.0
        %1539 = vmatpush.msra.mxu0 0.0
        %1540 = vmatpush.msra.mxu0 0.0
        %1541 = vmatpush.msra.mxu0 0.0
        %1542 = vmatpush.msra.mxu0 0.0
        %1543 = vmatpush.msra.mxu0 0.0
        %1544 = vmatpush.msra.mxu0 0.0
        %1545 = vmatpush.msra.mxu0 0.0
        %1546 = vmatpush.msra.mxu0 0.0
        %1547 = vmatpush.msra.mxu0 0.0
        %1548 = vmatpush.msra.mxu0 0.0
        %1549 = vmatpush.msra.mxu0 0.0
        %1550 = vmatpush.msra.mxu0 0.0
        %1551 = vmatpush.msra.mxu0 0.0
        %1552 = vmatpush.msra.mxu0 %v1531
        %1553 = vmatpush.msra.mxu0 %v1530
        %1554 = vmatmul.f32.gmra.mxu0 %v1533
        %v1555 = vpop.f32.mrf.mxu0
        %v1556 = vadd.f32 0.0, %v1555
        %1557 = vmatmul.f32.gmra.mxu0 %v1536
        %v1558 = vpop.f32.mrf.mxu0
        %v1559 = vadd.f32 0.0, %v1558
        %1560 = vdwg.mxu0
        %v1561 = vld [vmem:[#allocation8] sm:$0x1]
        %v1563 = vperm.slane %v1561, 0
        %1565 = vmatpush.msra.mxu0 0.0
        %1566 = vmatpush.msra.mxu0 0.0
        %1567 = vmatpush.msra.mxu0 0.0
        %1568 = vmatpush.msra.mxu0 0.0
        %1569 = vmatpush.msra.mxu0 0.0
        %1570 = vmatpush.msra.mxu0 0.0
        %1571 = vmatpush.msra.mxu0 0.0
        %1572 = vmatpush.msra.mxu0 0.0
        %1573 = vmatpush.msra.mxu0 0.0
        %1574 = vmatpush.msra.mxu0 0.0
        %1575 = vmatpush.msra.mxu0 0.0
        %1576 = vmatpush.msra.mxu0 0.0
        %1577 = vmatpush.msra.mxu0 0.0
        %1578 = vmatpush.msra.mxu0 0.0
        %1579 = vmatpush.msra.mxu0 %v1559
        %1580 = vmatpush.msra.mxu0 %v1556
        %1581 = vmatmul.f32.gmra.mxu0 %v1370
        %v1582 = vpop.f32.mrf.mxu0
        %v1583 = vadd.f32 %v1563, %v1582
        %1584 = vmatmul.f32.gmra.mxu0 %v1373
        %v1585 = vpop.f32.mrf.mxu0
        %v1586 = vadd.f32 %v1563, %v1585
        %1587 = vdwg.mxu0
        %vm1588 = vcmask 31744
        %1589 = vst.msk [vmem:[%s1306] sm:$0xff] %vm1588, %v1583
        %1590 = vst.msk [vmem:[%s1306 + $0x8] sm:$0xff] %vm1588, %v1586
        %v1591 = vld [vmem:[%s39] sm:$0xff]
        %v1592 = vld [vmem:[%s41] sm:$0x1]
        %v1594 = vperm.slane %v1592, 0
        %1596 = vmatpush.msra.mxu0 0.0
        %1597 = vmatpush.msra.mxu0 0.0
        %1598 = vmatpush.msra.mxu0 0.0
        %1599 = vmatpush.msra.mxu0 0.0
        %1600 = vmatpush.msra.mxu0 0.0
        %1601 = vmatpush.msra.mxu0 0.0
        %1602 = vmatpush.msra.mxu0 0.0
        %1603 = vmatpush.msra.mxu0 0.0
        %1604 = vmatpush.msra.mxu0 0.0
        %1605 = vmatpush.msra.mxu0 0.0
        %1606 = vmatpush.msra.mxu0 0.0
        %1607 = vmatpush.msra.mxu0 0.0
        %1608 = vmatpush.msra.mxu0 0.0
        %1609 = vmatpush.msra.mxu0 0.0
        %1610 = vmatpush.msra.mxu0 0.0
        %1611 = vmatpush.msra.mxu0 %v1591
        %1612 = vmatmul.f32.gmra.mxu0 %v1336
        %v1613 = vpop.f32.mrf.mxu0
        %v1614 = vadd.f32 %v1594, %v1613
        %1615 = vmatmul.f32.gmra.mxu0 %v1339
        %v1616 = vpop.f32.mrf.mxu0
        %v1617 = vadd.f32 %v1594, %v1616
        %1618 = vdwg.mxu0
        %1619 = vst.msk [vmem:[%s1311] sm:$0xff] %vm1334, %v1614
        %1620 = vst.msk [vmem:[%s1311 + $0x8] sm:$0xff] %vm1334, %v1617
        %1623 = vrot.lane.b32.xlu0 %v1614, 120
        %v1624 = vpop.permute.xlu0 %1623
        %1625 = vrot.lane.b32.xlu0 %v1617, 120
        %v1626 = vpop.permute.xlu0 %1625
        %1629 = vst.msk [vmem:[%s1316] sm:$0xff] %vm1334, %v1624
        %1630 = vst.msk [vmem:[%s1316 + $0x8] sm:$0xff] %vm1334, %v1626
        %v1631 = vld [vmem:[%s43] sm:$0xff]
        %v1633 = vsel %vm1334, %v1331, 0
        %v1636 = vsel %vm1334, %v1332, 0
        %1638 = vmatpush.msra.mxu0 0.0
        %1639 = vmatpush.msra.mxu0 0.0
        %1640 = vmatpush.msra.mxu0 0.0
        %1641 = vmatpush.msra.mxu0 0.0
        %1642 = vmatpush.msra.mxu0 0.0
        %1643 = vmatpush.msra.mxu0 0.0
        %1644 = vmatpush.msra.mxu0 0.0
        %1645 = vmatpush.msra.mxu0 0.0
        %1646 = vmatpush.msra.mxu0 0.0
        %1647 = vmatpush.msra.mxu0 0.0
        %1648 = vmatpush.msra.mxu0 0.0
        %1649 = vmatpush.msra.mxu0 0.0
        %1650 = vmatpush.msra.mxu0 0.0
        %1651 = vmatpush.msra.mxu0 0.0
        %1652 = vmatpush.msra.mxu0 0.0
        %1653 = vmatpush.msra.mxu0 %v1631
        %1654 = vmatmul.f32.gmra.mxu0 %v1633
        %v1655 = vpop.f32.mrf.mxu0
        %v1656 = vadd.f32 0.0, %v1655
        %1657 = vmatmul.f32.gmra.mxu0 %v1636
        %v1658 = vpop.f32.mrf.mxu0
        %v1659 = vadd.f32 0.0, %v1658
        %1660 = vdwg.mxu0
        %v1661 = vld [vmem:[%s45] sm:$0x1]
        %v1663 = vperm.slane %v1661, 0
        %1665 = vmatpush.msra.mxu0 0.0
        %1666 = vmatpush.msra.mxu0 0.0
        %1667 = vmatpush.msra.mxu0 0.0
        %1668 = vmatpush.msra.mxu0 0.0
        %1669 = vmatpush.msra.mxu0 0.0
        %1670 = vmatpush.msra.mxu0 0.0
        %1671 = vmatpush.msra.mxu0 0.0
        %1672 = vmatpush.msra.mxu0 0.0
        %1673 = vmatpush.msra.mxu0 0.0
        %1674 = vmatpush.msra.mxu0 0.0
        %1675 = vmatpush.msra.mxu0 0.0
        %1676 = vmatpush.msra.mxu0 0.0
        %1677 = vmatpush.msra.mxu0 0.0
        %1678 = vmatpush.msra.mxu0 0.0
        %1679 = vmatpush.msra.mxu0 %v1659
        %1680 = vmatpush.msra.mxu0 %v1656
        %1681 = vmatmul.f32.gmra.mxu0 %v1370
        %v1682 = vpop.f32.mrf.mxu0
        %v1683 = vadd.f32 %v1663, %v1682
        %1684 = vmatmul.f32.gmra.mxu0 %v1373
        %v1685 = vpop.f32.mrf.mxu0
        %v1686 = vadd.f32 %v1663, %v1685
        %1687 = vdwg.mxu0
        %1688 = vst.msk [vmem:[%s1321] sm:$0xff] %vm1334, %v1683
        %1689 = vst.msk [vmem:[%s1321 + $0x8] sm:$0xff] %vm1334, %v1686
        %v1690 = vld [vmem:[#allocation10] sm:$0xf]
        %v1692 = vsel %vm1588, %v1583, 0
        %v1695 = vsel %vm1588, %v1586, 0
        %vm1697 = vcmask 1043456
        %v1699 = vsel %vm1697, %v1690, 0
        %1701 = vmatpush.msra.mxu0 0.0
        %1702 = vmatpush.msra.mxu0 0.0
        %1703 = vmatpush.msra.mxu0 0.0
        %1704 = vmatpush.msra.mxu0 0.0
        %1705 = vmatpush.msra.mxu0 0.0
        %1706 = vmatpush.msra.mxu0 0.0
        %1707 = vmatpush.msra.mxu0 0.0
        %1708 = vmatpush.msra.mxu0 0.0
        %1709 = vmatpush.msra.mxu0 0.0
        %1710 = vmatpush.msra.mxu0 0.0
        %1711 = vmatpush.msra.mxu0 0.0
        %1712 = vmatpush.msra.mxu0 0.0
        %1713 = vmatpush.msra.mxu0 0.0
        %1714 = vmatpush.msra.mxu0 0.0
        %1715 = vmatpush.msra.mxu0 0.0
        %1716 = vmatpush.msra.mxu0 %v1699
        %1717 = vmatmul.f32.gmra.mxu0 %v1692
        %v1718 = vpop.f32.mrf.mxu0
        %v1719 = vadd.f32 0.0, %v1718
        %1720 = vmatmul.f32.gmra.mxu0 %v1695
        %v1721 = vpop.f32.mrf.mxu0
        %v1722 = vadd.f32 0.0, %v1721
        %1723 = vdwg.mxu0
        %v1724 = vld [vmem:[%s25] sm:$0x1]
        %v1726 = vperm.slane %v1724, 0
        %1728 = vmatpush.msra.mxu0 0.0
        %1729 = vmatpush.msra.mxu0 0.0
        %1730 = vmatpush.msra.mxu0 0.0
        %1731 = vmatpush.msra.mxu0 0.0
        %1732 = vmatpush.msra.mxu0 0.0
        %1733 = vmatpush.msra.mxu0 0.0
        %1734 = vmatpush.msra.mxu0 0.0
        %1735 = vmatpush.msra.mxu0 0.0
        %1736 = vmatpush.msra.mxu0 0.0
        %1737 = vmatpush.msra.mxu0 0.0
        %1738 = vmatpush.msra.mxu0 0.0
        %1739 = vmatpush.msra.mxu0 0.0
        %1740 = vmatpush.msra.mxu0 0.0
        %1741 = vmatpush.msra.mxu0 0.0
        %1742 = vmatpush.msra.mxu0 %v1722
        %1743 = vmatpush.msra.mxu0 %v1719
        %1744 = vmatmul.f32.gmra.mxu0 %v1370
        %v1745 = vpop.f32.mrf.mxu0
        %v1746 = vadd.f32 %v1726, %v1745
        %1747 = vmatmul.f32.gmra.mxu0 %v1373
        %v1748 = vpop.f32.mrf.mxu0
        %v1749 = vadd.f32 %v1726, %v1748
        %1750 = vdwg.mxu0
        %v1751 = vmax.f32 %v1746, 0.0
        %v1752 = vmax.f32 %v1749, 0.0
        %v1753 = vld [vmem:[%s27] sm:$0xff]
        %v1754 = vld [vmem:[%s27 + $0x8] sm:$0xff]
        %v1756 = vsel %vm1368, %v1751, 0
        %v1759 = vsel %vm1368, %v1752, 0
        %1761 = vmatpush.msra.mxu0 0.0
        %1762 = vmatpush.msra.mxu0 0.0
        %1763 = vmatpush.msra.mxu0 0.0
        %1764 = vmatpush.msra.mxu0 0.0
        %1765 = vmatpush.msra.mxu0 0.0
        %1766 = vmatpush.msra.mxu0 0.0
        %1767 = vmatpush.msra.mxu0 0.0
        %1768 = vmatpush.msra.mxu0 0.0
        %1769 = vmatpush.msra.mxu0 0.0
        %1770 = vmatpush.msra.mxu0 0.0
        %1771 = vmatpush.msra.mxu0 0.0
        %1772 = vmatpush.msra.mxu0 0.0
        %1773 = vmatpush.msra.mxu0 0.0
        %1774 = vmatpush.msra.mxu0 0.0
        %1775 = vmatpush.msra.mxu0 %v1754
        %1776 = vmatpush.msra.mxu0 %v1753
        %1777 = vmatmul.f32.gmra.mxu0 %v1756
        %v1778 = vpop.f32.mrf.mxu0
        %v1779 = vadd.f32 0.0, %v1778
        %1780 = vmatmul.f32.gmra.mxu0 %v1759
        %v1781 = vpop.f32.mrf.mxu0
        %v1782 = vadd.f32 0.0, %v1781
        %1783 = vdwg.mxu0
        %v1784 = vld [vmem:[%s29] sm:$0x1]
        %v1786 = vperm.slane %v1784, 0
        %1788 = vmatpush.msra.mxu0 0.0
        %1789 = vmatpush.msra.mxu0 0.0
        %1790 = vmatpush.msra.mxu0 0.0
        %1791 = vmatpush.msra.mxu0 0.0
        %1792 = vmatpush.msra.mxu0 0.0
        %1793 = vmatpush.msra.mxu0 0.0
        %1794 = vmatpush.msra.mxu0 0.0
        %1795 = vmatpush.msra.mxu0 0.0
        %1796 = vmatpush.msra.mxu0 0.0
        %1797 = vmatpush.msra.mxu0 0.0
        %1798 = vmatpush.msra.mxu0 0.0
        %1799 = vmatpush.msra.mxu0 0.0
        %1800 = vmatpush.msra.mxu0 0.0
        %1801 = vmatpush.msra.mxu0 0.0
        %1802 = vmatpush.msra.mxu0 %v1782
        %1803 = vmatpush.msra.mxu0 %v1779
        %1804 = vmatmul.f32.gmra.mxu0 %v1370
        %v1805 = vpop.f32.mrf.mxu0
        %v1806 = vadd.f32 %v1786, %v1805
        %1807 = vmatmul.f32.gmra.mxu0 %v1373
        %v1808 = vpop.f32.mrf.mxu0
        %v1809 = vadd.f32 %v1786, %v1808
        %1810 = vdwg.mxu0
        %v1811 = vmax.f32 %v1806, 0.0
        %v1812 = vmax.f32 %v1809, 0.0
        %v1813 = vld [vmem:[%s31] sm:$0xff]
        %v1814 = vld [vmem:[%s31 + $0x8] sm:$0xff]
        %v1815 = vld [vmem:[%s31 + $0x10] sm:$0xff]
        %v1816 = vld [vmem:[%s31 + $0x18] sm:$0xff]
        %v1818 = vsel %vm1471, %v1811, 0
        %v1821 = vsel %vm1471, %v1812, 0
        %1823 = vmatpush.msra.mxu0 0.0
        %1824 = vmatpush.msra.mxu0 0.0
        %1825 = vmatpush.msra.mxu0 0.0
        %1826 = vmatpush.msra.mxu0 0.0
        %1827 = vmatpush.msra.mxu0 0.0
        %1828 = vmatpush.msra.mxu0 0.0
        %1829 = vmatpush.msra.mxu0 0.0
        %1830 = vmatpush.msra.mxu0 0.0
        %1831 = vmatpush.msra.mxu0 0.0
        %1832 = vmatpush.msra.mxu0 0.0
        %1833 = vmatpush.msra.mxu0 0.0
        %1834 = vmatpush.msra.mxu0 0.0
        %1835 = vmatpush.msra.mxu0 %v1816
        %1836 = vmatpush.msra.mxu0 %v1815
        %1837 = vmatpush.msra.mxu0 %v1814
        %1838 = vmatpush.msra.mxu0 %v1813
        %1839 = vmatmul.f32.gmra.mxu0 %v1818
        %v1840 = vpop.f32.mrf.mxu0
        %v1841 = vadd.f32 0.0, %v1840
        %1842 = vmatmul.f32.gmra.mxu0 %v1821
        %v1843 = vpop.f32.mrf.mxu0
        %v1844 = vadd.f32 0.0, %v1843
        %1845 = vdwg.mxu0
        %v1846 = vld [vmem:[%s33] sm:$0x1]
        %v1848 = vperm.slane %v1846, 0
        %1850 = vmatpush.msra.mxu0 0.0
        %1851 = vmatpush.msra.mxu0 0.0
        %1852 = vmatpush.msra.mxu0 0.0
        %1853 = vmatpush.msra.mxu0 0.0
        %1854 = vmatpush.msra.mxu0 0.0
        %1855 = vmatpush.msra.mxu0 0.0
        %1856 = vmatpush.msra.mxu0 0.0
        %1857 = vmatpush.msra.mxu0 0.0
        %1858 = vmatpush.msra.mxu0 0.0
        %1859 = vmatpush.msra.mxu0 0.0
        %1860 = vmatpush.msra.mxu0 0.0
        %1861 = vmatpush.msra.mxu0 0.0
        %1862 = vmatpush.msra.mxu0 0.0
        %1863 = vmatpush.msra.mxu0 0.0
        %1864 = vmatpush.msra.mxu0 %v1844
        %1865 = vmatpush.msra.mxu0 %v1841
        %1866 = vmatmul.f32.gmra.mxu0 %v1370
        %v1867 = vpop.f32.mrf.mxu0
        %v1868 = vadd.f32 %v1848, %v1867
        %1869 = vmatmul.f32.gmra.mxu0 %v1373
        %v1870 = vpop.f32.mrf.mxu0
        %v1871 = vadd.f32 %v1848, %v1870
        %1872 = vdwg.mxu0
        %v1873 = vmax.f32 %v1868, 0.0
        %v1874 = vmax.f32 %v1871, 0.0
        %v1875 = vld [vmem:[%s35] sm:$0xff]
        %v1876 = vld [vmem:[%s35 + $0x8] sm:$0xff]
        %v1877 = vld [vmem:[%s35 + $0x10] sm:$0xff]
        %v1878 = vld [vmem:[%s35 + $0x18] sm:$0xff]
        %v1879 = vld [vmem:[%s35 + $0x20] sm:$0xff]
        %v1880 = vld [vmem:[%s35 + $0x28] sm:$0xff]
        %v1881 = vld [vmem:[%s35 + $0x30] sm:$0xff]
        %v1882 = vld [vmem:[%s35 + $0x38] sm:$0xff]
        %v1884 = vsel %vm1408, %v1873, 0
        %v1887 = vsel %vm1408, %v1874, 0
        %1889 = vmatpush.msra.mxu0 0.0
        %1890 = vmatpush.msra.mxu0 0.0
        %1891 = vmatpush.msra.mxu0 0.0
        %1892 = vmatpush.msra.mxu0 0.0
        %1893 = vmatpush.msra.mxu0 0.0
        %1894 = vmatpush.msra.mxu0 0.0
        %1895 = vmatpush.msra.mxu0 0.0
        %1896 = vmatpush.msra.mxu0 0.0
        %1897 = vmatpush.msra.mxu0 %v1882
        %1898 = vmatpush.msra.mxu0 %v1881
        %1899 = vmatpush.msra.mxu0 %v1880
        %1900 = vmatpush.msra.mxu0 %v1879
        %1901 = vmatpush.msra.mxu0 %v1878
        %1902 = vmatpush.msra.mxu0 %v1877
        %1903 = vmatpush.msra.mxu0 %v1876
        %1904 = vmatpush.msra.mxu0 %v1875
        %1905 = vmatmul.f32.gmra.mxu0 %v1884
        %v1906 = vpop.f32.mrf.mxu0
        %v1907 = vadd.f32 0.0, %v1906
        %1908 = vmatmul.f32.gmra.mxu0 %v1887
        %v1909 = vpop.f32.mrf.mxu0
        %v1910 = vadd.f32 0.0, %v1909
        %1911 = vdwg.mxu0
        %v1912 = vld [vmem:[%s37] sm:$0x1]
        %v1914 = vperm.slane %v1912, 0
        %1916 = vmatpush.msra.mxu0 0.0
        %1917 = vmatpush.msra.mxu0 0.0
        %1918 = vmatpush.msra.mxu0 0.0
        %1919 = vmatpush.msra.mxu0 0.0
        %1920 = vmatpush.msra.mxu0 0.0
        %1921 = vmatpush.msra.mxu0 0.0
        %1922 = vmatpush.msra.mxu0 0.0
        %1923 = vmatpush.msra.mxu0 0.0
        %1924 = vmatpush.msra.mxu0 0.0
        %1925 = vmatpush.msra.mxu0 0.0
        %1926 = vmatpush.msra.mxu0 0.0
        %1927 = vmatpush.msra.mxu0 0.0
        %1928 = vmatpush.msra.mxu0 0.0
        %1929 = vmatpush.msra.mxu0 0.0
        %1930 = vmatpush.msra.mxu0 %v1910
        %1931 = vmatpush.msra.mxu0 %v1907
        %1932 = vmatmul.f32.gmra.mxu0 %v1370
        %v1933 = vpop.f32.mrf.mxu0
        %v1934 = vadd.f32 %v1914, %v1933
        %1935 = vmatmul.f32.gmra.mxu0 %v1373
        %v1936 = vpop.f32.mrf.mxu0
        %v1937 = vadd.f32 %v1914, %v1936
        %1938 = vdwg.mxu0
        %1939 = vst.msk [vmem:[%s1326] sm:$0xff] %vm1334, %v1934
        %1940 = vst.msk [vmem:[%s1326 + $0x8] sm:$0xff] %vm1334, %v1937
        %v1941 = vld [vmem:[%s47] sm:$0xff]
        %v1942 = vld [vmem:[%s47 + $0x8] sm:$0xff]
        %v1943 = vld [vmem:[%s49] sm:$0x1]
        %v1945 = vperm.slane %v1943, 0
        %1947 = vmatpush.msra.mxu0 0.0
        %1948 = vmatpush.msra.mxu0 0.0
        %1949 = vmatpush.msra.mxu0 0.0
        %1950 = vmatpush.msra.mxu0 0.0
        %1951 = vmatpush.msra.mxu0 0.0
        %1952 = vmatpush.msra.mxu0 0.0
        %1953 = vmatpush.msra.mxu0 0.0
        %1954 = vmatpush.msra.mxu0 0.0
        %1955 = vmatpush.msra.mxu0 0.0
        %1956 = vmatpush.msra.mxu0 0.0
        %1957 = vmatpush.msra.mxu0 0.0
        %1958 = vmatpush.msra.mxu0 0.0
        %1959 = vmatpush.msra.mxu0 0.0
        %1960 = vmatpush.msra.mxu0 0.0
        %1961 = vmatpush.msra.mxu0 %v1942
        %1962 = vmatpush.msra.mxu0 %v1941
        %1963 = vmatmul.f32.gmra.mxu0 %v1370
        %v1964 = vpop.f32.mrf.mxu0
        %v1965 = vadd.f32 %v1945, %v1964
        %1966 = vmatmul.f32.gmra.mxu0 %v1373
        %v1967 = vpop.f32.mrf.mxu0
        %v1968 = vadd.f32 %v1945, %v1967
        %1969 = vdwg.mxu0
        %v1970 = vld [vmem:[%s51] sm:$0xff]
        %v1971 = vld [vmem:[%s51 + $0x8] sm:$0xff]
        %v1972 = vld [vmem:[%s51 + $0x10] sm:$0xff]
        %v1973 = vld [vmem:[%s51 + $0x18] sm:$0xff]
        %v1974 = vld [vmem:[%s53] sm:$0x1]
        %v1976 = vperm.slane %v1974, 0
        %v1979 = vsel %vm1471, %v1965, 0
        %v1982 = vsel %vm1471, %v1968, 0
        %1984 = vmatpush.msra.mxu0 0.0
        %1985 = vmatpush.msra.mxu0 0.0
        %1986 = vmatpush.msra.mxu0 0.0
        %1987 = vmatpush.msra.mxu0 0.0
        %1988 = vmatpush.msra.mxu0 0.0
        %1989 = vmatpush.msra.mxu0 0.0
        %1990 = vmatpush.msra.mxu0 0.0
        %1991 = vmatpush.msra.mxu0 0.0
        %1992 = vmatpush.msra.mxu0 0.0
        %1993 = vmatpush.msra.mxu0 0.0
        %1994 = vmatpush.msra.mxu0 0.0
        %1995 = vmatpush.msra.mxu0 0.0
        %1996 = vmatpush.msra.mxu0 %v1973
        %1997 = vmatpush.msra.mxu0 %v1972
        %1998 = vmatpush.msra.mxu0 %v1971
        %1999 = vmatpush.msra.mxu0 %v1970
        %2000 = vmatmul.f32.gmra.mxu0 %v1979
        %v2001 = vpop.f32.mrf.mxu0
        %v2002 = vadd.f32 %v1976, %v2001
        %2003 = vmatmul.f32.gmra.mxu0 %v1982
        %v2004 = vpop.f32.mrf.mxu0
        %v2005 = vadd.f32 %v1976, %v2004
        %2006 = vdwg.mxu0
        %v2007 = vmul.f32 %v2002, 0.35355338
        %v2008 = vmul.f32 %v2005, 0.35355338
        %v2009 = vld [vmem:[%s55] sm:$0xff]
        %v2010 = vld [vmem:[%s55 + $0x8] sm:$0xff]
        %v2011 = vld [vmem:[%s55 + $0x10] sm:$0xff]
        %v2012 = vld [vmem:[%s55 + $0x18] sm:$0xff]
        %v2013 = vld [vmem:[%s57] sm:$0x1]
        %v2015 = vperm.slane %v2013, 0
        %v2017 = vadd.f32 %v2015, 0.0
        %2020 = vrot.lane.b32.xlu0 %v2002, 96
        %v2021 = vpop.permute.xlu0 %2020
        %2022 = vrot.lane.b32.xlu0 %v2005, 96
        %v2023 = vpop.permute.xlu0 %2022
        %v2025 = vsel %vm1334, %v2007, 0
        %v2028 = vsel %vm1334, %v2008, 0
        %v2030 = vsel %vm1334, %v2021, 0
        %v2032 = vsel %vm1334, %v2023, 0
        %2034 = vmatpush.xpose.msra.mxu0 0.0
        %2035 = vmatpush.xpose.msra.mxu0 0.0
        %2036 = vmatpush.xpose.msra.mxu0 0.0
        %2037 = vmatpush.xpose.msra.mxu0 0.0
        %2038 = vmatpush.xpose.msra.mxu0 0.0
        %2039 = vmatpush.xpose.msra.mxu0 0.0
        %2040 = vmatpush.xpose.msra.mxu0 0.0
        %2041 = vmatpush.xpose.msra.mxu0 0.0
        %2042 = vmatpush.xpose.msra.mxu0 0.0
        %2043 = vmatpush.xpose.msra.mxu0 0.0
        %2044 = vmatpush.xpose.msra.mxu0 0.0
        %2045 = vmatpush.xpose.msra.mxu0 0.0
        %2046 = vmatpush.xpose.msra.mxu0 0.0
        %2047 = vmatpush.xpose.msra.mxu0 0.0
        %2048 = vmatpush.xpose.msra.mxu0 %v2032
        %2049 = vmatpush.xpose.msra.mxu0 %v2030
        %2050 = vmatmul.f32.gmra.mxu0 %v2025
        %v2051 = vpop.f32.mrf.mxu0
        %v2052 = vadd.f32 0.0, %v2051
        %2053 = vmatmul.f32.gmra.mxu0 %v2028
        %v2054 = vpop.f32.mrf.mxu0
        %v2055 = vadd.f32 0.0, %v2054
        %2056 = vdwg.mxu0
        %v2057 = vsel %vm1368, %v2052, -inf
        %2058 = vmax.xlane.f32.xlu0 %v2057
        %v2059 = vpop.xlane.xlu0 %2058
        %v2060 = vsel %vm1368, %v2055, -inf
        %2061 = vmax.xlane.f32.xlu0 %v2060
        %v2062 = vpop.xlane.xlu0 %2061
        %v2063 = vsub.f32 %v2052, %v2059
        %v2064 = vsub.f32 %v2055, %v2062
        %v2065 = vmul.f32 %v2063, 1.442695
        %v2066 = vpow.pop %v2065
        %v2067 = vmul.f32 %v2064, 1.442695
        %v2068 = vpow.pop %v2067
        %v2069 = vsel %vm1368, %v2066, 0.0
        %2070 = vadd.xlane.f32.xlu0 %v2069
        %v2071 = vpop.xlane.xlu0 %2070
        %v2072 = vsel %vm1368, %v2068, 0.0
        %2073 = vadd.xlane.f32.xlu0 %v2072
        %v2074 = vpop.xlane.xlu0 %2073
        %v2075 = vrcp.pop %v2071
        %v2076 = vrcp.pop %v2074
        %v2077 = vmul.f32 %v2066, %v2075
        %v2078 = vmul.f32 %v2068, %v2076
        %2079 = vrot.lane.b32.xlu0 %v2002, 64
        %v2080 = vpop.permute.xlu0 %2079
        %2081 = vrot.lane.b32.xlu0 %v2005, 64
        %v2082 = vpop.permute.xlu0 %2081
        %v2086 = vsel %vm1368, %v2077, 0
        %v2089 = vsel %vm1368, %v2078, 0
        %2091 = vmatpush.msra.mxu0 0.0
        %2092 = vmatpush.msra.mxu0 0.0
        %2093 = vmatpush.msra.mxu0 0.0
        %2094 = vmatpush.msra.mxu0 0.0
        %2095 = vmatpush.msra.mxu0 0.0
        %2096 = vmatpush.msra.mxu0 0.0
        %2097 = vmatpush.msra.mxu0 0.0
        %2098 = vmatpush.msra.mxu0 0.0
        %2099 = vmatpush.msra.mxu0 0.0
        %2100 = vmatpush.msra.mxu0 0.0
        %2101 = vmatpush.msra.mxu0 0.0
        %2102 = vmatpush.msra.mxu0 0.0
        %2103 = vmatpush.msra.mxu0 0.0
        %2104 = vmatpush.msra.mxu0 0.0
        %2105 = vmatpush.msra.mxu0 %v2082
        %2106 = vmatpush.msra.mxu0 %v2080
        %2107 = vmatmul.f32.gmra.mxu0 %v2086
        %v2108 = vpop.f32.mrf.mxu0
        %v2109 = vadd.f32 0.0, %v2108
        %2110 = vmatmul.f32.gmra.mxu0 %v2089
        %v2111 = vpop.f32.mrf.mxu0
        %v2112 = vadd.f32 0.0, %v2111
        %2113 = vdwg.mxu0
        %v2115 = vsel %vm1334, %v2109, 0
        %v2118 = vsel %vm1334, %v2112, 0
        %2120 = vmatpush.msra.mxu0 0.0
        %2121 = vmatpush.msra.mxu0 0.0
        %2122 = vmatpush.msra.mxu0 0.0
        %2123 = vmatpush.msra.mxu0 0.0
        %2124 = vmatpush.msra.mxu0 0.0
        %2125 = vmatpush.msra.mxu0 0.0
        %2126 = vmatpush.msra.mxu0 0.0
        %2127 = vmatpush.msra.mxu0 0.0
        %2128 = vmatpush.msra.mxu0 0.0
        %2129 = vmatpush.msra.mxu0 0.0
        %2130 = vmatpush.msra.mxu0 0.0
        %2131 = vmatpush.msra.mxu0 0.0
        %2132 = vmatpush.msra.mxu0 0.0
        %2133 = vmatpush.msra.mxu0 0.0
        %2134 = vmatpush.msra.mxu0 0.0
        %2135 = vmatpush.msra.mxu0 %v2009
        %2136 = vmatmul.f32.gmra.mxu0 %v2115
        %v2137 = vpop.f32.mrf.mxu0
        %v2138 = vadd.f32 0.0, %v2137
        %2139 = vmatmul.f32.gmra.mxu0 %v2118
        %v2140 = vpop.f32.mrf.mxu0
        %v2141 = vadd.f32 0.0, %v2140
        %2142 = vdwg.mxu0
        %v2143 = vadd.f32 %v2017, %v2138
        %v2144 = vadd.f32 %v2017, %v2141
        %2145 = vrot.lane.b32.xlu0 %v2007, 120
        %v2146 = vpop.permute.xlu0 %2145
        %2147 = vrot.lane.b32.xlu0 %v2008, 120
        %v2148 = vpop.permute.xlu0 %2147
        %2149 = vrot.lane.b32.xlu0 %v2002, 88
        %v2150 = vpop.permute.xlu0 %2149
        %2151 = vrot.lane.b32.xlu0 %v2005, 88
        %v2152 = vpop.permute.xlu0 %2151
        %v2153 = vsel %vm1334, %v2146, 0
        %v2155 = vsel %vm1334, %v2148, 0
        %v2157 = vsel %vm1334, %v2150, 0
        %v2159 = vsel %vm1334, %v2152, 0
        %2161 = vmatpush.xpose.msra.mxu0 0.0
        %2162 = vmatpush.xpose.msra.mxu0 0.0
        %2163 = vmatpush.xpose.msra.mxu0 0.0
        %2164 = vmatpush.xpose.msra.mxu0 0.0
        %2165 = vmatpush.xpose.msra.mxu0 0.0
        %2166 = vmatpush.xpose.msra.mxu0 0.0
        %2167 = vmatpush.xpose.msra.mxu0 0.0
        %2168 = vmatpush.xpose.msra.mxu0 0.0
        %2169 = vmatpush.xpose.msra.mxu0 0.0
        %2170 = vmatpush.xpose.msra.mxu0 0.0
        %2171 = vmatpush.xpose.msra.mxu0 0.0
        %2172 = vmatpush.xpose.msra.mxu0 0.0
        %2173 = vmatpush.xpose.msra.mxu0 0.0
        %2174 = vmatpush.xpose.msra.mxu0 0.0
        %2175 = vmatpush.xpose.msra.mxu0 %v2159
        %2176 = vmatpush.xpose.msra.mxu0 %v2157
        %2177 = vmatmul.f32.gmra.mxu0 %v2153
        %v2178 = vpop.f32.mrf.mxu0
        %v2179 = vadd.f32 0.0, %v2178
        %2180 = vmatmul.f32.gmra.mxu0 %v2155
        %v2181 = vpop.f32.mrf.mxu0
        %v2182 = vadd.f32 0.0, %v2181
        %2183 = vdwg.mxu0
        %v2184 = vsel %vm1368, %v2179, -inf
        %2185 = vmax.xlane.f32.xlu0 %v2184
        %v2186 = vpop.xlane.xlu0 %2185
        %v2187 = vsel %vm1368, %v2182, -inf
        %2188 = vmax.xlane.f32.xlu0 %v2187
        %v2189 = vpop.xlane.xlu0 %2188
        %v2190 = vsub.f32 %v2179, %v2186
        %v2191 = vsub.f32 %v2182, %v2189
        %v2192 = vmul.f32 %v2190, 1.442695
        %v2193 = vpow.pop %v2192
        %v2194 = vmul.f32 %v2191, 1.442695
        %v2195 = vpow.pop %v2194
        %v2196 = vsel %vm1368, %v2193, 0.0
        %2197 = vadd.xlane.f32.xlu0 %v2196
        %v2198 = vpop.xlane.xlu0 %2197
        %v2199 = vsel %vm1368, %v2195, 0.0
        %2200 = vadd.xlane.f32.xlu0 %v2199
        %v2201 = vpop.xlane.xlu0 %2200
        %v2202 = vrcp.pop %v2198
        %v2203 = vrcp.pop %v2201
        %v2204 = vmul.f32 %v2193, %v2202
        %v2205 = vmul.f32 %v2195, %v2203
        %2206 = vrot.lane.b32.xlu0 %v2002, 56
        %v2207 = vpop.permute.xlu0 %2206
        %2208 = vrot.lane.b32.xlu0 %v2005, 56
        %v2209 = vpop.permute.xlu0 %2208
        %v2213 = vsel %vm1368, %v2204, 0
        %v2216 = vsel %vm1368, %v2205, 0
        %2218 = vmatpush.msra.mxu0 0.0
        %2219 = vmatpush.msra.mxu0 0.0
        %2220 = vmatpush.msra.mxu0 0.0
        %2221 = vmatpush.msra.mxu0 0.0
        %2222 = vmatpush.msra.mxu0 0.0
        %2223 = vmatpush.msra.mxu0 0.0
        %2224 = vmatpush.msra.mxu0 0.0
        %2225 = vmatpush.msra.mxu0 0.0
        %2226 = vmatpush.msra.mxu0 0.0
        %2227 = vmatpush.msra.mxu0 0.0
        %2228 = vmatpush.msra.mxu0 0.0
        %2229 = vmatpush.msra.mxu0 0.0
        %2230 = vmatpush.msra.mxu0 0.0
        %2231 = vmatpush.msra.mxu0 0.0
        %2232 = vmatpush.msra.mxu0 %v2209
        %2233 = vmatpush.msra.mxu0 %v2207
        %2234 = vmatmul.f32.gmra.mxu0 %v2213
        %v2235 = vpop.f32.mrf.mxu0
        %v2236 = vadd.f32 0.0, %v2235
        %2237 = vmatmul.f32.gmra.mxu0 %v2216
        %v2238 = vpop.f32.mrf.mxu0
        %v2239 = vadd.f32 0.0, %v2238
        %2240 = vdwg.mxu0
        %v2242 = vsel %vm1334, %v2236, 0
        %v2245 = vsel %vm1334, %v2239, 0
        %2247 = vmatpush.msra.mxu0 0.0
        %2248 = vmatpush.msra.mxu0 0.0
        %2249 = vmatpush.msra.mxu0 0.0
        %2250 = vmatpush.msra.mxu0 0.0
        %2251 = vmatpush.msra.mxu0 0.0
        %2252 = vmatpush.msra.mxu0 0.0
        %2253 = vmatpush.msra.mxu0 0.0
        %2254 = vmatpush.msra.mxu0 0.0
        %2255 = vmatpush.msra.mxu0 0.0
        %2256 = vmatpush.msra.mxu0 0.0
        %2257 = vmatpush.msra.mxu0 0.0
        %2258 = vmatpush.msra.mxu0 0.0
        %2259 = vmatpush.msra.mxu0 0.0
        %2260 = vmatpush.msra.mxu0 0.0
        %2261 = vmatpush.msra.mxu0 0.0
        %2262 = vmatpush.msra.mxu0 %v2010
        %2263 = vmatmul.f32.gmra.mxu0 %v2242
        %v2264 = vpop.f32.mrf.mxu0
        %v2265 = vadd.f32 0.0, %v2264
        %2266 = vmatmul.f32.gmra.mxu0 %v2245
        %v2267 = vpop.f32.mrf.mxu0
        %v2268 = vadd.f32 0.0, %v2267
        %2269 = vdwg.mxu0
        %v2270 = vadd.f32 %v2143, %v2265
        %v2271 = vadd.f32 %v2144, %v2268
        %2272 = vrot.lane.b32.xlu0 %v2007, 112
        %v2273 = vpop.permute.xlu0 %2272
        %2274 = vrot.lane.b32.xlu0 %v2008, 112
        %v2275 = vpop.permute.xlu0 %2274
        %2276 = vrot.lane.b32.xlu0 %v2002, 80
        %v2277 = vpop.permute.xlu0 %2276
        %2278 = vrot.lane.b32.xlu0 %v2005, 80
        %v2279 = vpop.permute.xlu0 %2278
        %v2280 = vsel %vm1334, %v2273, 0
        %v2282 = vsel %vm1334, %v2275, 0
        %v2284 = vsel %vm1334, %v2277, 0
        %v2286 = vsel %vm1334, %v2279, 0
        %2288 = vmatpush.xpose.msra.mxu0 0.0
        %2289 = vmatpush.xpose.msra.mxu0 0.0
        %2290 = vmatpush.xpose.msra.mxu0 0.0
        %2291 = vmatpush.xpose.msra.mxu0 0.0
        %2292 = vmatpush.xpose.msra.mxu0 0.0
        %2293 = vmatpush.xpose.msra.mxu0 0.0
        %2294 = vmatpush.xpose.msra.mxu0 0.0
        %2295 = vmatpush.xpose.msra.mxu0 0.0
        %2296 = vmatpush.xpose.msra.mxu0 0.0
        %2297 = vmatpush.xpose.msra.mxu0 0.0
        %2298 = vmatpush.xpose.msra.mxu0 0.0
        %2299 = vmatpush.xpose.msra.mxu0 0.0
        %2300 = vmatpush.xpose.msra.mxu0 0.0
        %2301 = vmatpush.xpose.msra.mxu0 0.0
        %2302 = vmatpush.xpose.msra.mxu0 %v2286
        %2303 = vmatpush.xpose.msra.mxu0 %v2284
        %2304 = vmatmul.f32.gmra.mxu0 %v2280
        %v2305 = vpop.f32.mrf.mxu0
        %v2306 = vadd.f32 0.0, %v2305
        %2307 = vmatmul.f32.gmra.mxu0 %v2282
        %v2308 = vpop.f32.mrf.mxu0
        %v2309 = vadd.f32 0.0, %v2308
        %2310 = vdwg.mxu0
        %v2311 = vsel %vm1368, %v2306, -inf
        %2312 = vmax.xlane.f32.xlu0 %v2311
        %v2313 = vpop.xlane.xlu0 %2312
        %v2314 = vsel %vm1368, %v2309, -inf
        %2315 = vmax.xlane.f32.xlu0 %v2314
        %v2316 = vpop.xlane.xlu0 %2315
        %v2317 = vsub.f32 %v2306, %v2313
        %v2318 = vsub.f32 %v2309, %v2316
        %v2319 = vmul.f32 %v2317, 1.442695
        %v2320 = vpow.pop %v2319
        %v2321 = vmul.f32 %v2318, 1.442695
        %v2322 = vpow.pop %v2321
        %v2323 = vsel %vm1368, %v2320, 0.0
        %2324 = vadd.xlane.f32.xlu0 %v2323
        %v2325 = vpop.xlane.xlu0 %2324
        %v2326 = vsel %vm1368, %v2322, 0.0
        %2327 = vadd.xlane.f32.xlu0 %v2326
        %v2328 = vpop.xlane.xlu0 %2327
        %v2329 = vrcp.pop %v2325
        %v2330 = vrcp.pop %v2328
        %v2331 = vmul.f32 %v2320, %v2329
        %v2332 = vmul.f32 %v2322, %v2330
        %2333 = vrot.lane.b32.xlu0 %v2002, 48
        %v2334 = vpop.permute.xlu0 %2333
        %2335 = vrot.lane.b32.xlu0 %v2005, 48
        %v2336 = vpop.permute.xlu0 %2335
        %v2340 = vsel %vm1368, %v2331, 0
        %v2343 = vsel %vm1368, %v2332, 0
        %2345 = vmatpush.msra.mxu0 0.0
        %2346 = vmatpush.msra.mxu0 0.0
        %2347 = vmatpush.msra.mxu0 0.0
        %2348 = vmatpush.msra.mxu0 0.0
        %2349 = vmatpush.msra.mxu0 0.0
        %2350 = vmatpush.msra.mxu0 0.0
        %2351 = vmatpush.msra.mxu0 0.0
        %2352 = vmatpush.msra.mxu0 0.0
        %2353 = vmatpush.msra.mxu0 0.0
        %2354 = vmatpush.msra.mxu0 0.0
        %2355 = vmatpush.msra.mxu0 0.0
        %2356 = vmatpush.msra.mxu0 0.0
        %2357 = vmatpush.msra.mxu0 0.0
        %2358 = vmatpush.msra.mxu0 0.0
        %2359 = vmatpush.msra.mxu0 %v2336
        %2360 = vmatpush.msra.mxu0 %v2334
        %2361 = vmatmul.f32.gmra.mxu0 %v2340
        %v2362 = vpop.f32.mrf.mxu0
        %v2363 = vadd.f32 0.0, %v2362
        %2364 = vmatmul.f32.gmra.mxu0 %v2343
        %v2365 = vpop.f32.mrf.mxu0
        %v2366 = vadd.f32 0.0, %v2365
        %2367 = vdwg.mxu0
        %v2369 = vsel %vm1334, %v2363, 0
        %v2372 = vsel %vm1334, %v2366, 0
        %2374 = vmatpush.msra.mxu0 0.0
        %2375 = vmatpush.msra.mxu0 0.0
        %2376 = vmatpush.msra.mxu0 0.0
        %2377 = vmatpush.msra.mxu0 0.0
        %2378 = vmatpush.msra.mxu0 0.0
        %2379 = vmatpush.msra.mxu0 0.0
        %2380 = vmatpush.msra.mxu0 0.0
        %2381 = vmatpush.msra.mxu0 0.0
        %2382 = vmatpush.msra.mxu0 0.0
        %2383 = vmatpush.msra.mxu0 0.0
        %2384 = vmatpush.msra.mxu0 0.0
        %2385 = vmatpush.msra.mxu0 0.0
        %2386 = vmatpush.msra.mxu0 0.0
        %2387 = vmatpush.msra.mxu0 0.0
        %2388 = vmatpush.msra.mxu0 0.0
        %2389 = vmatpush.msra.mxu0 %v2011
        %2390 = vmatmul.f32.gmra.mxu0 %v2369
        %v2391 = vpop.f32.mrf.mxu0
        %v2392 = vadd.f32 0.0, %v2391
        %2393 = vmatmul.f32.gmra.mxu0 %v2372
        %v2394 = vpop.f32.mrf.mxu0
        %v2395 = vadd.f32 0.0, %v2394
        %2396 = vdwg.mxu0
        %v2397 = vadd.f32 %v2270, %v2392
        %v2398 = vadd.f32 %v2271, %v2395
        %2399 = vrot.lane.b32.xlu0 %v2007, 104
        %v2400 = vpop.permute.xlu0 %2399
        %2401 = vrot.lane.b32.xlu0 %v2008, 104
        %v2402 = vpop.permute.xlu0 %2401
        %2403 = vrot.lane.b32.xlu0 %v2002, 72
        %v2404 = vpop.permute.xlu0 %2403
        %2405 = vrot.lane.b32.xlu0 %v2005, 72
        %v2406 = vpop.permute.xlu0 %2405
        %v2407 = vsel %vm1334, %v2400, 0
        %v2409 = vsel %vm1334, %v2402, 0
        %v2411 = vsel %vm1334, %v2404, 0
        %v2413 = vsel %vm1334, %v2406, 0
        %2415 = vmatpush.xpose.msra.mxu0 0.0
        %2416 = vmatpush.xpose.msra.mxu0 0.0
        %2417 = vmatpush.xpose.msra.mxu0 0.0
        %2418 = vmatpush.xpose.msra.mxu0 0.0
        %2419 = vmatpush.xpose.msra.mxu0 0.0
        %2420 = vmatpush.xpose.msra.mxu0 0.0
        %2421 = vmatpush.xpose.msra.mxu0 0.0
        %2422 = vmatpush.xpose.msra.mxu0 0.0
        %2423 = vmatpush.xpose.msra.mxu0 0.0
        %2424 = vmatpush.xpose.msra.mxu0 0.0
        %2425 = vmatpush.xpose.msra.mxu0 0.0
        %2426 = vmatpush.xpose.msra.mxu0 0.0
        %2427 = vmatpush.xpose.msra.mxu0 0.0
        %2428 = vmatpush.xpose.msra.mxu0 0.0
        %2429 = vmatpush.xpose.msra.mxu0 %v2413
        %2430 = vmatpush.xpose.msra.mxu0 %v2411
        %2431 = vmatmul.f32.gmra.mxu0 %v2407
        %v2432 = vpop.f32.mrf.mxu0
        %v2433 = vadd.f32 0.0, %v2432
        %2434 = vmatmul.f32.gmra.mxu0 %v2409
        %v2435 = vpop.f32.mrf.mxu0
        %v2436 = vadd.f32 0.0, %v2435
        %2437 = vdwg.mxu0
        %v2438 = vsel %vm1368, %v2433, -inf
        %2439 = vmax.xlane.f32.xlu0 %v2438
        %v2440 = vpop.xlane.xlu0 %2439
        %v2441 = vsel %vm1368, %v2436, -inf
        %2442 = vmax.xlane.f32.xlu0 %v2441
        %v2443 = vpop.xlane.xlu0 %2442
        %v2444 = vsub.f32 %v2433, %v2440
        %v2445 = vsub.f32 %v2436, %v2443
        %v2446 = vmul.f32 %v2444, 1.442695
        %v2447 = vpow.pop %v2446
        %v2448 = vmul.f32 %v2445, 1.442695
        %v2449 = vpow.pop %v2448
        %v2450 = vsel %vm1368, %v2447, 0.0
        %2451 = vadd.xlane.f32.xlu0 %v2450
        %v2452 = vpop.xlane.xlu0 %2451
        %v2453 = vsel %vm1368, %v2449, 0.0
        %2454 = vadd.xlane.f32.xlu0 %v2453
        %v2455 = vpop.xlane.xlu0 %2454
        %v2456 = vrcp.pop %v2452
        %v2457 = vrcp.pop %v2455
        %v2458 = vmul.f32 %v2447, %v2456
        %v2459 = vmul.f32 %v2449, %v2457
        %2460 = vrot.lane.b32.xlu0 %v2002, 40
        %v2461 = vpop.permute.xlu0 %2460
        %2462 = vrot.lane.b32.xlu0 %v2005, 40
        %v2463 = vpop.permute.xlu0 %2462
        %v2467 = vsel %vm1368, %v2458, 0
        %v2470 = vsel %vm1368, %v2459, 0
        %2472 = vmatpush.msra.mxu0 0.0
        %2473 = vmatpush.msra.mxu0 0.0
        %2474 = vmatpush.msra.mxu0 0.0
        %2475 = vmatpush.msra.mxu0 0.0
        %2476 = vmatpush.msra.mxu0 0.0
        %2477 = vmatpush.msra.mxu0 0.0
        %2478 = vmatpush.msra.mxu0 0.0
        %2479 = vmatpush.msra.mxu0 0.0
        %2480 = vmatpush.msra.mxu0 0.0
        %2481 = vmatpush.msra.mxu0 0.0
        %2482 = vmatpush.msra.mxu0 0.0
        %2483 = vmatpush.msra.mxu0 0.0
        %2484 = vmatpush.msra.mxu0 0.0
        %2485 = vmatpush.msra.mxu0 0.0
        %2486 = vmatpush.msra.mxu0 %v2463
        %2487 = vmatpush.msra.mxu0 %v2461
        %2488 = vmatmul.f32.gmra.mxu0 %v2467
        %v2489 = vpop.f32.mrf.mxu0
        %v2490 = vadd.f32 0.0, %v2489
        %2491 = vmatmul.f32.gmra.mxu0 %v2470
        %v2492 = vpop.f32.mrf.mxu0
        %v2493 = vadd.f32 0.0, %v2492
        %2494 = vdwg.mxu0
        %v2496 = vsel %vm1334, %v2490, 0
        %v2499 = vsel %vm1334, %v2493, 0
        %2501 = vmatpush.msra.mxu0 0.0
        %2502 = vmatpush.msra.mxu0 0.0
        %2503 = vmatpush.msra.mxu0 0.0
        %2504 = vmatpush.msra.mxu0 0.0
        %2505 = vmatpush.msra.mxu0 0.0
        %2506 = vmatpush.msra.mxu0 0.0
        %2507 = vmatpush.msra.mxu0 0.0
        %2508 = vmatpush.msra.mxu0 0.0
        %2509 = vmatpush.msra.mxu0 0.0
        %2510 = vmatpush.msra.mxu0 0.0
        %2511 = vmatpush.msra.mxu0 0.0
        %2512 = vmatpush.msra.mxu0 0.0
        %2513 = vmatpush.msra.mxu0 0.0
        %2514 = vmatpush.msra.mxu0 0.0
        %2515 = vmatpush.msra.mxu0 0.0
        %2516 = vmatpush.msra.mxu0 %v2012
        %2517 = vmatmul.f32.gmra.mxu0 %v2496
        %v2518 = vpop.f32.mrf.mxu0
        %v2519 = vadd.f32 0.0, %v2518
        %2520 = vmatmul.f32.gmra.mxu0 %v2499
        %v2521 = vpop.f32.mrf.mxu0
        %v2522 = vadd.f32 0.0, %v2521
        %2523 = vdwg.mxu0
        %v2524 = vadd.f32 %v2397, %v2519
        %v2525 = vadd.f32 %v2398, %v2522
        %v2526 = vld [vmem:[%s59] sm:$0xff]
        %v2527 = vld [vmem:[%s59 + $0x8] sm:$0xff]
        %v2528 = vld [vmem:[%s59 + $0x10] sm:$0xff]
        %v2529 = vld [vmem:[%s59 + $0x18] sm:$0xff]
        %v2530 = vld [vmem:[%s61] sm:$0x1]
        %v2532 = vperm.slane %v2530, 0
        %v2535 = vsel %vm1471, %v2524, 0
        %v2538 = vsel %vm1471, %v2525, 0
        %2540 = vmatpush.msra.mxu0 0.0
        %2541 = vmatpush.msra.mxu0 0.0
        %2542 = vmatpush.msra.mxu0 0.0
        %2543 = vmatpush.msra.mxu0 0.0
        %2544 = vmatpush.msra.mxu0 0.0
        %2545 = vmatpush.msra.mxu0 0.0
        %2546 = vmatpush.msra.mxu0 0.0
        %2547 = vmatpush.msra.mxu0 0.0
        %2548 = vmatpush.msra.mxu0 0.0
        %2549 = vmatpush.msra.mxu0 0.0
        %2550 = vmatpush.msra.mxu0 0.0
        %2551 = vmatpush.msra.mxu0 0.0
        %2552 = vmatpush.msra.mxu0 %v2529
        %2553 = vmatpush.msra.mxu0 %v2528
        %2554 = vmatpush.msra.mxu0 %v2527
        %2555 = vmatpush.msra.mxu0 %v2526
        %2556 = vmatmul.f32.gmra.mxu0 %v2535
        %v2557 = vpop.f32.mrf.mxu0
        %v2558 = vadd.f32 %v2532, %v2557
        %2559 = vmatmul.f32.gmra.mxu0 %v2538
        %v2560 = vpop.f32.mrf.mxu0
        %v2561 = vadd.f32 %v2532, %v2560
        %2562 = vdwg.mxu0
        %v2563 = vmax.f32 %v2558, 0.0
        %v2564 = vmax.f32 %v2561, 0.0
        %v2565 = vld [vmem:[%s63] sm:$0xff]
        %v2566 = vld [vmem:[%s63 + $0x8] sm:$0xff]
        %v2567 = vld [vmem:[%s63 + $0x10] sm:$0xff]
        %v2568 = vld [vmem:[%s63 + $0x18] sm:$0xff]
        %v2569 = vld [vmem:[%s65] sm:$0x1]
        %v2571 = vperm.slane %v2569, 0
        %v2574 = vsel %vm1471, %v2563, 0
        %v2577 = vsel %vm1471, %v2564, 0
        %2579 = vmatpush.msra.mxu0 0.0
        %2580 = vmatpush.msra.mxu0 0.0
        %2581 = vmatpush.msra.mxu0 0.0
        %2582 = vmatpush.msra.mxu0 0.0
        %2583 = vmatpush.msra.mxu0 0.0
        %2584 = vmatpush.msra.mxu0 0.0
        %2585 = vmatpush.msra.mxu0 0.0
        %2586 = vmatpush.msra.mxu0 0.0
        %2587 = vmatpush.msra.mxu0 0.0
        %2588 = vmatpush.msra.mxu0 0.0
        %2589 = vmatpush.msra.mxu0 0.0
        %2590 = vmatpush.msra.mxu0 0.0
        %2591 = vmatpush.msra.mxu0 %v2568
        %2592 = vmatpush.msra.mxu0 %v2567
        %2593 = vmatpush.msra.mxu0 %v2566
        %2594 = vmatpush.msra.mxu0 %v2565
        %2595 = vmatmul.f32.gmra.mxu0 %v2574
        %v2596 = vpop.f32.mrf.mxu0
        %v2597 = vadd.f32 %v2571, %v2596
        %2598 = vmatmul.f32.gmra.mxu0 %v2577
        %v2599 = vpop.f32.mrf.mxu0
        %v2600 = vadd.f32 %v2571, %v2599
        %2601 = vdwg.mxu0
        %2602 = vst.msk [vmem:[%s1286] sm:$0xff] %vm1471, %v2597
        %2603 = vst.msk [vmem:[%s1286 + $0x8] sm:$0xff] %vm1471, %v2600
        %p2604 = scmp.lt.s32.totalorder %s95, 1
        %s2605 = scalar_select %p2604, %s95, 1
        %s2606 = smul.addr %s2605, 2
        %s2607 = smul.addr %s2606, 8
        %s2608 = scalar_lea.vmem %s67, %s2607
        %p2609 = scmp.lt.s32.totalorder %s95, 1
        %s2610 = scalar_select %p2609, %s95, 1
        %s2611 = smul.addr %s2610, 2
        %s2612 = smul.addr %s2611, 8
        %s2613 = scalar_lea.vmem %s69, %s2612
        %p2614 = scmp.lt.s32.totalorder %s95, 1
        %s2615 = scalar_select %p2614, %s95, 1
        %s2616 = smul.addr %s2615, 2
        %s2617 = smul.addr %s2616, 8
        %s2618 = scalar_lea.vmem %s71, %s2617
        %p2619 = scmp.lt.s32.totalorder %s95, 1
        %s2620 = scalar_select %p2619, %s95, 1
        %s2621 = smul.addr %s2620, 2
        %s2622 = smul.addr %s2621, 8
        %s2623 = scalar_lea.vmem %s73, %s2622
        %p2624 = scmp.lt.s32.totalorder %s95, 1
        %s2625 = scalar_select %p2624, %s95, 1
        %s2626 = smul.addr %s2625, 2
        %s2627 = smul.addr %s2626, 8
        %s2628 = scalar_lea.vmem %s75, %s2627
        %s2629 = sand.u32 %s941, 1
        %s2630 = scalar_lea.sflag [#allocation4], %s2629
        %s2631 = sand.u32 %s941, 1
        %s2632 = smul.addr %s2631, 16
        %s2633 = scalar_lea.vmem [#allocation11], %s2632
        // Predicated region
        $region173: #{tpu_custom_call.1} parent=151 // pred_check
          %p2634 = pneg %p821
        $region174: #{tpu_custom_call.1} parent=151 // pred_check_branch
          %2636 = sbr.rel (%p2634) target = $region176
        $region175: #{tpu_custom_call.1} parent=151 // pred_region
          _
        $region176: #{tpu_custom_call.1} parent=151 // pred_fallthru
          _
        // Predicated region
        $region177: #{tpu_custom_call.1} parent=151 // pred_check
          %p2637 = pneg %p847
        $region178: #{tpu_custom_call.1} parent=151 // pred_check_branch
          %2639 = sbr.rel (%p2637) target = $region180
        $region179: #{tpu_custom_call.1} parent=151 // pred_region
          _
        $region180: #{tpu_custom_call.1} parent=151 // pred_fallthru
          _
        // Predicated region
        $region181: #{tpu_custom_call.1} parent=151 // pred_check
          %p2640 = pneg %p873
        $region182: #{tpu_custom_call.1} parent=151 // pred_check_branch
          %2642 = sbr.rel (%p2640) target = $region184
        $region183: #{tpu_custom_call.1} parent=151 // pred_region
          _
        $region184: #{tpu_custom_call.1} parent=151 // pred_fallthru
          _
        // Predicated region
        $region185: #{tpu_custom_call.1} parent=151 // pred_check
          %p2643 = pneg %p899
        $region186: #{tpu_custom_call.1} parent=151 // pred_check_branch
          %2645 = sbr.rel (%p2643) target = $region188
        $region187: #{tpu_custom_call.1} parent=151 // pred_region
          _
        $region188: #{tpu_custom_call.1} parent=151 // pred_fallthru
          _
        // Predicated region
        $region189: #{tpu_custom_call.1} parent=151 // pred_check
          %p2646 = pneg %p925
        $region190: #{tpu_custom_call.1} parent=151 // pred_check_branch
          %2648 = sbr.rel (%p2646) target = $region192
        $region191: #{tpu_custom_call.1} parent=151 // pred_region
          _
        $region192: #{tpu_custom_call.1} parent=151 // pred_fallthru
          _
        // Predicated region
        $region193: #{tpu_custom_call.1} parent=151 // pred_check
          %p2649 = pneg %p951
        $region194: #{tpu_custom_call.1} parent=151 // pred_check_branch
          %2651 = sbr.rel (%p2649) target = $region196
        $region195: #{tpu_custom_call.1} parent=151 // pred_region
          %2653 = vsyncadd %s2630, 0
          %s2654 = smul.addr %s95, 2
          %s2655 = smul.addr %s2654, 8
          %s2656 = scalar_lea.hbm %s77, %s2655
          %s2657 = sshll.u32 %s2633, 4
          %s2658 = int_to_ptr.vmem [resolvable:$true] %s2657
          %s2659 = sshll.u32 %s2656, 4
          %s2660 = int_to_ptr.hbm [resolvable:$true] %s2659
          %2665 = dma.vmem_to_hbm [thread:$0]  %s2658, 256, %s2660, %s2630, 128, 128, 8
        $region196: #{tpu_custom_call.1} parent=151 // pred_fallthru
          _
      $region152: #{tpu_custom_call.1} parent=5 // pred_fallthru
        _
      %p2666 = scmp.le.s32.totalorder 2, %s90
      // Predicated region
      $region197: #{tpu_custom_call.1} parent=5 // pred_check
        %p2667 = pneg %p2666
      $region198: #{tpu_custom_call.1} parent=5 // pred_check_branch
        %2669 = sbr.rel (%p2667) target = $region200
      $region199: #{tpu_custom_call.1} parent=5 // pred_region
        %s2670 = ssub.s32 %s90, 2
        // Predicated region
        $region201: #{tpu_custom_call.1} parent=199 // pred_check
          %p2671 = pneg %p827
        $region202: #{tpu_custom_call.1} parent=199 // pred_check_branch
          %2673 = sbr.rel (%p2671) target = $region204
        $region203: #{tpu_custom_call.1} parent=199 // pred_region
          %p2674 = scmp.lt.s32.totalorder %s96, 1
          %s2675 = scalar_select %p2674, %s96, 1
          %s2676 = smul.addr %s2675, 2
          %s2677 = smul.addr %s2676, 8
          %s2678 = scalar_lea.vmem %s67, %s2677
        $region204: #{tpu_custom_call.1} parent=199 // pred_fallthru
          _
        // Predicated region
        $region205: #{tpu_custom_call.1} parent=199 // pred_check
          %p2679 = pneg %p853
        $region206: #{tpu_custom_call.1} parent=199 // pred_check_branch
          %2681 = sbr.rel (%p2679) target = $region208
        $region207: #{tpu_custom_call.1} parent=199 // pred_region
          %p2682 = scmp.lt.s32.totalorder %s96, 1
          %s2683 = scalar_select %p2682, %s96, 1
          %s2684 = smul.addr %s2683, 2
          %s2685 = smul.addr %s2684, 8
          %s2686 = scalar_lea.vmem %s69, %s2685
        $region208: #{tpu_custom_call.1} parent=199 // pred_fallthru
          _
        // Predicated region
        $region209: #{tpu_custom_call.1} parent=199 // pred_check
          %p2687 = pneg %p879
        $region210: #{tpu_custom_call.1} parent=199 // pred_check_branch
          %2689 = sbr.rel (%p2687) target = $region212
        $region211: #{tpu_custom_call.1} parent=199 // pred_region
          %p2690 = scmp.lt.s32.totalorder %s96, 1
          %s2691 = scalar_select %p2690, %s96, 1
          %s2692 = smul.addr %s2691, 2
          %s2693 = smul.addr %s2692, 8
          %s2694 = scalar_lea.vmem %s71, %s2693
        $region212: #{tpu_custom_call.1} parent=199 // pred_fallthru
          _
        // Predicated region
        $region213: #{tpu_custom_call.1} parent=199 // pred_check
          %p2695 = pneg %p905
        $region214: #{tpu_custom_call.1} parent=199 // pred_check_branch
          %2697 = sbr.rel (%p2695) target = $region216
        $region215: #{tpu_custom_call.1} parent=199 // pred_region
          %p2698 = scmp.lt.s32.totalorder %s96, 1
          %s2699 = scalar_select %p2698, %s96, 1
          %s2700 = smul.addr %s2699, 2
          %s2701 = smul.addr %s2700, 8
          %s2702 = scalar_lea.vmem %s73, %s2701
        $region216: #{tpu_custom_call.1} parent=199 // pred_fallthru
          _
        // Predicated region
        $region217: #{tpu_custom_call.1} parent=199 // pred_check
          %p2703 = pneg %p931
        $region218: #{tpu_custom_call.1} parent=199 // pred_check_branch
          %2705 = sbr.rel (%p2703) target = $region220
        $region219: #{tpu_custom_call.1} parent=199 // pred_region
          %p2706 = scmp.lt.s32.totalorder %s96, 1
          %s2707 = scalar_select %p2706, %s96, 1
          %s2708 = smul.addr %s2707, 2
          %s2709 = smul.addr %s2708, 8
          %s2710 = scalar_lea.vmem %s75, %s2709
        $region220: #{tpu_custom_call.1} parent=199 // pred_fallthru
          _
        // Predicated region
        $region221: #{tpu_custom_call.1} parent=199 // pred_check
          %p2711 = pneg %p957
        $region222: #{tpu_custom_call.1} parent=199 // pred_check_branch
          %2713 = sbr.rel (%p2711) target = $region224
        $region223: #{tpu_custom_call.1} parent=199 // pred_region
          %s2714 = sand.u32 %s942, 1
          %s2715 = scalar_lea.sflag [#allocation4], %s2714
          %s2716 = sand.u32 %s942, 1
          %s2717 = smul.addr %s2716, 16
          %s2718 = scalar_lea.vmem [#allocation11], %s2717
          %2720 = dma.done %s2715, 256
        $region224: #{tpu_custom_call.1} parent=199 // pred_fallthru
          _
      $region200: #{tpu_custom_call.1} parent=5 // pred_fallthru
        _
    $region6: #{tpu_custom_call.1} parent=1 // loop_footer
      %s94 = sadd.s32 1, %s90
    $region7: #{tpu_custom_call.1} parent=1 // loop_footer_branch
      %89 = sbr.rel target = $region3
    $region8: #{tpu_custom_call.1} parent=1 // loop_exit
      _
    %2721 = vsyncpa [#allocation3], 1
    %s2722 = scalar_lea.sflag [#allocation3], 1
    %2723 = vsyncpa %s2722, 1
    %2724 = vsyncpa [#allocation6], 1
    %2725 = vsyncpa [#allocation9], 1
    %2726 = vsyncpa [#allocation4], 1
    %s2727 = scalar_lea.sflag [#allocation4], 1
    %2728 = vsyncpa %s2727, 1

</llo_original>
